<compile_context>
chip_gen: v6e
topology: v6e:2x2x1
jax: 0.10.0
libtpu: 0.0.40
codegen_flags: <defaults>
</compile_context>

<pallas_src>
import functools
import math

import jax
import jax.numpy as jnp
from jax import lax
from jax.experimental import pallas as pl
from jax.experimental.pallas import tpu as pltpu


def _vmem_limit_bytes():
    """Per-generation VMEM budget (~3/4 of physical), with a safe fallback."""
    try:
        cap = getattr(pltpu.get_tpu_info(), "vmem_capacity_bytes", None)
        if cap:
            return min(int(cap) * 3 // 4, 100 * 1024 * 1024)
    except Exception:
        pass
    return 32 * 1024 * 1024


def _pick_tile(total, candidates):
    for c in candidates:
        if total % c == 0:
            return c
    return total


# ---------------------------------------------------------------------------
# Projection kernels (MXU matmuls, bf16 operands, f32 accumulation).
# ---------------------------------------------------------------------------
def _qkv_proj_kernel(x_ref, wq_ref, wk_ref, wv_ref, q_ref, k_ref, v_ref):
    # One shared x tile, three weight tiles -> three lane-dense outputs.
    x = x_ref[...]
    q_ref[...] = jnp.dot(x, wq_ref[...],
                         preferred_element_type=jnp.float32).astype(q_ref.dtype)
    k_ref[...] = jnp.dot(x, wk_ref[...],
                         preferred_element_type=jnp.float32).astype(k_ref.dtype)
    v_ref[...] = jnp.dot(x, wv_ref[...],
                         preferred_element_type=jnp.float32).astype(v_ref.dtype)


def _proj_kernel(x_ref, w_ref, o_ref):
    o_ref[...] = jnp.dot(x_ref[...], w_ref[...],
                         preferred_element_type=jnp.float32).astype(o_ref.dtype)


def _run_projection(kernel, x2d, weights, out_dtype, tm, tn, vmem_limit):
    """(rows, D) @ (D, N) per weight; grid = (N/tn, rows/tm), weight resident
    across the inner row axis (read once), x streamed N/tn times."""
    rows, D = x2d.shape
    N = weights[0].shape[1]
    n_out = len(weights)
    x_spec = pl.BlockSpec((tm, D), lambda j, i: (i, 0))
    w_spec = pl.BlockSpec((D, tn), lambda j, i: (0, j))
    o_spec = pl.BlockSpec((tm, tn), lambda j, i: (i, j))
    if n_out == 1:
        out_shape = jax.ShapeDtypeStruct((rows, N), out_dtype)
        out_specs = o_spec
    else:
        out_shape = [jax.ShapeDtypeStruct((rows, N), out_dtype)] * n_out
        out_specs = [o_spec] * n_out
    return pl.pallas_call(
        kernel,
        out_shape=out_shape,
        grid_spec=pltpu.PrefetchScalarGridSpec(
            num_scalar_prefetch=0,
            grid=(N // tn, rows // tm),
            in_specs=[x_spec] + [w_spec] * n_out,
            out_specs=out_specs,
        ),
        compiler_params=pltpu.CompilerParams(
            dimension_semantics=("parallel", "parallel"),
            vmem_limit_bytes=vmem_limit,
        ),
    )(x2d, *weights)


# ---------------------------------------------------------------------------
# Flash-style causal attention over all heads of one (batch, query-tile).
#   q_ref: (1, tq, D), k_ref/v_ref: (1, S_pad, D), o_ref: (1, tq, D)
#   with D = num_heads * head_dim (heads packed along the lane dimension).
# ---------------------------------------------------------------------------
def _flash_mha_kernel(q_ref, k_ref, v_ref, o_ref, *, num_heads, head_dim, tq, tk):
    qi = pl.program_id(1)
    neg_big = jnp.float32(-1e30)           # finite mask value: no inf-inf NaNs
    # Only the diagonal KV tile needs masking; keep just a (tq,1)+(1,tk) iota
    # pair live and let the compare broadcast (no (tq,tk) int32s held in vregs
    # across the KV loop).
    row_ids = lax.broadcasted_iota(jnp.int32, (tq, 1), 0)
    col_ids = lax.broadcasted_iota(jnp.int32, (1, tk), 1)

    def online_softmax_step(s, m, l, acc, v_t):
        m_new = jnp.maximum(m, jnp.max(s, axis=-1, keepdims=True))
        alpha = jnp.exp(m - m_new)
        p = jnp.exp(s - m_new)                                       # f32 (EUP)
        l_new = alpha * l + jnp.sum(p, axis=-1, keepdims=True)
        acc_new = alpha * acc + lax.dot_general(
            p.astype(v_t.dtype), v_t, (((1,), (0,)), ((), ())),
            preferred_element_type=jnp.float32)
        return m_new, l_new, acc_new

    # Static head loop: static lane offsets, one head's (m, l, acc) live at a
    # time (bounded vreg pressure; the fori_loop bounds each head's live range).
    for h in range(num_heads):
        c0 = h * head_dim
        q_h = q_ref[0, :, pl.ds(c0, head_dim)]                       # (tq, hd)

        def body(kv_i, carry):
            m, l, acc = carry
            kv0 = pl.multiple_of(kv_i * tk, tk)
            k_t = k_ref[0, pl.ds(kv0, tk), pl.ds(c0, head_dim)]      # (tk, hd)
            v_t = v_ref[0, pl.ds(kv0, tk), pl.ds(c0, head_dim)]      # (tk, hd)
            # Contract the head dim directly — no explicit K-tile transpose.
            s = lax.dot_general(q_h, k_t, (((1,), (1,)), ((), ())),
                                preferred_element_type=jnp.float32)  # (tq, tk)
            return online_softmax_step(s, m, l, acc, v_t)

        m0 = jnp.full((tq, 1), -jnp.inf, dtype=jnp.float32)
        l0 = jnp.zeros((tq, 1), dtype=jnp.float32)
        acc0 = jnp.zeros((tq, head_dim), dtype=jnp.float32)

        # Structural causal skip: tiles strictly below the diagonal (unmasked);
        # tiles above the diagonal are never visited.
        m, l, acc = lax.fori_loop(0, qi, body, (m0, l0, acc0))

        # Single masked diagonal tile.  Global row = qi*tq + r, col = qi*tk + c
        # and tq == tk, so the causal condition is just the local r >= c.
        kv0 = pl.multiple_of(qi * tk, tk)
        k_t = k_ref[0, pl.ds(kv0, tk), pl.ds(c0, head_dim)]
        v_t = v_ref[0, pl.ds(kv0, tk), pl.ds(c0, head_dim)]
        s = lax.dot_general(q_h, k_t, (((1,), (1,)), ((), ())),
                            preferred_element_type=jnp.float32)
        s = jnp.where(row_ids >= col_ids, s, neg_big)
        m, l, acc = online_softmax_step(s, m, l, acc, v_t)

        # Deferred normalization: one exact reciprocal + (tq, hd) multiply.
        o_ref[0, :, pl.ds(c0, head_dim)] = (
            acc * pl.reciprocal(l, approx=False)).astype(o_ref.dtype)


# ---------------------------------------------------------------------------
# Wrapper implementing the PyTorch module's forward pass.
# ---------------------------------------------------------------------------
def multi_head_self_attention(x, w_q, w_k, w_v, w_o, num_heads, *,
                              attn_p_drop=0.0, matmul_dtype=jnp.bfloat16):
    """x: (B, S, D); w_*: PyTorch nn.Linear weights (out, in) = (D, D)."""
    del attn_p_drop  # TODO(synk): training-mode dropout not implemented (eval identity).
    B, S, D = x.shape
    if D % num_heads != 0:
        raise ValueError(f"d_model ({D}) must be divisible by num_heads ({num_heads}).")
    head_dim = D // num_heads
    scale = 1.0 / math.sqrt(head_dim)
    vmem_limit = _vmem_limit_bytes()

    # Pad S to a multiple of the 128-lane tile.  Padded keys sit strictly above
    # the causal diagonal of every real query row, so the existing mask hides
    # them; padded query rows are sliced off at the end.
    tq = 128
    S_pad = pl.cdiv(S, tq) * tq
    if S_pad != S:
        x = jnp.pad(x, ((0, 0), (0, S_pad - S), (0, 0)))

    rows = B * S_pad
    tm = _pick_tile(rows, (512, 256, 128))                  # fill 256-wide MXU
    tn = _pick_tile(D, (512, 256, 128)) if D % 128 == 0 else D

    x2d = x.reshape(rows, D).astype(matmul_dtype)           # free reshape
    # nn.Linear computes y = x @ W.T; fold the softmax scale into Wq (free).
    wq = (w_q.T * scale).astype(matmul_dtype)
    wk = w_k.T.astype(matmul_dtype)
    wv = w_v.T.astype(matmul_dtype)
    wo = w_o.T.astype(matmul_dtype)

    # ---- Stage 1: QKV projections (shared x tile, weight-N tiled) ----------
    q, k, v = _run_projection(_qkv_proj_kernel, x2d, [wq, wk, wv],
                              matmul_dtype, tm, tn, vmem_limit)
    q = q.reshape(B, S_pad, D)     # free reshapes — no transposes anywhere
    k = k.reshape(B, S_pad, D)
    v = v.reshape(B, S_pad, D)

    # ---- Stage 2: causal flash attention, heads kept packed along lanes ----
    # K/V stay resident in VMEM per batch (block index constant over the
    # query-tile axis), O(S*D) bytes per buffer.
    # TODO(synk): for very long sequences switch the KV path to streamed tiles
    # (memory_space=pl.ANY + make_async_copy double buffer).
    attn = pl.pallas_call(
        functools.partial(_flash_mha_kernel, num_heads=num_heads,
                          head_dim=head_dim, tq=tq, tk=tq),
        out_shape=jax.ShapeDtypeStruct((B, S_pad, D), matmul_dtype),
        grid_spec=pltpu.PrefetchScalarGridSpec(
            num_scalar_prefetch=0,
            grid=(B, S_pad // tq),
            in_specs=[
                pl.BlockSpec((1, tq, D), lambda b, qi: (b, qi, 0)),
                pl.BlockSpec((1, S_pad, D), lambda b, qi: (b, 0, 0)),
                pl.BlockSpec((1, S_pad, D), lambda b, qi: (b, 0, 0)),
            ],
            out_specs=pl.BlockSpec((1, tq, D), lambda b, qi: (b, qi, 0)),
        ),
        compiler_params=pltpu.CompilerParams(
            dimension_semantics=("parallel", "parallel"),
            vmem_limit_bytes=vmem_limit,
        ),
    )(q, k, v)

    # ---- Stage 3: output projection on the lane-dense (rows, D) layout -----
    out = _run_projection(_proj_kernel, attn.reshape(rows, D), [wo],
                          x.dtype, tm, tn, vmem_limit)
    out = out.reshape(B, S_pad, D)
    if S_pad != S:
        out = out[:, :S, :]
    return out


# ---------------------------------------------------------------------------
# Pure-JAX reference (f32) and self-test.
# ---------------------------------------------------------------------------
def _reference(x, w_q, w_k, w_v, w_o, num_heads):
    B, S, D = x.shape
    hd = D // num_heads
    q = (x @ w_q.T).reshape(B, S, num_heads, hd).transpose(0, 2, 1, 3)
    k = (x @ w_k.T).reshape(B, S, num_heads, hd).transpose(0, 2, 1, 3)
    v = (x @ w_v.T).reshape(B, S, num_heads, hd).transpose(0, 2, 1, 3)
    scores = jnp.einsum("bhqd,bhkd->bhqk", q, k) / math.sqrt(hd)
    mask = jnp.tril(jnp.ones((S, S), dtype=bool))
    scores = jnp.where(mask[None, None], scores, -jnp.inf)
    p = jax.nn.softmax(scores, axis=-1)
    attn = jnp.einsum("bhqk,bhkd->bhqd", p, v)
    attn = attn.transpose(0, 2, 1, 3).reshape(B, S, D)
    return attn @ w_o.T


def _check_case(B, S, D, H):
    key = jax.random.PRNGKey(0)
    kx, kq, kk, kv, ko = jax.random.split(key, 5)
    x = jax.random.normal(kx, (B, S, D), dtype=jnp.float32)
    # PyTorch nn.Linear weight shape: (out_features, in_features) = (D, D)
    w_q = jax.random.normal(kq, (D, D), dtype=jnp.float32) * 0.02
    w_k = jax.random.normal(kk, (D, D), dtype=jnp.float32) * 0.02
    w_v = jax.random.normal(kv, (D, D), dtype=jnp.float32) * 0.02
    w_o = jax.random.normal(ko, (D, D), dtype=jnp.float32) * 0.02

    out = jax.block_until_ready(
        multi_head_self_attention(x, w_q, w_k, w_v, w_o, H))
    ref = _reference(x, w_q, w_k, w_v, w_o, H)
    assert out.shape == ref.shape, (out.shape, ref.shape)
    # bf16 MXU operands with f32 accumulation -> loose tolerance vs f32 ref.
    err = jnp.max(jnp.abs(out - ref))
    assert jnp.allclose(out, ref, atol=2e-2, rtol=2e-2), (
        f"mismatch vs reference (B={B},S={S},D={D},H={H}): max abs err {err}")


if __name__ == "__main__":
    # Hardware-relevant shapes: 4 query tiles, dynamic KV loop, hd=128 heads.
    _check_case(B=2, S=512, D=256, H=2)
    # Sequence padding (200 -> 256) and hd=64 (sub-128-lane head slices).
    _check_case(B=1, S=200, D=256, H=4)
    print("KERNEL_OK")
</pallas_src>

<mosaic_0001>
module attributes {stable_mosaic.version = 11 : i64} {
  func.func @_qkv_proj_kernel(%arg0: i32, %arg1: i32, %arg2: memref<512x256xbf16, #tpu.memory_space<vmem>>, %arg3: memref<256x256xbf16, #tpu.memory_space<vmem>>, %arg4: memref<256x256xbf16, #tpu.memory_space<vmem>>, %arg5: memref<256x256xbf16, #tpu.memory_space<vmem>>, %arg6: memref<512x256xbf16, #tpu.memory_space<vmem>>, %arg7: memref<512x256xbf16, #tpu.memory_space<vmem>>, %arg8: memref<512x256xbf16, #tpu.memory_space<vmem>>) attributes {dimension_semantics = [#tpu.dimension_semantics<parallel>, #tpu.dimension_semantics<parallel>], iteration_bounds = array<i64: 1, 2>, scalar_prefetch = 0 : i64, scratch_operands = 0 : i64, tpu.core_type = #tpu.core_type<tc>, window_params = [{transform_indices = @transform_0, window_bounds = array<i64: 512, 256>}, {transform_indices = @transform_1, window_bounds = array<i64: 256, 256>}, {transform_indices = @transform_2, window_bounds = array<i64: 256, 256>}, {transform_indices = @transform_3, window_bounds = array<i64: 256, 256>}, {transform_indices = @transform_4, window_bounds = array<i64: 512, 256>}, {transform_indices = @transform_5, window_bounds = array<i64: 512, 256>}, {transform_indices = @transform_6, window_bounds = array<i64: 512, 256>}]} {
    %c0 = arith.constant 0 : index
    %c0_0 = arith.constant 0 : index
    %0 = vector.load %arg2[%c0, %c0_0] : memref<512x256xbf16, #tpu.memory_space<vmem>>, vector<512x256xbf16>
    %c0_1 = arith.constant 0 : index
    %c0_2 = arith.constant 0 : index
    %1 = vector.load %arg3[%c0_1, %c0_2] : memref<256x256xbf16, #tpu.memory_space<vmem>>, vector<256x256xbf16>
    %cst = arith.constant dense<0.000000e+00> : vector<512x256xf32>
    %2 = tpu.matmul %0, %1, %cst {dimension_numbers = #tpu.dot_dimension_numbers<[1], [0], [0], [1], [0, 0, 1, 1], [], []>} : vector<512x256xbf16>, vector<256x256xbf16>, vector<512x256xf32> -> vector<512x256xf32>
    %3 = arith.truncf %2 : vector<512x256xf32> to vector<512x256xbf16>
    %c0_3 = arith.constant 0 : index
    %c0_4 = arith.constant 0 : index
    %4 = vector.load %arg6[%c0_3, %c0_4] : memref<512x256xbf16, #tpu.memory_space<vmem>>, vector<512x256xbf16>
    tpu.vector_store %arg6[%c0_3, %c0_4], %3 {strides = array<i32>} : memref<512x256xbf16, #tpu.memory_space<vmem>>, vector<512x256xbf16>,
    %c0_5 = arith.constant 0 : index
    %c0_6 = arith.constant 0 : index
    %5 = vector.load %arg4[%c0_5, %c0_6] : memref<256x256xbf16, #tpu.memory_space<vmem>>, vector<256x256xbf16>
    %cst_7 = arith.constant dense<0.000000e+00> : vector<512x256xf32>
    %6 = tpu.matmul %0, %5, %cst_7 {dimension_numbers = #tpu.dot_dimension_numbers<[1], [0], [0], [1], [0, 0, 1, 1], [], []>} : vector<512x256xbf16>, vector<256x256xbf16>, vector<512x256xf32> -> vector<512x256xf32>
    %7 = arith.truncf %6 : vector<512x256xf32> to vector<512x256xbf16>
    %c0_8 = arith.constant 0 : index
    %c0_9 = arith.constant 0 : index
    %8 = vector.load %arg7[%c0_8, %c0_9] : memref<512x256xbf16, #tpu.memory_space<vmem>>, vector<512x256xbf16>
    tpu.vector_store %arg7[%c0_8, %c0_9], %7 {strides = array<i32>} : memref<512x256xbf16, #tpu.memory_space<vmem>>, vector<512x256xbf16>,
    %c0_10 = arith.constant 0 : index
    %c0_11 = arith.constant 0 : index
    %9 = vector.load %arg5[%c0_10, %c0_11] : memref<256x256xbf16, #tpu.memory_space<vmem>>, vector<256x256xbf16>
    %cst_12 = arith.constant dense<0.000000e+00> : vector<512x256xf32>
    %10 = tpu.matmul %0, %9, %cst_12 {dimension_numbers = #tpu.dot_dimension_numbers<[1], [0], [0], [1], [0, 0, 1, 1], [], []>} : vector<512x256xbf16>, vector<256x256xbf16>, vector<512x256xf32> -> vector<512x256xf32>
    %11 = arith.truncf %10 : vector<512x256xf32> to vector<512x256xbf16>
    %c0_13 = arith.constant 0 : index
    %c0_14 = arith.constant 0 : index
    %12 = vector.load %arg8[%c0_13, %c0_14] : memref<512x256xbf16, #tpu.memory_space<vmem>>, vector<512x256xbf16>
    tpu.vector_store %arg8[%c0_13, %c0_14], %11 {strides = array<i32>} : memref<512x256xbf16, #tpu.memory_space<vmem>>, vector<512x256xbf16>,
    return
  }
  func.func @transform_0(%arg0: i32, %arg1: i32) -> (i32, i32) {
    %c0_i32 = arith.constant 0 : i32
    %c0_i32_0 = arith.constant 0 : i32
    return %arg1, %c0_i32 : i32, i32
  }
  func.func @transform_1(%arg0: i32, %arg1: i32) -> (i32, i32) {
    %c0_i32 = arith.constant 0 : i32
    %c0_i32_0 = arith.constant 0 : i32
    return %c0_i32, %arg0 : i32, i32
  }
  func.func @transform_2(%arg0: i32, %arg1: i32) -> (i32, i32) {
    %c0_i32 = arith.constant 0 : i32
    %c0_i32_0 = arith.constant 0 : i32
    return %c0_i32, %arg0 : i32, i32
  }
  func.func @transform_3(%arg0: i32, %arg1: i32) -> (i32, i32) {
    %c0_i32 = arith.constant 0 : i32
    %c0_i32_0 = arith.constant 0 : i32
    return %c0_i32, %arg0 : i32, i32
  }
  func.func @transform_4(%arg0: i32, %arg1: i32) -> (i32, i32) {
    %c0_i32 = arith.constant 0 : i32
    return %arg1, %arg0 : i32, i32
  }
  func.func @transform_5(%arg0: i32, %arg1: i32) -> (i32, i32) {
    %c0_i32 = arith.constant 0 : i32
    return %arg1, %arg0 : i32, i32
  }
  func.func @transform_6(%arg0: i32, %arg1: i32) -> (i32, i32) {
    %c0_i32 = arith.constant 0 : i32
    return %arg1, %arg0 : i32, i32
  }
}

</mosaic_0001>

<llo_original>
// kernel: tpu_custom_call.1
$region0: #{tpu_custom_call.1}
  #allocation0 [shape = 'u32[]', space=smem, size = 0x4, offset = 0x4, fixed_abs, tag = 'smem constant byte address 0x4 - core index']
  #allocation1 [shape = 'u32[144,128]{1,0:T(1,128)}', space=vmem, size = 0x12000, scoped, tag = 'internal scratch']
  %s0 = inlined_call_operand.hbm [shape: bf16[1024,256], index: 0, kind: input, shape index: {}]
  %s1 = inlined_call_operand.hbm [shape: bf16[256,256], index: 1, kind: input, shape index: {}]
  %s2 = inlined_call_operand.hbm [shape: bf16[256,256], index: 2, kind: input, shape index: {}]
  %s3 = inlined_call_operand.hbm [shape: bf16[256,256], index: 3, kind: input, shape index: {}]
  %s4 = inlined_call_operand.hbm [shape: bf16[1024,256], index: 4, kind: output, shape index: {0}]
  %s5 = inlined_call_operand.hbm [shape: bf16[1024,256], index: 5, kind: output, shape index: {1}]
  %s6 = inlined_call_operand.hbm [shape: bf16[1024,256], index: 6, kind: output, shape index: {2}]
  %7 = xla_tuple %s4, %s5, %s6
  %s8 = sld [smem:[#allocation0]]
  $region81: #{tpu_custom_call.1} parent=0
    _
  %s10 = ssub.s32 1, %s8
  %s11 = scalar_select 0, %s10, %s8
  $region1: #{tpu_custom_call.1} parent=0
    #allocation2 [shape = 'u8[524288]{0}', space=vmem, size = 0x80000, scoped, tag = 'input window, operand 0']
    #allocation3 [shape = 's32[2]{0}', space=sflag, size = 0x8, scoped, tag = 'scoped memory for tpu_custom_call.1']
    #allocation4 [shape = 's32[2]{0}', space=sflag, size = 0x8, scoped, tag = 'scoped memory for tpu_custom_call.1']
    #allocation5 [shape = 'u8[131072]{0}', space=vmem, size = 0x20000, scoped, tag = 'input window, operand 1, single buffered']
    #allocation6 [shape = 's32[1]{0}', space=sflag, size = 0x4, scoped, tag = 'scoped memory for tpu_custom_call.1']
    #allocation7 [shape = 'u8[131072]{0}', space=vmem, size = 0x20000, scoped, tag = 'input window, operand 2, single buffered']
    #allocation8 [shape = 'u8[131072]{0}', space=vmem, size = 0x20000, scoped, tag = 'input window, operand 3, single buffered']
    #allocation9 [shape = 's32[1]{0}', space=sflag, size = 0x4, scoped, tag = 'scoped memory for tpu_custom_call.1']
    #allocation10 [shape = 'u8[524288]{0}', space=vmem, size = 0x80000, scoped, tag = 'output window, operand 0']
    #allocation11 [shape = 'u8[524288]{0}', space=vmem, size = 0x80000, scoped, tag = 'output window, operand 1']
    #allocation12 [shape = 's32[2]{0}', space=sflag, size = 0x8, scoped, tag = 'scoped memory for tpu_custom_call.1']
    #allocation13 [shape = 'u8[524288]{0}', space=vmem, size = 0x80000, scoped, tag = 'output window, operand 2']
    %12 = vsyncpa [#allocation3], 0
    %s13 = scalar_lea.sflag [#allocation3], 1
    %14 = vsyncpa %s13, 0
    %15 = vsyncpa [#allocation6], 0
    %16 = vsyncpa [#allocation9], 0
    %17 = vsyncpa [#allocation4], 0
    %s18 = scalar_lea.sflag [#allocation4], 1
    %19 = vsyncpa %s18, 0
    %20 = vsyncpa [#allocation12], 0
    %s21 = scalar_lea.sflag [#allocation12], 1
    %22 = vsyncpa %s21, 0
    loop: start=0, step=1, limit=4
    $region2: #{tpu_custom_call.1} parent=1 // loop_pre_header
      _
    $region3: #{tpu_custom_call.1} parent=1 // loop_header
      %s24 = sphi 0, %s28
      %p25 = scmp.ge.s32.totalorder %s24, 4
      %s31 = sphi 0, %s43
      %s32 = sphi 0, %s39
      %s33 = sphi 0, %s31
      %s34 = sphi 0, %s32
      %s35 = sphi 0, %s33
      %s36 = sphi 0, %s34
      %s46 = sphi 0, %s48
      %s49 = sphi 0, %s46
      %s50 = sphi 0, %s49
      %s66 = sphi 0, %s50
      %s72 = sphi 0, %s74
      %s75 = sphi 0, %s72
      %s76 = sphi 0, %s75
      %s92 = sphi 0, %s76
      %s98 = sphi 0, %s100
      %s101 = sphi 0, %s98
      %s102 = sphi 0, %s101
      %s118 = sphi 0, %s102
      %s124 = sphi 0, %s126
      %s127 = sphi 0, %s124
      %s128 = sphi 0, %s127
      %s144 = sphi 0, %s128
      %s152 = sphi 0, %s154
      %s155 = sphi 0, %s152
      %s156 = sphi 0, %s155
      %s172 = sphi 0, %s156
      %s180 = sphi 0, %s182
      %s183 = sphi 0, %s180
      %s184 = sphi 0, %s183
      %s200 = sphi 0, %s184
      %s208 = sphi 0, %s210
      %s211 = sphi 0, %s208
      %s212 = sphi 0, %s211
      %s228 = sphi 0, %s212
    $region4: #{tpu_custom_call.1} parent=1 // loop_header_branch
      %27 = sbr.rel (%p25) target = $region8
    $region5: #{tpu_custom_call.1} parent=1 // loop_body
      %s29 = ssub.s32 %s24, 1
      %s30 = ssub.s32 %s24, 2
      %s37 = sadd.s32 1, %s32
      %p38 = scmp.ge.s32.totalorder %s37, 2
      %s39 = scalar_select %p38, 0, %s37
      %s40 = sadd.s32 1, %s31
      %s41 = scalar_select %p38, %s40, %s31
      %p42 = scmp.ge.s32.totalorder %s41, 1
      %s43 = scalar_select %p42, 0, %s41
      %s44 = ssub.s32 %s32, %s39
      %p45 = scmp.eq.s32.totalorder %s44, 0
      %s47 = sadd.s32 %s46, 1
      %s48 = scalar_select %p45, %s46, %s47
      %p51 = pneg %p45
      %p52 = scmp.eq.s32.totalorder %s24, 1
      %p53 = por %p51, %p52
      %p54 = scmp.ne.s32.totalorder %s46, %s49
      %p55 = scmp.eq.s32.totalorder %s24, 0
      %p56 = por %p54, %p55
      %p57 = scmp.ne.s32.totalorder %s46, %s49
      %p58 = scmp.eq.s32.totalorder %s29, 1
      %p59 = por %p57, %p58
      %p60 = scmp.ne.s32.totalorder %s49, %s50
      %p61 = scmp.eq.s32.totalorder %s29, 0
      %p62 = por %p60, %p61
      %p63 = scmp.ne.s32.totalorder %s49, %s50
      %p64 = scmp.eq.s32.totalorder %s30, 1
      %p65 = por %p63, %p64
      %p67 = scmp.ne.s32.totalorder %s50, %s66
      %p68 = scmp.eq.s32.totalorder %s30, 0
      %p69 = por %p67, %p68
      %s70 = ssub.s32 %s31, %s43
      %p71 = scmp.eq.s32.totalorder %s70, 0
      %s73 = sadd.s32 %s72, 1
      %s74 = scalar_select %p71, %s72, %s73
      %p77 = pneg %p71
      %p78 = scmp.eq.s32.totalorder %s24, 1
      %p79 = por %p77, %p78
      %p80 = scmp.ne.s32.totalorder %s72, %s75
      %p81 = scmp.eq.s32.totalorder %s24, 0
      %p82 = por %p80, %p81
      %p83 = scmp.ne.s32.totalorder %s72, %s75
      %p84 = scmp.eq.s32.totalorder %s29, 1
      %p85 = por %p83, %p84
      %p86 = scmp.ne.s32.totalorder %s75, %s76
      %p87 = scmp.eq.s32.totalorder %s29, 0
      %p88 = por %p86, %p87
      %p89 = scmp.ne.s32.totalorder %s75, %s76
      %p90 = scmp.eq.s32.totalorder %s30, 1
      %p91 = por %p89, %p90
      %p93 = scmp.ne.s32.totalorder %s76, %s92
      %p94 = scmp.eq.s32.totalorder %s30, 0
      %p95 = por %p93, %p94
      %s96 = ssub.s32 %s31, %s43
      %p97 = scmp.eq.s32.totalorder %s96, 0
      %s99 = sadd.s32 %s98, 1
      %s100 = scalar_select %p97, %s98, %s99
      %p103 = pneg %p97
      %p104 = scmp.eq.s32.totalorder %s24, 1
      %p105 = por %p103, %p104
      %p106 = scmp.ne.s32.totalorder %s98, %s101
      %p107 = scmp.eq.s32.totalorder %s24, 0
      %p108 = por %p106, %p107
      %p109 = scmp.ne.s32.totalorder %s98, %s101
      %p110 = scmp.eq.s32.totalorder %s29, 1
      %p111 = por %p109, %p110
      %p112 = scmp.ne.s32.totalorder %s101, %s102
      %p113 = scmp.eq.s32.totalorder %s29, 0
      %p114 = por %p112, %p113
      %p115 = scmp.ne.s32.totalorder %s101, %s102
      %p116 = scmp.eq.s32.totalorder %s30, 1
      %p117 = por %p115, %p116
      %p119 = scmp.ne.s32.totalorder %s102, %s118
      %p120 = scmp.eq.s32.totalorder %s30, 0
      %p121 = por %p119, %p120
      %s122 = ssub.s32 %s31, %s43
      %p123 = scmp.eq.s32.totalorder %s122, 0
      %s125 = sadd.s32 %s124, 1
      %s126 = scalar_select %p123, %s124, %s125
      %p129 = pneg %p123
      %p130 = scmp.eq.s32.totalorder %s24, 1
      %p131 = por %p129, %p130
      %p132 = scmp.ne.s32.totalorder %s124, %s127
      %p133 = scmp.eq.s32.totalorder %s24, 0
      %p134 = por %p132, %p133
      %p135 = scmp.ne.s32.totalorder %s124, %s127
      %p136 = scmp.eq.s32.totalorder %s29, 1
      %p137 = por %p135, %p136
      %p138 = scmp.ne.s32.totalorder %s127, %s128
      %p139 = scmp.eq.s32.totalorder %s29, 0
      %p140 = por %p138, %p139
      %p141 = scmp.ne.s32.totalorder %s127, %s128
      %p142 = scmp.eq.s32.totalorder %s30, 1
      %p143 = por %p141, %p142
      %p145 = scmp.ne.s32.totalorder %s128, %s144
      %p146 = scmp.eq.s32.totalorder %s30, 0
      %p147 = por %p145, %p146
      %s148 = ssub.s32 %s32, %s39
      %s149 = ssub.s32 %s31, %s43
      %s150 = sor.u32 %s148, %s149
      %p151 = scmp.eq.s32.totalorder %s150, 0
      %s153 = sadd.s32 %s152, 1
      %s154 = scalar_select %p151, %s152, %s153
      %p157 = pneg %p151
      %p158 = scmp.eq.s32.totalorder %s24, 1
      %p159 = por %p157, %p158
      %p160 = scmp.ne.s32.totalorder %s152, %s155
      %p161 = scmp.eq.s32.totalorder %s24, 0
      %p162 = por %p160, %p161
      %p163 = scmp.ne.s32.totalorder %s152, %s155
      %p164 = scmp.eq.s32.totalorder %s29, 1
      %p165 = por %p163, %p164
      %p166 = scmp.ne.s32.totalorder %s155, %s156
      %p167 = scmp.eq.s32.totalorder %s29, 0
      %p168 = por %p166, %p167
      %p169 = scmp.ne.s32.totalorder %s155, %s156
      %p170 = scmp.eq.s32.totalorder %s30, 1
      %p171 = por %p169, %p170
      %p173 = scmp.ne.s32.totalorder %s156, %s172
      %p174 = scmp.eq.s32.totalorder %s30, 0
      %p175 = por %p173, %p174
      %s176 = ssub.s32 %s32, %s39
      %s177 = ssub.s32 %s31, %s43
      %s178 = sor.u32 %s176, %s177
      %p179 = scmp.eq.s32.totalorder %s178, 0
      %s181 = sadd.s32 %s180, 1
      %s182 = scalar_select %p179, %s180, %s181
      %p185 = pneg %p179
      %p186 = scmp.eq.s32.totalorder %s24, 1
      %p187 = por %p185, %p186
      %p188 = scmp.ne.s32.totalorder %s180, %s183
      %p189 = scmp.eq.s32.totalorder %s24, 0
      %p190 = por %p188, %p189
      %p191 = scmp.ne.s32.totalorder %s180, %s183
      %p192 = scmp.eq.s32.totalorder %s29, 1
      %p193 = por %p191, %p192
      %p194 = scmp.ne.s32.totalorder %s183, %s184
      %p195 = scmp.eq.s32.totalorder %s29, 0
      %p196 = por %p194, %p195
      %p197 = scmp.ne.s32.totalorder %s183, %s184
      %p198 = scmp.eq.s32.totalorder %s30, 1
      %p199 = por %p197, %p198
      %p201 = scmp.ne.s32.totalorder %s184, %s200
      %p202 = scmp.eq.s32.totalorder %s30, 0
      %p203 = por %p201, %p202
      %s204 = ssub.s32 %s32, %s39
      %s205 = ssub.s32 %s31, %s43
      %s206 = sor.u32 %s204, %s205
      %p207 = scmp.eq.s32.totalorder %s206, 0
      %s209 = sadd.s32 %s208, 1
      %s210 = scalar_select %p207, %s208, %s209
      %p213 = pneg %p207
      %p214 = scmp.eq.s32.totalorder %s24, 1
      %p215 = por %p213, %p214
      %p216 = scmp.ne.s32.totalorder %s208, %s211
      %p217 = scmp.eq.s32.totalorder %s24, 0
      %p218 = por %p216, %p217
      %p219 = scmp.ne.s32.totalorder %s208, %s211
      %p220 = scmp.eq.s32.totalorder %s29, 1
      %p221 = por %p219, %p220
      %p222 = scmp.ne.s32.totalorder %s211, %s212
      %p223 = scmp.eq.s32.totalorder %s29, 0
      %p224 = por %p222, %p223
      %p225 = scmp.ne.s32.totalorder %s211, %s212
      %p226 = scmp.eq.s32.totalorder %s30, 1
      %p227 = por %p225, %p226
      %p229 = scmp.ne.s32.totalorder %s212, %s228
      %p230 = scmp.eq.s32.totalorder %s30, 0
      %p231 = por %p229, %p230
      %p232 = scmp.le.s32.totalorder 1, %s24
      %p233 = scmp.lt.s32.totalorder %s24, 3
      %p234 = pnand %p232, %p233
      %p235 = pneg %p234
      // Predicated region
      $region9: #{tpu_custom_call.1} parent=5 // pred_check
        _
      $region10: #{tpu_custom_call.1} parent=5 // pred_check_branch
        %237 = sbr.rel (%p234) target = $region12
      $region11: #{tpu_custom_call.1} parent=5 // pred_region
        %s238 = ssub.s32 %s24, 1
        // Predicated region
        $region13: #{tpu_custom_call.1} parent=11 // pred_check
          %p239 = pneg %p88
        $region14: #{tpu_custom_call.1} parent=11 // pred_check_branch
          %241 = sbr.rel (%p239) target = $region16
        $region15: #{tpu_custom_call.1} parent=11 // pred_region
          %s242 = smul.u32 2, %s33
          %s244 = ssub.s32 4096, 4096
          %245 = vsyncadd [#allocation6], %s244
          %s246 = smul.addr %s242, 64
          %s247 = scalar_lea.hbm %s1, %s246
          %s248 = sshll.u32 [#allocation5], 4
          %s249 = int_to_ptr.vmem [resolvable:$true] %s248
          %254 = dma.hbm_to_vmem [thread:$0]  %s247, 4096, %s249, [#allocation6], 128, 128, 8
        $region16: #{tpu_custom_call.1} parent=11 // pred_fallthru
          _
        // Predicated region
        $region17: #{tpu_custom_call.1} parent=11 // pred_check
          %p255 = pneg %p114
        $region18: #{tpu_custom_call.1} parent=11 // pred_check_branch
          %257 = sbr.rel (%p255) target = $region20
        $region19: #{tpu_custom_call.1} parent=11 // pred_region
          %s258 = smul.u32 2, %s33
          %s260 = ssub.s32 4096, 4096
          %261 = vsyncadd [#allocation6], %s260
          %s262 = smul.addr %s258, 64
          %s263 = scalar_lea.hbm %s2, %s262
          %s264 = sshll.u32 [#allocation7], 4
          %s265 = int_to_ptr.vmem [resolvable:$true] %s264
          %270 = dma.hbm_to_vmem [thread:$0]  %s263, 4096, %s265, [#allocation6], 128, 128, 8
        $region20: #{tpu_custom_call.1} parent=11 // pred_fallthru
          _
        // Predicated region
        $region21: #{tpu_custom_call.1} parent=11 // pred_check
          %p271 = pneg %p140
        $region22: #{tpu_custom_call.1} parent=11 // pred_check_branch
          %273 = sbr.rel (%p271) target = $region24
        $region23: #{tpu_custom_call.1} parent=11 // pred_region
          %s274 = smul.u32 2, %s33
          %s276 = ssub.s32 4096, 4096
          %277 = vsyncadd [#allocation9], %s276
          %s278 = smul.addr %s274, 64
          %s279 = scalar_lea.hbm %s3, %s278
          %s280 = sshll.u32 [#allocation8], 4
          %s281 = int_to_ptr.vmem [resolvable:$true] %s280
          %286 = dma.hbm_to_vmem [thread:$0]  %s279, 4096, %s281, [#allocation9], 128, 128, 8
        $region24: #{tpu_custom_call.1} parent=11 // pred_fallthru
          _
      $region12: #{tpu_custom_call.1} parent=5 // pred_fallthru
        _
      %p287 = scmp.lt.s32.totalorder %s24, 2
      // Predicated region
      $region25: #{tpu_custom_call.1} parent=5 // pred_check
        %p288 = pneg %p287
      $region26: #{tpu_custom_call.1} parent=5 // pred_check_branch
        %290 = sbr.rel (%p288) target = $region28
      $region27: #{tpu_custom_call.1} parent=5 // pred_region
        // Predicated region
        $region29: #{tpu_custom_call.1} parent=27 // pred_check
          %p291 = pneg %p56
        $region30: #{tpu_custom_call.1} parent=27 // pred_check_branch
          %293 = sbr.rel (%p291) target = $region32
        $region31: #{tpu_custom_call.1} parent=27 // pred_region
          %s294 = sand.u32 %s46, 1
          %s295 = scalar_lea.sflag [#allocation3], %s294
          %s296 = sand.u32 %s46, 1
          %s297 = smul.addr %s296, 512
          %s298 = scalar_lea.vmem [#allocation2], %s297
          %s299 = smul.u32 64, %s32
          %s301 = ssub.s32 8192, 8192
          %302 = vsyncadd %s295, %s301
          %s303 = smul.addr %s299, 2
          %s304 = smul.addr %s303, 64
          %s305 = scalar_lea.hbm %s0, %s304
          %s306 = sshll.u32 %s298, 4
          %s307 = int_to_ptr.vmem [resolvable:$true] %s306
          %312 = dma.hbm_to_vmem [thread:$0]  %s305, 8192, %s307, %s295, 128, 128, 8
        $region32: #{tpu_custom_call.1} parent=27 // pred_fallthru
          _
      $region28: #{tpu_custom_call.1} parent=5 // pred_fallthru
        _
      %p313 = scmp.le.s32.totalorder 1, %s24
      %p314 = scmp.lt.s32.totalorder %s24, 3
      %p315 = pnand %p313, %p314
      %p316 = pneg %p315
      // Predicated region
      $region33: #{tpu_custom_call.1} parent=5 // pred_check
        _
      $region34: #{tpu_custom_call.1} parent=5 // pred_check_branch
        %318 = sbr.rel (%p315) target = $region36
      $region35: #{tpu_custom_call.1} parent=5 // pred_region
        %s319 = ssub.s32 %s24, 1
        %s320 = sand.u32 %s49, 1
        %s321 = scalar_lea.sflag [#allocation3], %s320
        %s322 = sand.u32 %s49, 1
        %s323 = smul.addr %s322, 512
        %s324 = scalar_lea.vmem [#allocation2], %s323
        // Predicated region
        $region37: #{tpu_custom_call.1} parent=35 // pred_check
          %p325 = pneg %p62
        $region38: #{tpu_custom_call.1} parent=35 // pred_check_branch
          %327 = sbr.rel (%p325) target = $region40
        $region39: #{tpu_custom_call.1} parent=35 // pred_region
          %328 = dma.done %s321, 8192
        $region40: #{tpu_custom_call.1} parent=35 // pred_fallthru
          _
        // Predicated region
        $region41: #{tpu_custom_call.1} parent=35 // pred_check
          %p329 = pneg %p88
        $region42: #{tpu_custom_call.1} parent=35 // pred_check_branch
          %331 = sbr.rel (%p329) target = $region44
        $region43: #{tpu_custom_call.1} parent=35 // pred_region
          %332 = dma.done [#allocation6], 4096
        $region44: #{tpu_custom_call.1} parent=35 // pred_fallthru
          _
        // Predicated region
        $region45: #{tpu_custom_call.1} parent=35 // pred_check
          %p333 = pneg %p114
        $region46: #{tpu_custom_call.1} parent=35 // pred_check_branch
          %335 = sbr.rel (%p333) target = $region48
        $region47: #{tpu_custom_call.1} parent=35 // pred_region
          %336 = dma.done [#allocation6], 4096
        $region48: #{tpu_custom_call.1} parent=35 // pred_fallthru
          _
        // Predicated region
        $region49: #{tpu_custom_call.1} parent=35 // pred_check
          %p337 = pneg %p140
        $region50: #{tpu_custom_call.1} parent=35 // pred_check_branch
          %339 = sbr.rel (%p337) target = $region52
        $region51: #{tpu_custom_call.1} parent=35 // pred_region
          %340 = dma.done [#allocation9], 4096
        $region52: #{tpu_custom_call.1} parent=35 // pred_fallthru
          _
        %s341 = sand.u32 %s49, 1
        %s342 = scalar_lea.sflag [#allocation3], %s341
        %s343 = sand.u32 %s49, 1
        %s344 = smul.addr %s343, 512
        %s345 = scalar_lea.vmem [#allocation2], %s344
        %p346 = pneg %p62
        %p347 = pneg %p59
        %p348 = pneg %p88
        %p349 = pneg %p85
        %p350 = pneg %p114
        %p351 = pneg %p111
        %p352 = pneg %p140
        %p353 = pneg %p137
        %p354 = pneg %p168
        %p355 = pneg %p165
        %s356 = sand.u32 %s155, 1
        %s357 = scalar_lea.sflag [#allocation4], %s356
        %s358 = sand.u32 %s155, 1
        %s359 = smul.addr %s358, 512
        %s360 = scalar_lea.vmem [#allocation10], %s359
        %p361 = pneg %p196
        %p362 = pneg %p193
        %s363 = sand.u32 %s29, 1
        %s364 = scalar_lea.sflag [#allocation12], %s363
        %s365 = sand.u32 %s183, 1
        %s366 = smul.addr %s365, 512
        %s367 = scalar_lea.vmem [#allocation11], %s366
        %p368 = pneg %p224
        %p369 = pneg %p221
        %s370 = sand.u32 %s29, 1
        %s371 = scalar_lea.sflag [#allocation12], %s370
        %s372 = sand.u32 %s211, 1
        %s373 = smul.addr %s372, 512
        %s374 = scalar_lea.vmem [#allocation13], %s373
        %s375 = smul.u32 64, %s34
        %s376 = smul.u32 2, %s33
        %s377 = smul.u32 2, %s33
        %s378 = smul.u32 2, %s33
        %s379 = smul.u32 64, %s34
        %s380 = smul.u32 2, %s33
        %s381 = smul.u32 64, %s34
        %s382 = smul.u32 2, %s33
        %s383 = smul.u32 64, %s34
        %s384 = smul.u32 2, %s33
        %v385 = vld [vmem:[%s324] sm:$0xff]
        %v386 = vld [vmem:[%s324 + $0x8] sm:$0xff]
        %v387 = vld [vmem:[%s324 + $0x10] sm:$0xff]
        %v388 = vld [vmem:[%s324 + $0x18] sm:$0xff]
        %v389 = vld [vmem:[%s324 + $0x20] sm:$0xff]
        %v390 = vld [vmem:[%s324 + $0x28] sm:$0xff]
        %v391 = vld [vmem:[%s324 + $0x30] sm:$0xff]
        %v392 = vld [vmem:[%s324 + $0x38] sm:$0xff]
        %v393 = vld [vmem:[%s324 + $0x40] sm:$0xff]
        %v394 = vld [vmem:[%s324 + $0x48] sm:$0xff]
        %v395 = vld [vmem:[%s324 + $0x50] sm:$0xff]
        %v396 = vld [vmem:[%s324 + $0x58] sm:$0xff]
        %v397 = vld [vmem:[%s324 + $0x60] sm:$0xff]
        %v398 = vld [vmem:[%s324 + $0x68] sm:$0xff]
        %v399 = vld [vmem:[%s324 + $0x70] sm:$0xff]
        %v400 = vld [vmem:[%s324 + $0x78] sm:$0xff]
        %v401 = vld [vmem:[%s324 + $0x80] sm:$0xff]
        %v402 = vld [vmem:[%s324 + $0x88] sm:$0xff]
        %v403 = vld [vmem:[%s324 + $0x90] sm:$0xff]
        %v404 = vld [vmem:[%s324 + $0x98] sm:$0xff]
        %v405 = vld [vmem:[%s324 + $0xa0] sm:$0xff]
        %v406 = vld [vmem:[%s324 + $0xa8] sm:$0xff]
        %v407 = vld [vmem:[%s324 + $0xb0] sm:$0xff]
        %v408 = vld [vmem:[%s324 + $0xb8] sm:$0xff]
        %v409 = vld [vmem:[%s324 + $0xc0] sm:$0xff]
        %v410 = vld [vmem:[%s324 + $0xc8] sm:$0xff]
        %v411 = vld [vmem:[%s324 + $0xd0] sm:$0xff]
        %v412 = vld [vmem:[%s324 + $0xd8] sm:$0xff]
        %v413 = vld [vmem:[%s324 + $0xe0] sm:$0xff]
        %v414 = vld [vmem:[%s324 + $0xe8] sm:$0xff]
        %v415 = vld [vmem:[%s324 + $0xf0] sm:$0xff]
        %v416 = vld [vmem:[%s324 + $0xf8] sm:$0xff]
        %v417 = vld [vmem:[%s324 + $0x100] sm:$0xff]
        %v418 = vld [vmem:[%s324 + $0x108] sm:$0xff]
        %v419 = vld [vmem:[%s324 + $0x110] sm:$0xff]
        %v420 = vld [vmem:[%s324 + $0x118] sm:$0xff]
        %v421 = vld [vmem:[%s324 + $0x120] sm:$0xff]
        %v422 = vld [vmem:[%s324 + $0x128] sm:$0xff]
        %v423 = vld [vmem:[%s324 + $0x130] sm:$0xff]
        %v424 = vld [vmem:[%s324 + $0x138] sm:$0xff]
        %v425 = vld [vmem:[%s324 + $0x140] sm:$0xff]
        %v426 = vld [vmem:[%s324 + $0x148] sm:$0xff]
        %v427 = vld [vmem:[%s324 + $0x150] sm:$0xff]
        %v428 = vld [vmem:[%s324 + $0x158] sm:$0xff]
        %v429 = vld [vmem:[%s324 + $0x160] sm:$0xff]
        %v430 = vld [vmem:[%s324 + $0x168] sm:$0xff]
        %v431 = vld [vmem:[%s324 + $0x170] sm:$0xff]
        %v432 = vld [vmem:[%s324 + $0x178] sm:$0xff]
        %v433 = vld [vmem:[%s324 + $0x180] sm:$0xff]
        %v434 = vld [vmem:[%s324 + $0x188] sm:$0xff]
        %v435 = vld [vmem:[%s324 + $0x190] sm:$0xff]
        %v436 = vld [vmem:[%s324 + $0x198] sm:$0xff]
        %v437 = vld [vmem:[%s324 + $0x1a0] sm:$0xff]
        %v438 = vld [vmem:[%s324 + $0x1a8] sm:$0xff]
        %v439 = vld [vmem:[%s324 + $0x1b0] sm:$0xff]
        %v440 = vld [vmem:[%s324 + $0x1b8] sm:$0xff]
        %v441 = vld [vmem:[%s324 + $0x1c0] sm:$0xff]
        %v442 = vld [vmem:[%s324 + $0x1c8] sm:$0xff]
        %v443 = vld [vmem:[%s324 + $0x1d0] sm:$0xff]
        %v444 = vld [vmem:[%s324 + $0x1d8] sm:$0xff]
        %v445 = vld [vmem:[%s324 + $0x1e0] sm:$0xff]
        %v446 = vld [vmem:[%s324 + $0x1e8] sm:$0xff]
        %v447 = vld [vmem:[%s324 + $0x1f0] sm:$0xff]
        %v448 = vld [vmem:[%s324 + $0x1f8] sm:$0xff]
        %v449 = vld [vmem:[#allocation5] sm:$0xff]
        %v450 = vld [vmem:[#allocation5 + $0x8] sm:$0xff]
        %v451 = vld [vmem:[#allocation5 + $0x10] sm:$0xff]
        %v452 = vld [vmem:[#allocation5 + $0x18] sm:$0xff]
        %v453 = vld [vmem:[#allocation5 + $0x20] sm:$0xff]
        %v454 = vld [vmem:[#allocation5 + $0x28] sm:$0xff]
        %v455 = vld [vmem:[#allocation5 + $0x30] sm:$0xff]
        %v456 = vld [vmem:[#allocation5 + $0x38] sm:$0xff]
        %v457 = vld [vmem:[#allocation5 + $0x40] sm:$0xff]
        %v458 = vld [vmem:[#allocation5 + $0x48] sm:$0xff]
        %v459 = vld [vmem:[#allocation5 + $0x50] sm:$0xff]
        %v460 = vld [vmem:[#allocation5 + $0x58] sm:$0xff]
        %v461 = vld [vmem:[#allocation5 + $0x60] sm:$0xff]
        %v462 = vld [vmem:[#allocation5 + $0x68] sm:$0xff]
        %v463 = vld [vmem:[#allocation5 + $0x70] sm:$0xff]
        %v464 = vld [vmem:[#allocation5 + $0x78] sm:$0xff]
        %v465 = vld [vmem:[#allocation5 + $0x80] sm:$0xff]
        %v466 = vld [vmem:[#allocation5 + $0x88] sm:$0xff]
        %v467 = vld [vmem:[#allocation5 + $0x90] sm:$0xff]
        %v468 = vld [vmem:[#allocation5 + $0x98] sm:$0xff]
        %v469 = vld [vmem:[#allocation5 + $0xa0] sm:$0xff]
        %v470 = vld [vmem:[#allocation5 + $0xa8] sm:$0xff]
        %v471 = vld [vmem:[#allocation5 + $0xb0] sm:$0xff]
        %v472 = vld [vmem:[#allocation5 + $0xb8] sm:$0xff]
        %v473 = vld [vmem:[#allocation5 + $0xc0] sm:$0xff]
        %v474 = vld [vmem:[#allocation5 + $0xc8] sm:$0xff]
        %v475 = vld [vmem:[#allocation5 + $0xd0] sm:$0xff]
        %v476 = vld [vmem:[#allocation5 + $0xd8] sm:$0xff]
        %v477 = vld [vmem:[#allocation5 + $0xe0] sm:$0xff]
        %v478 = vld [vmem:[#allocation5 + $0xe8] sm:$0xff]
        %v479 = vld [vmem:[#allocation5 + $0xf0] sm:$0xff]
        %v480 = vld [vmem:[#allocation5 + $0xf8] sm:$0xff]
        %v545 = vunpack.c.l.b16 %v385
        %v546 = vunpack.c.h.b16 %v385
        %v547 = vunpack.c.l.b16 %v386
        %v548 = vunpack.c.h.b16 %v386
        %v549 = vunpack.c.l.b16 %v387
        %v550 = vunpack.c.h.b16 %v387
        %v551 = vunpack.c.l.b16 %v388
        %v552 = vunpack.c.h.b16 %v388
        %v553 = vunpack.c.l.b16 %v389
        %v554 = vunpack.c.h.b16 %v389
        %v555 = vunpack.c.l.b16 %v390
        %v556 = vunpack.c.h.b16 %v390
        %v557 = vunpack.c.l.b16 %v391
        %v558 = vunpack.c.h.b16 %v391
        %v559 = vunpack.c.l.b16 %v392
        %v560 = vunpack.c.h.b16 %v392
        %v561 = vunpack.c.l.b16 %v393
        %v562 = vunpack.c.h.b16 %v393
        %v563 = vunpack.c.l.b16 %v394
        %v564 = vunpack.c.h.b16 %v394
        %v565 = vunpack.c.l.b16 %v395
        %v566 = vunpack.c.h.b16 %v395
        %v567 = vunpack.c.l.b16 %v396
        %v568 = vunpack.c.h.b16 %v396
        %v569 = vunpack.c.l.b16 %v397
        %v570 = vunpack.c.h.b16 %v397
        %v571 = vunpack.c.l.b16 %v398
        %v572 = vunpack.c.h.b16 %v398
        %v573 = vunpack.c.l.b16 %v399
        %v574 = vunpack.c.h.b16 %v399
        %v575 = vunpack.c.l.b16 %v400
        %v576 = vunpack.c.h.b16 %v400
        %v577 = vunpack.c.l.b16 %v401
        %v578 = vunpack.c.h.b16 %v401
        %v579 = vunpack.c.l.b16 %v402
        %v580 = vunpack.c.h.b16 %v402
        %v581 = vunpack.c.l.b16 %v403
        %v582 = vunpack.c.h.b16 %v403
        %v583 = vunpack.c.l.b16 %v404
        %v584 = vunpack.c.h.b16 %v404
        %v585 = vunpack.c.l.b16 %v405
        %v586 = vunpack.c.h.b16 %v405
        %v587 = vunpack.c.l.b16 %v406
        %v588 = vunpack.c.h.b16 %v406
        %v589 = vunpack.c.l.b16 %v407
        %v590 = vunpack.c.h.b16 %v407
        %v591 = vunpack.c.l.b16 %v408
        %v592 = vunpack.c.h.b16 %v408
        %v593 = vunpack.c.l.b16 %v409
        %v594 = vunpack.c.h.b16 %v409
        %v595 = vunpack.c.l.b16 %v410
        %v596 = vunpack.c.h.b16 %v410
        %v597 = vunpack.c.l.b16 %v411
        %v598 = vunpack.c.h.b16 %v411
        %v599 = vunpack.c.l.b16 %v412
        %v600 = vunpack.c.h.b16 %v412
        %v601 = vunpack.c.l.b16 %v413
        %v602 = vunpack.c.h.b16 %v413
        %v603 = vunpack.c.l.b16 %v414
        %v604 = vunpack.c.h.b16 %v414
        %v605 = vunpack.c.l.b16 %v415
        %v606 = vunpack.c.h.b16 %v415
        %v607 = vunpack.c.l.b16 %v416
        %v608 = vunpack.c.h.b16 %v416
        %v609 = vunpack.c.l.b16 %v417
        %v610 = vunpack.c.h.b16 %v417
        %v611 = vunpack.c.l.b16 %v418
        %v612 = vunpack.c.h.b16 %v418
        %v613 = vunpack.c.l.b16 %v419
        %v614 = vunpack.c.h.b16 %v419
        %v615 = vunpack.c.l.b16 %v420
        %v616 = vunpack.c.h.b16 %v420
        %v617 = vunpack.c.l.b16 %v421
        %v618 = vunpack.c.h.b16 %v421
        %v619 = vunpack.c.l.b16 %v422
        %v620 = vunpack.c.h.b16 %v422
        %v621 = vunpack.c.l.b16 %v423
        %v622 = vunpack.c.h.b16 %v423
        %v623 = vunpack.c.l.b16 %v424
        %v624 = vunpack.c.h.b16 %v424
        %v625 = vunpack.c.l.b16 %v425
        %v626 = vunpack.c.h.b16 %v425
        %v627 = vunpack.c.l.b16 %v426
        %v628 = vunpack.c.h.b16 %v426
        %v629 = vunpack.c.l.b16 %v427
        %v630 = vunpack.c.h.b16 %v427
        %v631 = vunpack.c.l.b16 %v428
        %v632 = vunpack.c.h.b16 %v428
        %v633 = vunpack.c.l.b16 %v429
        %v634 = vunpack.c.h.b16 %v429
        %v635 = vunpack.c.l.b16 %v430
        %v636 = vunpack.c.h.b16 %v430
        %v637 = vunpack.c.l.b16 %v431
        %v638 = vunpack.c.h.b16 %v431
        %v639 = vunpack.c.l.b16 %v432
        %v640 = vunpack.c.h.b16 %v432
        %v641 = vunpack.c.l.b16 %v433
        %v642 = vunpack.c.h.b16 %v433
        %v643 = vunpack.c.l.b16 %v434
        %v644 = vunpack.c.h.b16 %v434
        %v645 = vunpack.c.l.b16 %v435
        %v646 = vunpack.c.h.b16 %v435
        %v647 = vunpack.c.l.b16 %v436
        %v648 = vunpack.c.h.b16 %v436
        %v649 = vunpack.c.l.b16 %v437
        %v650 = vunpack.c.h.b16 %v437
        %v651 = vunpack.c.l.b16 %v438
        %v652 = vunpack.c.h.b16 %v438
        %v653 = vunpack.c.l.b16 %v439
        %v654 = vunpack.c.h.b16 %v439
        %v655 = vunpack.c.l.b16 %v440
        %v656 = vunpack.c.h.b16 %v440
        %v657 = vunpack.c.l.b16 %v441
        %v658 = vunpack.c.h.b16 %v441
        %v659 = vunpack.c.l.b16 %v442
        %v660 = vunpack.c.h.b16 %v442
        %v661 = vunpack.c.l.b16 %v443
        %v662 = vunpack.c.h.b16 %v443
        %v663 = vunpack.c.l.b16 %v444
        %v664 = vunpack.c.h.b16 %v444
        %v665 = vunpack.c.l.b16 %v445
        %v666 = vunpack.c.h.b16 %v445
        %v667 = vunpack.c.l.b16 %v446
        %v668 = vunpack.c.h.b16 %v446
        %v669 = vunpack.c.l.b16 %v447
        %v670 = vunpack.c.h.b16 %v447
        %v671 = vunpack.c.l.b16 %v448
        %v672 = vunpack.c.h.b16 %v448
        %v673 = vpack.c.b16 %v547, %v545
        %v674 = vpack.c.b16 %v548, %v546
        %v675 = vpack.c.b16 %v551, %v549
        %v676 = vpack.c.b16 %v552, %v550
        %v677 = vpack.c.b16 %v555, %v553
        %v678 = vpack.c.b16 %v556, %v554
        %v679 = vpack.c.b16 %v559, %v557
        %v680 = vpack.c.b16 %v560, %v558
        %v681 = vpack.c.b16 %v563, %v561
        %v682 = vpack.c.b16 %v564, %v562
        %v683 = vpack.c.b16 %v567, %v565
        %v684 = vpack.c.b16 %v568, %v566
        %v685 = vpack.c.b16 %v571, %v569
        %v686 = vpack.c.b16 %v572, %v570
        %v687 = vpack.c.b16 %v575, %v573
        %v688 = vpack.c.b16 %v576, %v574
        %v689 = vpack.c.b16 %v579, %v577
        %v690 = vpack.c.b16 %v580, %v578
        %v691 = vpack.c.b16 %v583, %v581
        %v692 = vpack.c.b16 %v584, %v582
        %v693 = vpack.c.b16 %v587, %v585
        %v694 = vpack.c.b16 %v588, %v586
        %v695 = vpack.c.b16 %v591, %v589
        %v696 = vpack.c.b16 %v592, %v590
        %v697 = vpack.c.b16 %v595, %v593
        %v698 = vpack.c.b16 %v596, %v594
        %v699 = vpack.c.b16 %v599, %v597
        %v700 = vpack.c.b16 %v600, %v598
        %v701 = vpack.c.b16 %v603, %v601
        %v702 = vpack.c.b16 %v604, %v602
        %v703 = vpack.c.b16 %v607, %v605
        %v704 = vpack.c.b16 %v608, %v606
        %v705 = vpack.c.b16 %v611, %v609
        %v706 = vpack.c.b16 %v612, %v610
        %v707 = vpack.c.b16 %v615, %v613
        %v708 = vpack.c.b16 %v616, %v614
        %v709 = vpack.c.b16 %v619, %v617
        %v710 = vpack.c.b16 %v620, %v618
        %v711 = vpack.c.b16 %v623, %v621
        %v712 = vpack.c.b16 %v624, %v622
        %v713 = vpack.c.b16 %v627, %v625
        %v714 = vpack.c.b16 %v628, %v626
        %v715 = vpack.c.b16 %v631, %v629
        %v716 = vpack.c.b16 %v632, %v630
        %v717 = vpack.c.b16 %v635, %v633
        %v718 = vpack.c.b16 %v636, %v634
        %v719 = vpack.c.b16 %v639, %v637
        %v720 = vpack.c.b16 %v640, %v638
        %v721 = vpack.c.b16 %v643, %v641
        %v722 = vpack.c.b16 %v644, %v642
        %v723 = vpack.c.b16 %v647, %v645
        %v724 = vpack.c.b16 %v648, %v646
        %v725 = vpack.c.b16 %v651, %v649
        %v726 = vpack.c.b16 %v652, %v650
        %v727 = vpack.c.b16 %v655, %v653
        %v728 = vpack.c.b16 %v656, %v654
        %v729 = vpack.c.b16 %v659, %v657
        %v730 = vpack.c.b16 %v660, %v658
        %v731 = vpack.c.b16 %v663, %v661
        %v732 = vpack.c.b16 %v664, %v662
        %v733 = vpack.c.b16 %v667, %v665
        %v734 = vpack.c.b16 %v668, %v666
        %v735 = vpack.c.b16 %v671, %v669
        %v736 = vpack.c.b16 %v672, %v670
        %v833 = vunpack.c.l.b16 %v449
        %v834 = vunpack.c.h.b16 %v449
        %v835 = vunpack.c.l.b16 %v450
        %v836 = vunpack.c.h.b16 %v450
        %v837 = vunpack.c.l.b16 %v451
        %v838 = vunpack.c.h.b16 %v451
        %v839 = vunpack.c.l.b16 %v452
        %v840 = vunpack.c.h.b16 %v452
        %v841 = vunpack.c.l.b16 %v453
        %v842 = vunpack.c.h.b16 %v453
        %v843 = vunpack.c.l.b16 %v454
        %v844 = vunpack.c.h.b16 %v454
        %v845 = vunpack.c.l.b16 %v455
        %v846 = vunpack.c.h.b16 %v455
        %v847 = vunpack.c.l.b16 %v456
        %v848 = vunpack.c.h.b16 %v456
        %v849 = vunpack.c.l.b16 %v457
        %v850 = vunpack.c.h.b16 %v457
        %v851 = vunpack.c.l.b16 %v458
        %v852 = vunpack.c.h.b16 %v458
        %v853 = vunpack.c.l.b16 %v459
        %v854 = vunpack.c.h.b16 %v459
        %v855 = vunpack.c.l.b16 %v460
        %v856 = vunpack.c.h.b16 %v460
        %v857 = vunpack.c.l.b16 %v461
        %v858 = vunpack.c.h.b16 %v461
        %v859 = vunpack.c.l.b16 %v462
        %v860 = vunpack.c.h.b16 %v462
        %v861 = vunpack.c.l.b16 %v463
        %v862 = vunpack.c.h.b16 %v463
        %v863 = vunpack.c.l.b16 %v464
        %v864 = vunpack.c.h.b16 %v464
        %v865 = vunpack.c.l.b16 %v465
        %v866 = vunpack.c.h.b16 %v465
        %v867 = vunpack.c.l.b16 %v466
        %v868 = vunpack.c.h.b16 %v466
        %v869 = vunpack.c.l.b16 %v467
        %v870 = vunpack.c.h.b16 %v467
        %v871 = vunpack.c.l.b16 %v468
        %v872 = vunpack.c.h.b16 %v468
        %v873 = vunpack.c.l.b16 %v469
        %v874 = vunpack.c.h.b16 %v469
        %v875 = vunpack.c.l.b16 %v470
        %v876 = vunpack.c.h.b16 %v470
        %v877 = vunpack.c.l.b16 %v471
        %v878 = vunpack.c.h.b16 %v471
        %v879 = vunpack.c.l.b16 %v472
        %v880 = vunpack.c.h.b16 %v472
        %v881 = vunpack.c.l.b16 %v473
        %v882 = vunpack.c.h.b16 %v473
        %v883 = vunpack.c.l.b16 %v474
        %v884 = vunpack.c.h.b16 %v474
        %v885 = vunpack.c.l.b16 %v475
        %v886 = vunpack.c.h.b16 %v475
        %v887 = vunpack.c.l.b16 %v476
        %v888 = vunpack.c.h.b16 %v476
        %v889 = vunpack.c.l.b16 %v477
        %v890 = vunpack.c.h.b16 %v477
        %v891 = vunpack.c.l.b16 %v478
        %v892 = vunpack.c.h.b16 %v478
        %v893 = vunpack.c.l.b16 %v479
        %v894 = vunpack.c.h.b16 %v479
        %v895 = vunpack.c.l.b16 %v480
        %v896 = vunpack.c.h.b16 %v480
        %v897 = vpack.c.b16 %v835, %v833
        %v898 = vpack.c.b16 %v836, %v834
        %v899 = vpack.c.b16 %v839, %v837
        %v900 = vpack.c.b16 %v840, %v838
        %v901 = vpack.c.b16 %v843, %v841
        %v902 = vpack.c.b16 %v844, %v842
        %v903 = vpack.c.b16 %v847, %v845
        %v904 = vpack.c.b16 %v848, %v846
        %v905 = vpack.c.b16 %v851, %v849
        %v906 = vpack.c.b16 %v852, %v850
        %v907 = vpack.c.b16 %v855, %v853
        %v908 = vpack.c.b16 %v856, %v854
        %v909 = vpack.c.b16 %v859, %v857
        %v910 = vpack.c.b16 %v860, %v858
        %v911 = vpack.c.b16 %v863, %v861
        %v912 = vpack.c.b16 %v864, %v862
        %v913 = vpack.c.b16 %v867, %v865
        %v914 = vpack.c.b16 %v868, %v866
        %v915 = vpack.c.b16 %v871, %v869
        %v916 = vpack.c.b16 %v872, %v870
        %v917 = vpack.c.b16 %v875, %v873
        %v918 = vpack.c.b16 %v876, %v874
        %v919 = vpack.c.b16 %v879, %v877
        %v920 = vpack.c.b16 %v880, %v878
        %v921 = vpack.c.b16 %v883, %v881
        %v922 = vpack.c.b16 %v884, %v882
        %v923 = vpack.c.b16 %v887, %v885
        %v924 = vpack.c.b16 %v888, %v886
        %v925 = vpack.c.b16 %v891, %v889
        %v926 = vpack.c.b16 %v892, %v890
        %v927 = vpack.c.b16 %v895, %v893
        %v928 = vpack.c.b16 %v896, %v894
        %961 = vmatprep.subr.bf16.mxu0 %v912
        %962 = vmatpush1.bf16.msra.mxu0 %v911
        %963 = vmatprep.subr.bf16.mxu0 %v910
        %964 = vmatpush1.bf16.msra.mxu0 %v909
        %965 = vmatprep.subr.bf16.mxu0 %v908
        %966 = vmatpush1.bf16.msra.mxu0 %v907
        %967 = vmatprep.subr.bf16.mxu0 %v906
        %968 = vmatpush1.bf16.msra.mxu0 %v905
        %969 = vmatprep.subr.bf16.mxu0 %v904
        %970 = vmatpush1.bf16.msra.mxu0 %v903
        %971 = vmatprep.subr.bf16.mxu0 %v902
        %972 = vmatpush1.bf16.msra.mxu0 %v901
        %973 = vmatprep.subr.bf16.mxu0 %v900
        %974 = vmatpush1.bf16.msra.mxu0 %v899
        %975 = vmatprep.subr.bf16.mxu0 %v898
        %976 = vmatpush1.bf16.msra.mxu0 %v897
        %977 = vmatprep.subr.bf16.mxu0 %v928
        %978 = vmatpush2.bf16.msra.mxu0 %v927
        %979 = vmatprep.subr.bf16.mxu0 %v926
        %980 = vmatpush2.bf16.msra.mxu0 %v925
        %981 = vmatprep.subr.bf16.mxu0 %v924
        %982 = vmatpush2.bf16.msra.mxu0 %v923
        %983 = vmatprep.subr.bf16.mxu0 %v922
        %984 = vmatpush2.bf16.msra.mxu0 %v921
        %985 = vmatprep.subr.bf16.mxu0 %v920
        %986 = vmatpush2.bf16.msra.mxu0 %v919
        %987 = vmatprep.subr.bf16.mxu0 %v918
        %988 = vmatpush2.bf16.msra.mxu0 %v917
        %989 = vmatprep.subr.bf16.mxu0 %v916
        %990 = vmatpush2.bf16.msra.mxu0 %v915
        %991 = vmatprep.subr.bf16.mxu0 %v914
        %992 = vmatpush2.bf16.msra.mxu0 %v913
        %993 = vmatprep.mubr.bf16.mxu0 %v674
        %994 = vmatmul.mubr.bf16.gmra.mxu0 %v673
        %v995 = vpop.f32.mrf.mxu0
        %v996 = vadd.f32 0.0, %v995
        %v997 = vpop.f32.mrf.mxu0
        %v998 = vadd.f32 0.0, %v997
        %v999 = vpop.f32.mrf.mxu0
        %v1000 = vadd.f32 0.0, %v999
        %v1001 = vpop.f32.mrf.mxu0
        %v1002 = vadd.f32 0.0, %v1001
        %1003 = vmatprep.mubr.bf16.mxu0 %v676
        %1004 = vmatmul.mubr.bf16.gmra.mxu0 %v675
        %v1005 = vpop.f32.mrf.mxu0
        %v1006 = vadd.f32 0.0, %v1005
        %v1007 = vpop.f32.mrf.mxu0
        %v1008 = vadd.f32 0.0, %v1007
        %v1009 = vpop.f32.mrf.mxu0
        %v1010 = vadd.f32 0.0, %v1009
        %v1011 = vpop.f32.mrf.mxu0
        %v1012 = vadd.f32 0.0, %v1011
        %1013 = vmatprep.mubr.bf16.mxu0 %v678
        %1014 = vmatmul.mubr.bf16.gmra.mxu0 %v677
        %v1015 = vpop.f32.mrf.mxu0
        %v1016 = vadd.f32 0.0, %v1015
        %v1017 = vpop.f32.mrf.mxu0
        %v1018 = vadd.f32 0.0, %v1017
        %v1019 = vpop.f32.mrf.mxu0
        %v1020 = vadd.f32 0.0, %v1019
        %v1021 = vpop.f32.mrf.mxu0
        %v1022 = vadd.f32 0.0, %v1021
        %1023 = vmatprep.mubr.bf16.mxu0 %v680
        %1024 = vmatmul.mubr.bf16.gmra.mxu0 %v679
        %v1025 = vpop.f32.mrf.mxu0
        %v1026 = vadd.f32 0.0, %v1025
        %v1027 = vpop.f32.mrf.mxu0
        %v1028 = vadd.f32 0.0, %v1027
        %v1029 = vpop.f32.mrf.mxu0
        %v1030 = vadd.f32 0.0, %v1029
        %v1031 = vpop.f32.mrf.mxu0
        %v1032 = vadd.f32 0.0, %v1031
        %1033 = vmatprep.mubr.bf16.mxu0 %v682
        %1034 = vmatmul.mubr.bf16.gmra.mxu0 %v681
        %v1035 = vpop.f32.mrf.mxu0
        %v1036 = vadd.f32 0.0, %v1035
        %v1037 = vpop.f32.mrf.mxu0
        %v1038 = vadd.f32 0.0, %v1037
        %v1039 = vpop.f32.mrf.mxu0
        %v1040 = vadd.f32 0.0, %v1039
        %v1041 = vpop.f32.mrf.mxu0
        %v1042 = vadd.f32 0.0, %v1041
        %1043 = vmatprep.mubr.bf16.mxu0 %v684
        %1044 = vmatmul.mubr.bf16.gmra.mxu0 %v683
        %v1045 = vpop.f32.mrf.mxu0
        %v1046 = vadd.f32 0.0, %v1045
        %v1047 = vpop.f32.mrf.mxu0
        %v1048 = vadd.f32 0.0, %v1047
        %v1049 = vpop.f32.mrf.mxu0
        %v1050 = vadd.f32 0.0, %v1049
        %v1051 = vpop.f32.mrf.mxu0
        %v1052 = vadd.f32 0.0, %v1051
        %1053 = vmatprep.mubr.bf16.mxu0 %v686
        %1054 = vmatmul.mubr.bf16.gmra.mxu0 %v685
        %v1055 = vpop.f32.mrf.mxu0
        %v1056 = vadd.f32 0.0, %v1055
        %v1057 = vpop.f32.mrf.mxu0
        %v1058 = vadd.f32 0.0, %v1057
        %v1059 = vpop.f32.mrf.mxu0
        %v1060 = vadd.f32 0.0, %v1059
        %v1061 = vpop.f32.mrf.mxu0
        %v1062 = vadd.f32 0.0, %v1061
        %1063 = vmatprep.mubr.bf16.mxu0 %v688
        %1064 = vmatmul.mubr.bf16.gmra.mxu0 %v687
        %v1065 = vpop.f32.mrf.mxu0
        %v1066 = vadd.f32 0.0, %v1065
        %v1067 = vpop.f32.mrf.mxu0
        %v1068 = vadd.f32 0.0, %v1067
        %v1069 = vpop.f32.mrf.mxu0
        %v1070 = vadd.f32 0.0, %v1069
        %v1071 = vpop.f32.mrf.mxu0
        %v1072 = vadd.f32 0.0, %v1071
        %1073 = vmatprep.mubr.bf16.mxu0 %v690
        %1074 = vmatmul.mubr.bf16.gmra.mxu0 %v689
        %v1075 = vpop.f32.mrf.mxu0
        %v1076 = vadd.f32 0.0, %v1075
        %v1077 = vpop.f32.mrf.mxu0
        %v1078 = vadd.f32 0.0, %v1077
        %v1079 = vpop.f32.mrf.mxu0
        %v1080 = vadd.f32 0.0, %v1079
        %v1081 = vpop.f32.mrf.mxu0
        %v1082 = vadd.f32 0.0, %v1081
        %1083 = vmatprep.mubr.bf16.mxu0 %v692
        %1084 = vmatmul.mubr.bf16.gmra.mxu0 %v691
        %v1085 = vpop.f32.mrf.mxu0
        %v1086 = vadd.f32 0.0, %v1085
        %v1087 = vpop.f32.mrf.mxu0
        %v1088 = vadd.f32 0.0, %v1087
        %v1089 = vpop.f32.mrf.mxu0
        %v1090 = vadd.f32 0.0, %v1089
        %v1091 = vpop.f32.mrf.mxu0
        %v1092 = vadd.f32 0.0, %v1091
        %1093 = vmatprep.mubr.bf16.mxu0 %v694
        %1094 = vmatmul.mubr.bf16.gmra.mxu0 %v693
        %v1095 = vpop.f32.mrf.mxu0
        %v1096 = vadd.f32 0.0, %v1095
        %v1097 = vpop.f32.mrf.mxu0
        %v1098 = vadd.f32 0.0, %v1097
        %v1099 = vpop.f32.mrf.mxu0
        %v1100 = vadd.f32 0.0, %v1099
        %v1101 = vpop.f32.mrf.mxu0
        %v1102 = vadd.f32 0.0, %v1101
        %1103 = vmatprep.mubr.bf16.mxu0 %v696
        %1104 = vmatmul.mubr.bf16.gmra.mxu0 %v695
        %v1105 = vpop.f32.mrf.mxu0
        %v1106 = vadd.f32 0.0, %v1105
        %v1107 = vpop.f32.mrf.mxu0
        %v1108 = vadd.f32 0.0, %v1107
        %v1109 = vpop.f32.mrf.mxu0
        %v1110 = vadd.f32 0.0, %v1109
        %v1111 = vpop.f32.mrf.mxu0
        %v1112 = vadd.f32 0.0, %v1111
        %1113 = vmatprep.mubr.bf16.mxu0 %v698
        %1114 = vmatmul.mubr.bf16.gmra.mxu0 %v697
        %v1115 = vpop.f32.mrf.mxu0
        %v1116 = vadd.f32 0.0, %v1115
        %v1117 = vpop.f32.mrf.mxu0
        %v1118 = vadd.f32 0.0, %v1117
        %v1119 = vpop.f32.mrf.mxu0
        %v1120 = vadd.f32 0.0, %v1119
        %v1121 = vpop.f32.mrf.mxu0
        %v1122 = vadd.f32 0.0, %v1121
        %1123 = vmatprep.mubr.bf16.mxu0 %v700
        %1124 = vmatmul.mubr.bf16.gmra.mxu0 %v699
        %v1125 = vpop.f32.mrf.mxu0
        %v1126 = vadd.f32 0.0, %v1125
        %v1127 = vpop.f32.mrf.mxu0
        %v1128 = vadd.f32 0.0, %v1127
        %v1129 = vpop.f32.mrf.mxu0
        %v1130 = vadd.f32 0.0, %v1129
        %v1131 = vpop.f32.mrf.mxu0
        %v1132 = vadd.f32 0.0, %v1131
        %1133 = vmatprep.mubr.bf16.mxu0 %v702
        %1134 = vmatmul.mubr.bf16.gmra.mxu0 %v701
        %v1135 = vpop.f32.mrf.mxu0
        %v1136 = vadd.f32 0.0, %v1135
        %v1137 = vpop.f32.mrf.mxu0
        %v1138 = vadd.f32 0.0, %v1137
        %v1139 = vpop.f32.mrf.mxu0
        %v1140 = vadd.f32 0.0, %v1139
        %v1141 = vpop.f32.mrf.mxu0
        %v1142 = vadd.f32 0.0, %v1141
        %1143 = vmatprep.mubr.bf16.mxu0 %v704
        %1144 = vmatmul.mubr.bf16.gmra.mxu0 %v703
        %v1145 = vpop.f32.mrf.mxu0
        %v1146 = vadd.f32 0.0, %v1145
        %v1147 = vpop.f32.mrf.mxu0
        %v1148 = vadd.f32 0.0, %v1147
        %v1149 = vpop.f32.mrf.mxu0
        %v1150 = vadd.f32 0.0, %v1149
        %v1151 = vpop.f32.mrf.mxu0
        %v1152 = vadd.f32 0.0, %v1151
        %1153 = vmatprep.mubr.bf16.mxu0 %v706
        %1154 = vmatmul.mubr.bf16.gmra.mxu0 %v705
        %v1155 = vpop.f32.mrf.mxu0
        %v1156 = vadd.f32 0.0, %v1155
        %v1157 = vpop.f32.mrf.mxu0
        %v1158 = vadd.f32 0.0, %v1157
        %v1159 = vpop.f32.mrf.mxu0
        %v1160 = vadd.f32 0.0, %v1159
        %v1161 = vpop.f32.mrf.mxu0
        %v1162 = vadd.f32 0.0, %v1161
        %1163 = vmatprep.mubr.bf16.mxu0 %v708
        %1164 = vmatmul.mubr.bf16.gmra.mxu0 %v707
        %v1165 = vpop.f32.mrf.mxu0
        %v1166 = vadd.f32 0.0, %v1165
        %v1167 = vpop.f32.mrf.mxu0
        %v1168 = vadd.f32 0.0, %v1167
        %v1169 = vpop.f32.mrf.mxu0
        %v1170 = vadd.f32 0.0, %v1169
        %v1171 = vpop.f32.mrf.mxu0
        %v1172 = vadd.f32 0.0, %v1171
        %1173 = vmatprep.mubr.bf16.mxu0 %v710
        %1174 = vmatmul.mubr.bf16.gmra.mxu0 %v709
        %v1175 = vpop.f32.mrf.mxu0
        %v1176 = vadd.f32 0.0, %v1175
        %v1177 = vpop.f32.mrf.mxu0
        %v1178 = vadd.f32 0.0, %v1177
        %v1179 = vpop.f32.mrf.mxu0
        %v1180 = vadd.f32 0.0, %v1179
        %v1181 = vpop.f32.mrf.mxu0
        %v1182 = vadd.f32 0.0, %v1181
        %1183 = vmatprep.mubr.bf16.mxu0 %v712
        %1184 = vmatmul.mubr.bf16.gmra.mxu0 %v711
        %v1185 = vpop.f32.mrf.mxu0
        %v1186 = vadd.f32 0.0, %v1185
        %v1187 = vpop.f32.mrf.mxu0
        %v1188 = vadd.f32 0.0, %v1187
        %v1189 = vpop.f32.mrf.mxu0
        %v1190 = vadd.f32 0.0, %v1189
        %v1191 = vpop.f32.mrf.mxu0
        %v1192 = vadd.f32 0.0, %v1191
        %1193 = vmatprep.mubr.bf16.mxu0 %v714
        %1194 = vmatmul.mubr.bf16.gmra.mxu0 %v713
        %v1195 = vpop.f32.mrf.mxu0
        %v1196 = vadd.f32 0.0, %v1195
        %v1197 = vpop.f32.mrf.mxu0
        %v1198 = vadd.f32 0.0, %v1197
        %v1199 = vpop.f32.mrf.mxu0
        %v1200 = vadd.f32 0.0, %v1199
        %v1201 = vpop.f32.mrf.mxu0
        %v1202 = vadd.f32 0.0, %v1201
        %1203 = vmatprep.mubr.bf16.mxu0 %v716
        %1204 = vmatmul.mubr.bf16.gmra.mxu0 %v715
        %v1205 = vpop.f32.mrf.mxu0
        %v1206 = vadd.f32 0.0, %v1205
        %v1207 = vpop.f32.mrf.mxu0
        %v1208 = vadd.f32 0.0, %v1207
        %v1209 = vpop.f32.mrf.mxu0
        %v1210 = vadd.f32 0.0, %v1209
        %v1211 = vpop.f32.mrf.mxu0
        %v1212 = vadd.f32 0.0, %v1211
        %1213 = vmatprep.mubr.bf16.mxu0 %v718
        %1214 = vmatmul.mubr.bf16.gmra.mxu0 %v717
        %v1215 = vpop.f32.mrf.mxu0
        %v1216 = vadd.f32 0.0, %v1215
        %v1217 = vpop.f32.mrf.mxu0
        %v1218 = vadd.f32 0.0, %v1217
        %v1219 = vpop.f32.mrf.mxu0
        %v1220 = vadd.f32 0.0, %v1219
        %v1221 = vpop.f32.mrf.mxu0
        %v1222 = vadd.f32 0.0, %v1221
        %1223 = vmatprep.mubr.bf16.mxu0 %v720
        %1224 = vmatmul.mubr.bf16.gmra.mxu0 %v719
        %v1225 = vpop.f32.mrf.mxu0
        %v1226 = vadd.f32 0.0, %v1225
        %v1227 = vpop.f32.mrf.mxu0
        %v1228 = vadd.f32 0.0, %v1227
        %v1229 = vpop.f32.mrf.mxu0
        %v1230 = vadd.f32 0.0, %v1229
        %v1231 = vpop.f32.mrf.mxu0
        %v1232 = vadd.f32 0.0, %v1231
        %1233 = vmatprep.mubr.bf16.mxu0 %v722
        %1234 = vmatmul.mubr.bf16.gmra.mxu0 %v721
        %v1235 = vpop.f32.mrf.mxu0
        %v1236 = vadd.f32 0.0, %v1235
        %v1237 = vpop.f32.mrf.mxu0
        %v1238 = vadd.f32 0.0, %v1237
        %v1239 = vpop.f32.mrf.mxu0
        %v1240 = vadd.f32 0.0, %v1239
        %v1241 = vpop.f32.mrf.mxu0
        %v1242 = vadd.f32 0.0, %v1241
        %1243 = vmatprep.mubr.bf16.mxu0 %v724
        %1244 = vmatmul.mubr.bf16.gmra.mxu0 %v723
        %v1245 = vpop.f32.mrf.mxu0
        %v1246 = vadd.f32 0.0, %v1245
        %v1247 = vpop.f32.mrf.mxu0
        %v1248 = vadd.f32 0.0, %v1247
        %v1249 = vpop.f32.mrf.mxu0
        %v1250 = vadd.f32 0.0, %v1249
        %v1251 = vpop.f32.mrf.mxu0
        %v1252 = vadd.f32 0.0, %v1251
        %1253 = vmatprep.mubr.bf16.mxu0 %v726
        %1254 = vmatmul.mubr.bf16.gmra.mxu0 %v725
        %v1255 = vpop.f32.mrf.mxu0
        %v1256 = vadd.f32 0.0, %v1255
        %v1257 = vpop.f32.mrf.mxu0
        %v1258 = vadd.f32 0.0, %v1257
        %v1259 = vpop.f32.mrf.mxu0
        %v1260 = vadd.f32 0.0, %v1259
        %v1261 = vpop.f32.mrf.mxu0
        %v1262 = vadd.f32 0.0, %v1261
        %1263 = vmatprep.mubr.bf16.mxu0 %v728
        %1264 = vmatmul.mubr.bf16.gmra.mxu0 %v727
        %v1265 = vpop.f32.mrf.mxu0
        %v1266 = vadd.f32 0.0, %v1265
        %v1267 = vpop.f32.mrf.mxu0
        %v1268 = vadd.f32 0.0, %v1267
        %v1269 = vpop.f32.mrf.mxu0
        %v1270 = vadd.f32 0.0, %v1269
        %v1271 = vpop.f32.mrf.mxu0
        %v1272 = vadd.f32 0.0, %v1271
        %1273 = vmatprep.mubr.bf16.mxu0 %v730
        %1274 = vmatmul.mubr.bf16.gmra.mxu0 %v729
        %v1275 = vpop.f32.mrf.mxu0
        %v1276 = vadd.f32 0.0, %v1275
        %v1277 = vpop.f32.mrf.mxu0
        %v1278 = vadd.f32 0.0, %v1277
        %v1279 = vpop.f32.mrf.mxu0
        %v1280 = vadd.f32 0.0, %v1279
        %v1281 = vpop.f32.mrf.mxu0
        %v1282 = vadd.f32 0.0, %v1281
        %1283 = vmatprep.mubr.bf16.mxu0 %v732
        %1284 = vmatmul.mubr.bf16.gmra.mxu0 %v731
        %v1285 = vpop.f32.mrf.mxu0
        %v1286 = vadd.f32 0.0, %v1285
        %v1287 = vpop.f32.mrf.mxu0
        %v1288 = vadd.f32 0.0, %v1287
        %v1289 = vpop.f32.mrf.mxu0
        %v1290 = vadd.f32 0.0, %v1289
        %v1291 = vpop.f32.mrf.mxu0
        %v1292 = vadd.f32 0.0, %v1291
        %1293 = vmatprep.mubr.bf16.mxu0 %v734
        %1294 = vmatmul.mubr.bf16.gmra.mxu0 %v733
        %v1295 = vpop.f32.mrf.mxu0
        %v1296 = vadd.f32 0.0, %v1295
        %v1297 = vpop.f32.mrf.mxu0
        %v1298 = vadd.f32 0.0, %v1297
        %v1299 = vpop.f32.mrf.mxu0
        %v1300 = vadd.f32 0.0, %v1299
        %v1301 = vpop.f32.mrf.mxu0
        %v1302 = vadd.f32 0.0, %v1301
        %1303 = vmatprep.mubr.bf16.mxu0 %v736
        %1304 = vmatmul.mubr.bf16.gmra.mxu0 %v735
        %v1305 = vpop.f32.mrf.mxu0
        %v1306 = vadd.f32 0.0, %v1305
        %v1307 = vpop.f32.mrf.mxu0
        %v1308 = vadd.f32 0.0, %v1307
        %v1309 = vpop.f32.mrf.mxu0
        %v1310 = vadd.f32 0.0, %v1309
        %v1311 = vpop.f32.mrf.mxu0
        %v1312 = vadd.f32 0.0, %v1311
        %1313 = vdwg.mxu0
        %v1314 = vpack.c.bf16 %v1000, %v996
        %v1315 = vpack.c.bf16 %v1002, %v998
        %v1316 = vpack.c.bf16 %v1010, %v1006
        %v1317 = vpack.c.bf16 %v1012, %v1008
        %v1318 = vpack.c.bf16 %v1020, %v1016
        %v1319 = vpack.c.bf16 %v1022, %v1018
        %v1320 = vpack.c.bf16 %v1030, %v1026
        %v1321 = vpack.c.bf16 %v1032, %v1028
        %v1322 = vpack.c.bf16 %v1040, %v1036
        %v1323 = vpack.c.bf16 %v1042, %v1038
        %v1324 = vpack.c.bf16 %v1050, %v1046
        %v1325 = vpack.c.bf16 %v1052, %v1048
        %v1326 = vpack.c.bf16 %v1060, %v1056
        %v1327 = vpack.c.bf16 %v1062, %v1058
        %v1328 = vpack.c.bf16 %v1070, %v1066
        %v1329 = vpack.c.bf16 %v1072, %v1068
        %v1330 = vpack.c.bf16 %v1080, %v1076
        %v1331 = vpack.c.bf16 %v1082, %v1078
        %v1332 = vpack.c.bf16 %v1090, %v1086
        %v1333 = vpack.c.bf16 %v1092, %v1088
        %v1334 = vpack.c.bf16 %v1100, %v1096
        %v1335 = vpack.c.bf16 %v1102, %v1098
        %v1336 = vpack.c.bf16 %v1110, %v1106
        %v1337 = vpack.c.bf16 %v1112, %v1108
        %v1338 = vpack.c.bf16 %v1120, %v1116
        %v1339 = vpack.c.bf16 %v1122, %v1118
        %v1340 = vpack.c.bf16 %v1130, %v1126
        %v1341 = vpack.c.bf16 %v1132, %v1128
        %v1342 = vpack.c.bf16 %v1140, %v1136
        %v1343 = vpack.c.bf16 %v1142, %v1138
        %v1344 = vpack.c.bf16 %v1150, %v1146
        %v1345 = vpack.c.bf16 %v1152, %v1148
        %v1346 = vpack.c.bf16 %v1160, %v1156
        %v1347 = vpack.c.bf16 %v1162, %v1158
        %v1348 = vpack.c.bf16 %v1170, %v1166
        %v1349 = vpack.c.bf16 %v1172, %v1168
        %v1350 = vpack.c.bf16 %v1180, %v1176
        %v1351 = vpack.c.bf16 %v1182, %v1178
        %v1352 = vpack.c.bf16 %v1190, %v1186
        %v1353 = vpack.c.bf16 %v1192, %v1188
        %v1354 = vpack.c.bf16 %v1200, %v1196
        %v1355 = vpack.c.bf16 %v1202, %v1198
        %v1356 = vpack.c.bf16 %v1210, %v1206
        %v1357 = vpack.c.bf16 %v1212, %v1208
        %v1358 = vpack.c.bf16 %v1220, %v1216
        %v1359 = vpack.c.bf16 %v1222, %v1218
        %v1360 = vpack.c.bf16 %v1230, %v1226
        %v1361 = vpack.c.bf16 %v1232, %v1228
        %v1362 = vpack.c.bf16 %v1240, %v1236
        %v1363 = vpack.c.bf16 %v1242, %v1238
        %v1364 = vpack.c.bf16 %v1250, %v1246
        %v1365 = vpack.c.bf16 %v1252, %v1248
        %v1366 = vpack.c.bf16 %v1260, %v1256
        %v1367 = vpack.c.bf16 %v1262, %v1258
        %v1368 = vpack.c.bf16 %v1270, %v1266
        %v1369 = vpack.c.bf16 %v1272, %v1268
        %v1370 = vpack.c.bf16 %v1280, %v1276
        %v1371 = vpack.c.bf16 %v1282, %v1278
        %v1372 = vpack.c.bf16 %v1290, %v1286
        %v1373 = vpack.c.bf16 %v1292, %v1288
        %v1374 = vpack.c.bf16 %v1300, %v1296
        %v1375 = vpack.c.bf16 %v1302, %v1298
        %v1376 = vpack.c.bf16 %v1310, %v1306
        %v1377 = vpack.c.bf16 %v1312, %v1308
        %v1442 = vunpack.c.l.b16 %v1314
        %v1443 = vunpack.c.l.b16 %v1315
        %v1444 = vunpack.c.h.b16 %v1314
        %v1445 = vunpack.c.h.b16 %v1315
        %v1446 = vunpack.c.l.b16 %v1316
        %v1447 = vunpack.c.l.b16 %v1317
        %v1448 = vunpack.c.h.b16 %v1316
        %v1449 = vunpack.c.h.b16 %v1317
        %v1450 = vunpack.c.l.b16 %v1318
        %v1451 = vunpack.c.l.b16 %v1319
        %v1452 = vunpack.c.h.b16 %v1318
        %v1453 = vunpack.c.h.b16 %v1319
        %v1454 = vunpack.c.l.b16 %v1320
        %v1455 = vunpack.c.l.b16 %v1321
        %v1456 = vunpack.c.h.b16 %v1320
        %v1457 = vunpack.c.h.b16 %v1321
        %v1458 = vunpack.c.l.b16 %v1322
        %v1459 = vunpack.c.l.b16 %v1323
        %v1460 = vunpack.c.h.b16 %v1322
        %v1461 = vunpack.c.h.b16 %v1323
        %v1462 = vunpack.c.l.b16 %v1324
        %v1463 = vunpack.c.l.b16 %v1325
        %v1464 = vunpack.c.h.b16 %v1324
        %v1465 = vunpack.c.h.b16 %v1325
        %v1466 = vunpack.c.l.b16 %v1326
        %v1467 = vunpack.c.l.b16 %v1327
        %v1468 = vunpack.c.h.b16 %v1326
        %v1469 = vunpack.c.h.b16 %v1327
        %v1470 = vunpack.c.l.b16 %v1328
        %v1471 = vunpack.c.l.b16 %v1329
        %v1472 = vunpack.c.h.b16 %v1328
        %v1473 = vunpack.c.h.b16 %v1329
        %v1474 = vunpack.c.l.b16 %v1330
        %v1475 = vunpack.c.l.b16 %v1331
        %v1476 = vunpack.c.h.b16 %v1330
        %v1477 = vunpack.c.h.b16 %v1331
        %v1478 = vunpack.c.l.b16 %v1332
        %v1479 = vunpack.c.l.b16 %v1333
        %v1480 = vunpack.c.h.b16 %v1332
        %v1481 = vunpack.c.h.b16 %v1333
        %v1482 = vunpack.c.l.b16 %v1334
        %v1483 = vunpack.c.l.b16 %v1335
        %v1484 = vunpack.c.h.b16 %v1334
        %v1485 = vunpack.c.h.b16 %v1335
        %v1486 = vunpack.c.l.b16 %v1336
        %v1487 = vunpack.c.l.b16 %v1337
        %v1488 = vunpack.c.h.b16 %v1336
        %v1489 = vunpack.c.h.b16 %v1337
        %v1490 = vunpack.c.l.b16 %v1338
        %v1491 = vunpack.c.l.b16 %v1339
        %v1492 = vunpack.c.h.b16 %v1338
        %v1493 = vunpack.c.h.b16 %v1339
        %v1494 = vunpack.c.l.b16 %v1340
        %v1495 = vunpack.c.l.b16 %v1341
        %v1496 = vunpack.c.h.b16 %v1340
        %v1497 = vunpack.c.h.b16 %v1341
        %v1498 = vunpack.c.l.b16 %v1342
        %v1499 = vunpack.c.l.b16 %v1343
        %v1500 = vunpack.c.h.b16 %v1342
        %v1501 = vunpack.c.h.b16 %v1343
        %v1502 = vunpack.c.l.b16 %v1344
        %v1503 = vunpack.c.l.b16 %v1345
        %v1504 = vunpack.c.h.b16 %v1344
        %v1505 = vunpack.c.h.b16 %v1345
        %v1506 = vunpack.c.l.b16 %v1346
        %v1507 = vunpack.c.l.b16 %v1347
        %v1508 = vunpack.c.h.b16 %v1346
        %v1509 = vunpack.c.h.b16 %v1347
        %v1510 = vunpack.c.l.b16 %v1348
        %v1511 = vunpack.c.l.b16 %v1349
        %v1512 = vunpack.c.h.b16 %v1348
        %v1513 = vunpack.c.h.b16 %v1349
        %v1514 = vunpack.c.l.b16 %v1350
        %v1515 = vunpack.c.l.b16 %v1351
        %v1516 = vunpack.c.h.b16 %v1350
        %v1517 = vunpack.c.h.b16 %v1351
        %v1518 = vunpack.c.l.b16 %v1352
        %v1519 = vunpack.c.l.b16 %v1353
        %v1520 = vunpack.c.h.b16 %v1352
        %v1521 = vunpack.c.h.b16 %v1353
        %v1522 = vunpack.c.l.b16 %v1354
        %v1523 = vunpack.c.l.b16 %v1355
        %v1524 = vunpack.c.h.b16 %v1354
        %v1525 = vunpack.c.h.b16 %v1355
        %v1526 = vunpack.c.l.b16 %v1356
        %v1527 = vunpack.c.l.b16 %v1357
        %v1528 = vunpack.c.h.b16 %v1356
        %v1529 = vunpack.c.h.b16 %v1357
        %v1530 = vunpack.c.l.b16 %v1358
        %v1531 = vunpack.c.l.b16 %v1359
        %v1532 = vunpack.c.h.b16 %v1358
        %v1533 = vunpack.c.h.b16 %v1359
        %v1534 = vunpack.c.l.b16 %v1360
        %v1535 = vunpack.c.l.b16 %v1361
        %v1536 = vunpack.c.h.b16 %v1360
        %v1537 = vunpack.c.h.b16 %v1361
        %v1538 = vunpack.c.l.b16 %v1362
        %v1539 = vunpack.c.l.b16 %v1363
        %v1540 = vunpack.c.h.b16 %v1362
        %v1541 = vunpack.c.h.b16 %v1363
        %v1542 = vunpack.c.l.b16 %v1364
        %v1543 = vunpack.c.l.b16 %v1365
        %v1544 = vunpack.c.h.b16 %v1364
        %v1545 = vunpack.c.h.b16 %v1365
        %v1546 = vunpack.c.l.b16 %v1366
        %v1547 = vunpack.c.l.b16 %v1367
        %v1548 = vunpack.c.h.b16 %v1366
        %v1549 = vunpack.c.h.b16 %v1367
        %v1550 = vunpack.c.l.b16 %v1368
        %v1551 = vunpack.c.l.b16 %v1369
        %v1552 = vunpack.c.h.b16 %v1368
        %v1553 = vunpack.c.h.b16 %v1369
        %v1554 = vunpack.c.l.b16 %v1370
        %v1555 = vunpack.c.l.b16 %v1371
        %v1556 = vunpack.c.h.b16 %v1370
        %v1557 = vunpack.c.h.b16 %v1371
        %v1558 = vunpack.c.l.b16 %v1372
        %v1559 = vunpack.c.l.b16 %v1373
        %v1560 = vunpack.c.h.b16 %v1372
        %v1561 = vunpack.c.h.b16 %v1373
        %v1562 = vunpack.c.l.b16 %v1374
        %v1563 = vunpack.c.l.b16 %v1375
        %v1564 = vunpack.c.h.b16 %v1374
        %v1565 = vunpack.c.h.b16 %v1375
        %v1566 = vunpack.c.l.b16 %v1376
        %v1567 = vunpack.c.l.b16 %v1377
        %v1568 = vunpack.c.h.b16 %v1376
        %v1569 = vunpack.c.h.b16 %v1377
        %v1570 = vpack.c.b16 %v1443, %v1442
        %v1571 = vpack.c.b16 %v1445, %v1444
        %v1572 = vpack.c.b16 %v1447, %v1446
        %v1573 = vpack.c.b16 %v1449, %v1448
        %v1574 = vpack.c.b16 %v1451, %v1450
        %v1575 = vpack.c.b16 %v1453, %v1452
        %v1576 = vpack.c.b16 %v1455, %v1454
        %v1577 = vpack.c.b16 %v1457, %v1456
        %v1578 = vpack.c.b16 %v1459, %v1458
        %v1579 = vpack.c.b16 %v1461, %v1460
        %v1580 = vpack.c.b16 %v1463, %v1462
        %v1581 = vpack.c.b16 %v1465, %v1464
        %v1582 = vpack.c.b16 %v1467, %v1466
        %v1583 = vpack.c.b16 %v1469, %v1468
        %v1584 = vpack.c.b16 %v1471, %v1470
        %v1585 = vpack.c.b16 %v1473, %v1472
        %v1586 = vpack.c.b16 %v1475, %v1474
        %v1587 = vpack.c.b16 %v1477, %v1476
        %v1588 = vpack.c.b16 %v1479, %v1478
        %v1589 = vpack.c.b16 %v1481, %v1480
        %v1590 = vpack.c.b16 %v1483, %v1482
        %v1591 = vpack.c.b16 %v1485, %v1484
        %v1592 = vpack.c.b16 %v1487, %v1486
        %v1593 = vpack.c.b16 %v1489, %v1488
        %v1594 = vpack.c.b16 %v1491, %v1490
        %v1595 = vpack.c.b16 %v1493, %v1492
        %v1596 = vpack.c.b16 %v1495, %v1494
        %v1597 = vpack.c.b16 %v1497, %v1496
        %v1598 = vpack.c.b16 %v1499, %v1498
        %v1599 = vpack.c.b16 %v1501, %v1500
        %v1600 = vpack.c.b16 %v1503, %v1502
        %v1601 = vpack.c.b16 %v1505, %v1504
        %v1602 = vpack.c.b16 %v1507, %v1506
        %v1603 = vpack.c.b16 %v1509, %v1508
        %v1604 = vpack.c.b16 %v1511, %v1510
        %v1605 = vpack.c.b16 %v1513, %v1512
        %v1606 = vpack.c.b16 %v1515, %v1514
        %v1607 = vpack.c.b16 %v1517, %v1516
        %v1608 = vpack.c.b16 %v1519, %v1518
        %v1609 = vpack.c.b16 %v1521, %v1520
        %v1610 = vpack.c.b16 %v1523, %v1522
        %v1611 = vpack.c.b16 %v1525, %v1524
        %v1612 = vpack.c.b16 %v1527, %v1526
        %v1613 = vpack.c.b16 %v1529, %v1528
        %v1614 = vpack.c.b16 %v1531, %v1530
        %v1615 = vpack.c.b16 %v1533, %v1532
        %v1616 = vpack.c.b16 %v1535, %v1534
        %v1617 = vpack.c.b16 %v1537, %v1536
        %v1618 = vpack.c.b16 %v1539, %v1538
        %v1619 = vpack.c.b16 %v1541, %v1540
        %v1620 = vpack.c.b16 %v1543, %v1542
        %v1621 = vpack.c.b16 %v1545, %v1544
        %v1622 = vpack.c.b16 %v1547, %v1546
        %v1623 = vpack.c.b16 %v1549, %v1548
        %v1624 = vpack.c.b16 %v1551, %v1550
        %v1625 = vpack.c.b16 %v1553, %v1552
        %v1626 = vpack.c.b16 %v1555, %v1554
        %v1627 = vpack.c.b16 %v1557, %v1556
        %v1628 = vpack.c.b16 %v1559, %v1558
        %v1629 = vpack.c.b16 %v1561, %v1560
        %v1630 = vpack.c.b16 %v1563, %v1562
        %v1631 = vpack.c.b16 %v1565, %v1564
        %v1632 = vpack.c.b16 %v1567, %v1566
        %v1633 = vpack.c.b16 %v1569, %v1568
        %1698 = vst [vmem:[%s360] sm:$0xff] %v1570
        %1699 = vst [vmem:[%s360 + $0x8] sm:$0xff] %v1571
        %1700 = vst [vmem:[%s360 + $0x10] sm:$0xff] %v1572
        %1701 = vst [vmem:[%s360 + $0x18] sm:$0xff] %v1573
        %1702 = vst [vmem:[%s360 + $0x20] sm:$0xff] %v1574
        %1703 = vst [vmem:[%s360 + $0x28] sm:$0xff] %v1575
        %1704 = vst [vmem:[%s360 + $0x30] sm:$0xff] %v1576
        %1705 = vst [vmem:[%s360 + $0x38] sm:$0xff] %v1577
        %1706 = vst [vmem:[%s360 + $0x40] sm:$0xff] %v1578
        %1707 = vst [vmem:[%s360 + $0x48] sm:$0xff] %v1579
        %1708 = vst [vmem:[%s360 + $0x50] sm:$0xff] %v1580
        %1709 = vst [vmem:[%s360 + $0x58] sm:$0xff] %v1581
        %1710 = vst [vmem:[%s360 + $0x60] sm:$0xff] %v1582
        %1711 = vst [vmem:[%s360 + $0x68] sm:$0xff] %v1583
        %1712 = vst [vmem:[%s360 + $0x70] sm:$0xff] %v1584
        %1713 = vst [vmem:[%s360 + $0x78] sm:$0xff] %v1585
        %1714 = vst [vmem:[%s360 + $0x80] sm:$0xff] %v1586
        %1715 = vst [vmem:[%s360 + $0x88] sm:$0xff] %v1587
        %1716 = vst [vmem:[%s360 + $0x90] sm:$0xff] %v1588
        %1717 = vst [vmem:[%s360 + $0x98] sm:$0xff] %v1589
        %1718 = vst [vmem:[%s360 + $0xa0] sm:$0xff] %v1590
        %1719 = vst [vmem:[%s360 + $0xa8] sm:$0xff] %v1591
        %1720 = vst [vmem:[%s360 + $0xb0] sm:$0xff] %v1592
        %1721 = vst [vmem:[%s360 + $0xb8] sm:$0xff] %v1593
        %1722 = vst [vmem:[%s360 + $0xc0] sm:$0xff] %v1594
        %1723 = vst [vmem:[%s360 + $0xc8] sm:$0xff] %v1595
        %1724 = vst [vmem:[%s360 + $0xd0] sm:$0xff] %v1596
        %1725 = vst [vmem:[%s360 + $0xd8] sm:$0xff] %v1597
        %1726 = vst [vmem:[%s360 + $0xe0] sm:$0xff] %v1598
        %1727 = vst [vmem:[%s360 + $0xe8] sm:$0xff] %v1599
        %1728 = vst [vmem:[%s360 + $0xf0] sm:$0xff] %v1600
        %1729 = vst [vmem:[%s360 + $0xf8] sm:$0xff] %v1601
        %1730 = vst [vmem:[%s360 + $0x100] sm:$0xff] %v1602
        %1731 = vst [vmem:[%s360 + $0x108] sm:$0xff] %v1603
        %1732 = vst [vmem:[%s360 + $0x110] sm:$0xff] %v1604
        %1733 = vst [vmem:[%s360 + $0x118] sm:$0xff] %v1605
        %1734 = vst [vmem:[%s360 + $0x120] sm:$0xff] %v1606
        %1735 = vst [vmem:[%s360 + $0x128] sm:$0xff] %v1607
        %1736 = vst [vmem:[%s360 + $0x130] sm:$0xff] %v1608
        %1737 = vst [vmem:[%s360 + $0x138] sm:$0xff] %v1609
        %1738 = vst [vmem:[%s360 + $0x140] sm:$0xff] %v1610
        %1739 = vst [vmem:[%s360 + $0x148] sm:$0xff] %v1611
        %1740 = vst [vmem:[%s360 + $0x150] sm:$0xff] %v1612
        %1741 = vst [vmem:[%s360 + $0x158] sm:$0xff] %v1613
        %1742 = vst [vmem:[%s360 + $0x160] sm:$0xff] %v1614
        %1743 = vst [vmem:[%s360 + $0x168] sm:$0xff] %v1615
        %1744 = vst [vmem:[%s360 + $0x170] sm:$0xff] %v1616
        %1745 = vst [vmem:[%s360 + $0x178] sm:$0xff] %v1617
        %1746 = vst [vmem:[%s360 + $0x180] sm:$0xff] %v1618
        %1747 = vst [vmem:[%s360 + $0x188] sm:$0xff] %v1619
        %1748 = vst [vmem:[%s360 + $0x190] sm:$0xff] %v1620
        %1749 = vst [vmem:[%s360 + $0x198] sm:$0xff] %v1621
        %1750 = vst [vmem:[%s360 + $0x1a0] sm:$0xff] %v1622
        %1751 = vst [vmem:[%s360 + $0x1a8] sm:$0xff] %v1623
        %1752 = vst [vmem:[%s360 + $0x1b0] sm:$0xff] %v1624
        %1753 = vst [vmem:[%s360 + $0x1b8] sm:$0xff] %v1625
        %1754 = vst [vmem:[%s360 + $0x1c0] sm:$0xff] %v1626
        %1755 = vst [vmem:[%s360 + $0x1c8] sm:$0xff] %v1627
        %1756 = vst [vmem:[%s360 + $0x1d0] sm:$0xff] %v1628
        %1757 = vst [vmem:[%s360 + $0x1d8] sm:$0xff] %v1629
        %1758 = vst [vmem:[%s360 + $0x1e0] sm:$0xff] %v1630
        %1759 = vst [vmem:[%s360 + $0x1e8] sm:$0xff] %v1631
        %1760 = vst [vmem:[%s360 + $0x1f0] sm:$0xff] %v1632
        %1761 = vst [vmem:[%s360 + $0x1f8] sm:$0xff] %v1633
        %v1762 = vld [vmem:[#allocation7] sm:$0xff]
        %v1763 = vld [vmem:[#allocation7 + $0x8] sm:$0xff]
        %v1764 = vld [vmem:[#allocation7 + $0x10] sm:$0xff]
        %v1765 = vld [vmem:[#allocation7 + $0x18] sm:$0xff]
        %v1766 = vld [vmem:[#allocation7 + $0x20] sm:$0xff]
        %v1767 = vld [vmem:[#allocation7 + $0x28] sm:$0xff]
        %v1768 = vld [vmem:[#allocation7 + $0x30] sm:$0xff]
        %v1769 = vld [vmem:[#allocation7 + $0x38] sm:$0xff]
        %v1770 = vld [vmem:[#allocation7 + $0x40] sm:$0xff]
        %v1771 = vld [vmem:[#allocation7 + $0x48] sm:$0xff]
        %v1772 = vld [vmem:[#allocation7 + $0x50] sm:$0xff]
        %v1773 = vld [vmem:[#allocation7 + $0x58] sm:$0xff]
        %v1774 = vld [vmem:[#allocation7 + $0x60] sm:$0xff]
        %v1775 = vld [vmem:[#allocation7 + $0x68] sm:$0xff]
        %v1776 = vld [vmem:[#allocation7 + $0x70] sm:$0xff]
        %v1777 = vld [vmem:[#allocation7 + $0x78] sm:$0xff]
        %v1778 = vld [vmem:[#allocation7 + $0x80] sm:$0xff]
        %v1779 = vld [vmem:[#allocation7 + $0x88] sm:$0xff]
        %v1780 = vld [vmem:[#allocation7 + $0x90] sm:$0xff]
        %v1781 = vld [vmem:[#allocation7 + $0x98] sm:$0xff]
        %v1782 = vld [vmem:[#allocation7 + $0xa0] sm:$0xff]
        %v1783 = vld [vmem:[#allocation7 + $0xa8] sm:$0xff]
        %v1784 = vld [vmem:[#allocation7 + $0xb0] sm:$0xff]
        %v1785 = vld [vmem:[#allocation7 + $0xb8] sm:$0xff]
        %v1786 = vld [vmem:[#allocation7 + $0xc0] sm:$0xff]
        %v1787 = vld [vmem:[#allocation7 + $0xc8] sm:$0xff]
        %v1788 = vld [vmem:[#allocation7 + $0xd0] sm:$0xff]
        %v1789 = vld [vmem:[#allocation7 + $0xd8] sm:$0xff]
        %v1790 = vld [vmem:[#allocation7 + $0xe0] sm:$0xff]
        %v1791 = vld [vmem:[#allocation7 + $0xe8] sm:$0xff]
        %v1792 = vld [vmem:[#allocation7 + $0xf0] sm:$0xff]
        %v1793 = vld [vmem:[#allocation7 + $0xf8] sm:$0xff]
        %v1826 = vunpack.c.l.b16 %v1762
        %v1827 = vunpack.c.h.b16 %v1762
        %v1828 = vunpack.c.l.b16 %v1763
        %v1829 = vunpack.c.h.b16 %v1763
        %v1830 = vunpack.c.l.b16 %v1764
        %v1831 = vunpack.c.h.b16 %v1764
        %v1832 = vunpack.c.l.b16 %v1765
        %v1833 = vunpack.c.h.b16 %v1765
        %v1834 = vunpack.c.l.b16 %v1766
        %v1835 = vunpack.c.h.b16 %v1766
        %v1836 = vunpack.c.l.b16 %v1767
        %v1837 = vunpack.c.h.b16 %v1767
        %v1838 = vunpack.c.l.b16 %v1768
        %v1839 = vunpack.c.h.b16 %v1768
        %v1840 = vunpack.c.l.b16 %v1769
        %v1841 = vunpack.c.h.b16 %v1769
        %v1842 = vunpack.c.l.b16 %v1770
        %v1843 = vunpack.c.h.b16 %v1770
        %v1844 = vunpack.c.l.b16 %v1771
        %v1845 = vunpack.c.h.b16 %v1771
        %v1846 = vunpack.c.l.b16 %v1772
        %v1847 = vunpack.c.h.b16 %v1772
        %v1848 = vunpack.c.l.b16 %v1773
        %v1849 = vunpack.c.h.b16 %v1773
        %v1850 = vunpack.c.l.b16 %v1774
        %v1851 = vunpack.c.h.b16 %v1774
        %v1852 = vunpack.c.l.b16 %v1775
        %v1853 = vunpack.c.h.b16 %v1775
        %v1854 = vunpack.c.l.b16 %v1776
        %v1855 = vunpack.c.h.b16 %v1776
        %v1856 = vunpack.c.l.b16 %v1777
        %v1857 = vunpack.c.h.b16 %v1777
        %v1858 = vunpack.c.l.b16 %v1778
        %v1859 = vunpack.c.h.b16 %v1778
        %v1860 = vunpack.c.l.b16 %v1779
        %v1861 = vunpack.c.h.b16 %v1779
        %v1862 = vunpack.c.l.b16 %v1780
        %v1863 = vunpack.c.h.b16 %v1780
        %v1864 = vunpack.c.l.b16 %v1781
        %v1865 = vunpack.c.h.b16 %v1781
        %v1866 = vunpack.c.l.b16 %v1782
        %v1867 = vunpack.c.h.b16 %v1782
        %v1868 = vunpack.c.l.b16 %v1783
        %v1869 = vunpack.c.h.b16 %v1783
        %v1870 = vunpack.c.l.b16 %v1784
        %v1871 = vunpack.c.h.b16 %v1784
        %v1872 = vunpack.c.l.b16 %v1785
        %v1873 = vunpack.c.h.b16 %v1785
        %v1874 = vunpack.c.l.b16 %v1786
        %v1875 = vunpack.c.h.b16 %v1786
        %v1876 = vunpack.c.l.b16 %v1787
        %v1877 = vunpack.c.h.b16 %v1787
        %v1878 = vunpack.c.l.b16 %v1788
        %v1879 = vunpack.c.h.b16 %v1788
        %v1880 = vunpack.c.l.b16 %v1789
        %v1881 = vunpack.c.h.b16 %v1789
        %v1882 = vunpack.c.l.b16 %v1790
        %v1883 = vunpack.c.h.b16 %v1790
        %v1884 = vunpack.c.l.b16 %v1791
        %v1885 = vunpack.c.h.b16 %v1791
        %v1886 = vunpack.c.l.b16 %v1792
        %v1887 = vunpack.c.h.b16 %v1792
        %v1888 = vunpack.c.l.b16 %v1793
        %v1889 = vunpack.c.h.b16 %v1793
        %v1890 = vpack.c.b16 %v1828, %v1826
        %v1891 = vpack.c.b16 %v1829, %v1827
        %v1892 = vpack.c.b16 %v1832, %v1830
        %v1893 = vpack.c.b16 %v1833, %v1831
        %v1894 = vpack.c.b16 %v1836, %v1834
        %v1895 = vpack.c.b16 %v1837, %v1835
        %v1896 = vpack.c.b16 %v1840, %v1838
        %v1897 = vpack.c.b16 %v1841, %v1839
        %v1898 = vpack.c.b16 %v1844, %v1842
        %v1899 = vpack.c.b16 %v1845, %v1843
        %v1900 = vpack.c.b16 %v1848, %v1846
        %v1901 = vpack.c.b16 %v1849, %v1847
        %v1902 = vpack.c.b16 %v1852, %v1850
        %v1903 = vpack.c.b16 %v1853, %v1851
        %v1904 = vpack.c.b16 %v1856, %v1854
        %v1905 = vpack.c.b16 %v1857, %v1855
        %v1906 = vpack.c.b16 %v1860, %v1858
        %v1907 = vpack.c.b16 %v1861, %v1859
        %v1908 = vpack.c.b16 %v1864, %v1862
        %v1909 = vpack.c.b16 %v1865, %v1863
        %v1910 = vpack.c.b16 %v1868, %v1866
        %v1911 = vpack.c.b16 %v1869, %v1867
        %v1912 = vpack.c.b16 %v1872, %v1870
        %v1913 = vpack.c.b16 %v1873, %v1871
        %v1914 = vpack.c.b16 %v1876, %v1874
        %v1915 = vpack.c.b16 %v1877, %v1875
        %v1916 = vpack.c.b16 %v1880, %v1878
        %v1917 = vpack.c.b16 %v1881, %v1879
        %v1918 = vpack.c.b16 %v1884, %v1882
        %v1919 = vpack.c.b16 %v1885, %v1883
        %v1920 = vpack.c.b16 %v1888, %v1886
        %v1921 = vpack.c.b16 %v1889, %v1887
        %1954 = vmatprep.subr.bf16.mxu0 %v1905
        %1955 = vmatpush1.bf16.msra.mxu0 %v1904
        %1956 = vmatprep.subr.bf16.mxu0 %v1903
        %1957 = vmatpush1.bf16.msra.mxu0 %v1902
        %1958 = vmatprep.subr.bf16.mxu0 %v1901
        %1959 = vmatpush1.bf16.msra.mxu0 %v1900
        %1960 = vmatprep.subr.bf16.mxu0 %v1899
        %1961 = vmatpush1.bf16.msra.mxu0 %v1898
        %1962 = vmatprep.subr.bf16.mxu0 %v1897
        %1963 = vmatpush1.bf16.msra.mxu0 %v1896
        %1964 = vmatprep.subr.bf16.mxu0 %v1895
        %1965 = vmatpush1.bf16.msra.mxu0 %v1894
        %1966 = vmatprep.subr.bf16.mxu0 %v1893
        %1967 = vmatpush1.bf16.msra.mxu0 %v1892
        %1968 = vmatprep.subr.bf16.mxu0 %v1891
        %1969 = vmatpush1.bf16.msra.mxu0 %v1890
        %1970 = vmatprep.subr.bf16.mxu0 %v1921
        %1971 = vmatpush2.bf16.msra.mxu0 %v1920
        %1972 = vmatprep.subr.bf16.mxu0 %v1919
        %1973 = vmatpush2.bf16.msra.mxu0 %v1918
        %1974 = vmatprep.subr.bf16.mxu0 %v1917
        %1975 = vmatpush2.bf16.msra.mxu0 %v1916
        %1976 = vmatprep.subr.bf16.mxu0 %v1915
        %1977 = vmatpush2.bf16.msra.mxu0 %v1914
        %1978 = vmatprep.subr.bf16.mxu0 %v1913
        %1979 = vmatpush2.bf16.msra.mxu0 %v1912
        %1980 = vmatprep.subr.bf16.mxu0 %v1911
        %1981 = vmatpush2.bf16.msra.mxu0 %v1910
        %1982 = vmatprep.subr.bf16.mxu0 %v1909
        %1983 = vmatpush2.bf16.msra.mxu0 %v1908
        %1984 = vmatprep.subr.bf16.mxu0 %v1907
        %1985 = vmatpush2.bf16.msra.mxu0 %v1906
        %1986 = vmatprep.mubr.bf16.mxu0 %v674
        %1987 = vmatmul.mubr.bf16.gmra.mxu0 %v673
        %v1988 = vpop.f32.mrf.mxu0
        %v1989 = vadd.f32 0.0, %v1988
        %v1990 = vpop.f32.mrf.mxu0
        %v1991 = vadd.f32 0.0, %v1990
        %v1992 = vpop.f32.mrf.mxu0
        %v1993 = vadd.f32 0.0, %v1992
        %v1994 = vpop.f32.mrf.mxu0
        %v1995 = vadd.f32 0.0, %v1994
        %1996 = vmatprep.mubr.bf16.mxu0 %v676
        %1997 = vmatmul.mubr.bf16.gmra.mxu0 %v675
        %v1998 = vpop.f32.mrf.mxu0
        %v1999 = vadd.f32 0.0, %v1998
        %v2000 = vpop.f32.mrf.mxu0
        %v2001 = vadd.f32 0.0, %v2000
        %v2002 = vpop.f32.mrf.mxu0
        %v2003 = vadd.f32 0.0, %v2002
        %v2004 = vpop.f32.mrf.mxu0
        %v2005 = vadd.f32 0.0, %v2004
        %2006 = vmatprep.mubr.bf16.mxu0 %v678
        %2007 = vmatmul.mubr.bf16.gmra.mxu0 %v677
        %v2008 = vpop.f32.mrf.mxu0
        %v2009 = vadd.f32 0.0, %v2008
        %v2010 = vpop.f32.mrf.mxu0
        %v2011 = vadd.f32 0.0, %v2010
        %v2012 = vpop.f32.mrf.mxu0
        %v2013 = vadd.f32 0.0, %v2012
        %v2014 = vpop.f32.mrf.mxu0
        %v2015 = vadd.f32 0.0, %v2014
        %2016 = vmatprep.mubr.bf16.mxu0 %v680
        %2017 = vmatmul.mubr.bf16.gmra.mxu0 %v679
        %v2018 = vpop.f32.mrf.mxu0
        %v2019 = vadd.f32 0.0, %v2018
        %v2020 = vpop.f32.mrf.mxu0
        %v2021 = vadd.f32 0.0, %v2020
        %v2022 = vpop.f32.mrf.mxu0
        %v2023 = vadd.f32 0.0, %v2022
        %v2024 = vpop.f32.mrf.mxu0
        %v2025 = vadd.f32 0.0, %v2024
        %2026 = vmatprep.mubr.bf16.mxu0 %v682
        %2027 = vmatmul.mubr.bf16.gmra.mxu0 %v681
        %v2028 = vpop.f32.mrf.mxu0
        %v2029 = vadd.f32 0.0, %v2028
        %v2030 = vpop.f32.mrf.mxu0
        %v2031 = vadd.f32 0.0, %v2030
        %v2032 = vpop.f32.mrf.mxu0
        %v2033 = vadd.f32 0.0, %v2032
        %v2034 = vpop.f32.mrf.mxu0
        %v2035 = vadd.f32 0.0, %v2034
        %2036 = vmatprep.mubr.bf16.mxu0 %v684
        %2037 = vmatmul.mubr.bf16.gmra.mxu0 %v683
        %v2038 = vpop.f32.mrf.mxu0
        %v2039 = vadd.f32 0.0, %v2038
        %v2040 = vpop.f32.mrf.mxu0
        %v2041 = vadd.f32 0.0, %v2040
        %v2042 = vpop.f32.mrf.mxu0
        %v2043 = vadd.f32 0.0, %v2042
        %v2044 = vpop.f32.mrf.mxu0
        %v2045 = vadd.f32 0.0, %v2044
        %2046 = vmatprep.mubr.bf16.mxu0 %v686
        %2047 = vmatmul.mubr.bf16.gmra.mxu0 %v685
        %v2048 = vpop.f32.mrf.mxu0
        %v2049 = vadd.f32 0.0, %v2048
        %v2050 = vpop.f32.mrf.mxu0
        %v2051 = vadd.f32 0.0, %v2050
        %v2052 = vpop.f32.mrf.mxu0
        %v2053 = vadd.f32 0.0, %v2052
        %v2054 = vpop.f32.mrf.mxu0
        %v2055 = vadd.f32 0.0, %v2054
        %2056 = vmatprep.mubr.bf16.mxu0 %v688
        %2057 = vmatmul.mubr.bf16.gmra.mxu0 %v687
        %v2058 = vpop.f32.mrf.mxu0
        %v2059 = vadd.f32 0.0, %v2058
        %v2060 = vpop.f32.mrf.mxu0
        %v2061 = vadd.f32 0.0, %v2060
        %v2062 = vpop.f32.mrf.mxu0
        %v2063 = vadd.f32 0.0, %v2062
        %v2064 = vpop.f32.mrf.mxu0
        %v2065 = vadd.f32 0.0, %v2064
        %2066 = vmatprep.mubr.bf16.mxu0 %v690
        %2067 = vmatmul.mubr.bf16.gmra.mxu0 %v689
        %v2068 = vpop.f32.mrf.mxu0
        %v2069 = vadd.f32 0.0, %v2068
        %v2070 = vpop.f32.mrf.mxu0
        %v2071 = vadd.f32 0.0, %v2070
        %v2072 = vpop.f32.mrf.mxu0
        %v2073 = vadd.f32 0.0, %v2072
        %v2074 = vpop.f32.mrf.mxu0
        %v2075 = vadd.f32 0.0, %v2074
        %2076 = vmatprep.mubr.bf16.mxu0 %v692
        %2077 = vmatmul.mubr.bf16.gmra.mxu0 %v691
        %v2078 = vpop.f32.mrf.mxu0
        %v2079 = vadd.f32 0.0, %v2078
        %v2080 = vpop.f32.mrf.mxu0
        %v2081 = vadd.f32 0.0, %v2080
        %v2082 = vpop.f32.mrf.mxu0
        %v2083 = vadd.f32 0.0, %v2082
        %v2084 = vpop.f32.mrf.mxu0
        %v2085 = vadd.f32 0.0, %v2084
        %2086 = vmatprep.mubr.bf16.mxu0 %v694
        %2087 = vmatmul.mubr.bf16.gmra.mxu0 %v693
        %v2088 = vpop.f32.mrf.mxu0
        %v2089 = vadd.f32 0.0, %v2088
        %v2090 = vpop.f32.mrf.mxu0
        %v2091 = vadd.f32 0.0, %v2090
        %v2092 = vpop.f32.mrf.mxu0
        %v2093 = vadd.f32 0.0, %v2092
        %v2094 = vpop.f32.mrf.mxu0
        %v2095 = vadd.f32 0.0, %v2094
        %2096 = vmatprep.mubr.bf16.mxu0 %v696
        %2097 = vmatmul.mubr.bf16.gmra.mxu0 %v695
        %v2098 = vpop.f32.mrf.mxu0
        %v2099 = vadd.f32 0.0, %v2098
        %v2100 = vpop.f32.mrf.mxu0
        %v2101 = vadd.f32 0.0, %v2100
        %v2102 = vpop.f32.mrf.mxu0
        %v2103 = vadd.f32 0.0, %v2102
        %v2104 = vpop.f32.mrf.mxu0
        %v2105 = vadd.f32 0.0, %v2104
        %2106 = vmatprep.mubr.bf16.mxu0 %v698
        %2107 = vmatmul.mubr.bf16.gmra.mxu0 %v697
        %v2108 = vpop.f32.mrf.mxu0
        %v2109 = vadd.f32 0.0, %v2108
        %v2110 = vpop.f32.mrf.mxu0
        %v2111 = vadd.f32 0.0, %v2110
        %v2112 = vpop.f32.mrf.mxu0
        %v2113 = vadd.f32 0.0, %v2112
        %v2114 = vpop.f32.mrf.mxu0
        %v2115 = vadd.f32 0.0, %v2114
        %2116 = vmatprep.mubr.bf16.mxu0 %v700
        %2117 = vmatmul.mubr.bf16.gmra.mxu0 %v699
        %v2118 = vpop.f32.mrf.mxu0
        %v2119 = vadd.f32 0.0, %v2118
        %v2120 = vpop.f32.mrf.mxu0
        %v2121 = vadd.f32 0.0, %v2120
        %v2122 = vpop.f32.mrf.mxu0
        %v2123 = vadd.f32 0.0, %v2122
        %v2124 = vpop.f32.mrf.mxu0
        %v2125 = vadd.f32 0.0, %v2124
        %2126 = vmatprep.mubr.bf16.mxu0 %v702
        %2127 = vmatmul.mubr.bf16.gmra.mxu0 %v701
        %v2128 = vpop.f32.mrf.mxu0
        %v2129 = vadd.f32 0.0, %v2128
        %v2130 = vpop.f32.mrf.mxu0
        %v2131 = vadd.f32 0.0, %v2130
        %v2132 = vpop.f32.mrf.mxu0
        %v2133 = vadd.f32 0.0, %v2132
        %v2134 = vpop.f32.mrf.mxu0
        %v2135 = vadd.f32 0.0, %v2134
        %2136 = vmatprep.mubr.bf16.mxu0 %v704
        %2137 = vmatmul.mubr.bf16.gmra.mxu0 %v703
        %v2138 = vpop.f32.mrf.mxu0
        %v2139 = vadd.f32 0.0, %v2138
        %v2140 = vpop.f32.mrf.mxu0
        %v2141 = vadd.f32 0.0, %v2140
        %v2142 = vpop.f32.mrf.mxu0
        %v2143 = vadd.f32 0.0, %v2142
        %v2144 = vpop.f32.mrf.mxu0
        %v2145 = vadd.f32 0.0, %v2144
        %2146 = vmatprep.mubr.bf16.mxu0 %v706
        %2147 = vmatmul.mubr.bf16.gmra.mxu0 %v705
        %v2148 = vpop.f32.mrf.mxu0
        %v2149 = vadd.f32 0.0, %v2148
        %v2150 = vpop.f32.mrf.mxu0
        %v2151 = vadd.f32 0.0, %v2150
        %v2152 = vpop.f32.mrf.mxu0
        %v2153 = vadd.f32 0.0, %v2152
        %v2154 = vpop.f32.mrf.mxu0
        %v2155 = vadd.f32 0.0, %v2154
        %2156 = vmatprep.mubr.bf16.mxu0 %v708
        %2157 = vmatmul.mubr.bf16.gmra.mxu0 %v707
        %v2158 = vpop.f32.mrf.mxu0
        %v2159 = vadd.f32 0.0, %v2158
        %v2160 = vpop.f32.mrf.mxu0
        %v2161 = vadd.f32 0.0, %v2160
        %v2162 = vpop.f32.mrf.mxu0
        %v2163 = vadd.f32 0.0, %v2162
        %v2164 = vpop.f32.mrf.mxu0
        %v2165 = vadd.f32 0.0, %v2164
        %2166 = vmatprep.mubr.bf16.mxu0 %v710
        %2167 = vmatmul.mubr.bf16.gmra.mxu0 %v709
        %v2168 = vpop.f32.mrf.mxu0
        %v2169 = vadd.f32 0.0, %v2168
        %v2170 = vpop.f32.mrf.mxu0
        %v2171 = vadd.f32 0.0, %v2170
        %v2172 = vpop.f32.mrf.mxu0
        %v2173 = vadd.f32 0.0, %v2172
        %v2174 = vpop.f32.mrf.mxu0
        %v2175 = vadd.f32 0.0, %v2174
        %2176 = vmatprep.mubr.bf16.mxu0 %v712
        %2177 = vmatmul.mubr.bf16.gmra.mxu0 %v711
        %v2178 = vpop.f32.mrf.mxu0
        %v2179 = vadd.f32 0.0, %v2178
        %v2180 = vpop.f32.mrf.mxu0
        %v2181 = vadd.f32 0.0, %v2180
        %v2182 = vpop.f32.mrf.mxu0
        %v2183 = vadd.f32 0.0, %v2182
        %v2184 = vpop.f32.mrf.mxu0
        %v2185 = vadd.f32 0.0, %v2184
        %2186 = vmatprep.mubr.bf16.mxu0 %v714
        %2187 = vmatmul.mubr.bf16.gmra.mxu0 %v713
        %v2188 = vpop.f32.mrf.mxu0
        %v2189 = vadd.f32 0.0, %v2188
        %v2190 = vpop.f32.mrf.mxu0
        %v2191 = vadd.f32 0.0, %v2190
        %v2192 = vpop.f32.mrf.mxu0
        %v2193 = vadd.f32 0.0, %v2192
        %v2194 = vpop.f32.mrf.mxu0
        %v2195 = vadd.f32 0.0, %v2194
        %2196 = vmatprep.mubr.bf16.mxu0 %v716
        %2197 = vmatmul.mubr.bf16.gmra.mxu0 %v715
        %v2198 = vpop.f32.mrf.mxu0
        %v2199 = vadd.f32 0.0, %v2198
        %v2200 = vpop.f32.mrf.mxu0
        %v2201 = vadd.f32 0.0, %v2200
        %v2202 = vpop.f32.mrf.mxu0
        %v2203 = vadd.f32 0.0, %v2202
        %v2204 = vpop.f32.mrf.mxu0
        %v2205 = vadd.f32 0.0, %v2204
        %2206 = vmatprep.mubr.bf16.mxu0 %v718
        %2207 = vmatmul.mubr.bf16.gmra.mxu0 %v717
        %v2208 = vpop.f32.mrf.mxu0
        %v2209 = vadd.f32 0.0, %v2208
        %v2210 = vpop.f32.mrf.mxu0
        %v2211 = vadd.f32 0.0, %v2210
        %v2212 = vpop.f32.mrf.mxu0
        %v2213 = vadd.f32 0.0, %v2212
        %v2214 = vpop.f32.mrf.mxu0
        %v2215 = vadd.f32 0.0, %v2214
        %2216 = vmatprep.mubr.bf16.mxu0 %v720
        %2217 = vmatmul.mubr.bf16.gmra.mxu0 %v719
        %v2218 = vpop.f32.mrf.mxu0
        %v2219 = vadd.f32 0.0, %v2218
        %v2220 = vpop.f32.mrf.mxu0
        %v2221 = vadd.f32 0.0, %v2220
        %v2222 = vpop.f32.mrf.mxu0
        %v2223 = vadd.f32 0.0, %v2222
        %v2224 = vpop.f32.mrf.mxu0
        %v2225 = vadd.f32 0.0, %v2224
        %2226 = vmatprep.mubr.bf16.mxu0 %v722
        %2227 = vmatmul.mubr.bf16.gmra.mxu0 %v721
        %v2228 = vpop.f32.mrf.mxu0
        %v2229 = vadd.f32 0.0, %v2228
        %v2230 = vpop.f32.mrf.mxu0
        %v2231 = vadd.f32 0.0, %v2230
        %v2232 = vpop.f32.mrf.mxu0
        %v2233 = vadd.f32 0.0, %v2232
        %v2234 = vpop.f32.mrf.mxu0
        %v2235 = vadd.f32 0.0, %v2234
        %2236 = vmatprep.mubr.bf16.mxu0 %v724
        %2237 = vmatmul.mubr.bf16.gmra.mxu0 %v723
        %v2238 = vpop.f32.mrf.mxu0
        %v2239 = vadd.f32 0.0, %v2238
        %v2240 = vpop.f32.mrf.mxu0
        %v2241 = vadd.f32 0.0, %v2240
        %v2242 = vpop.f32.mrf.mxu0
        %v2243 = vadd.f32 0.0, %v2242
        %v2244 = vpop.f32.mrf.mxu0
        %v2245 = vadd.f32 0.0, %v2244
        %2246 = vmatprep.mubr.bf16.mxu0 %v726
        %2247 = vmatmul.mubr.bf16.gmra.mxu0 %v725
        %v2248 = vpop.f32.mrf.mxu0
        %v2249 = vadd.f32 0.0, %v2248
        %v2250 = vpop.f32.mrf.mxu0
        %v2251 = vadd.f32 0.0, %v2250
        %v2252 = vpop.f32.mrf.mxu0
        %v2253 = vadd.f32 0.0, %v2252
        %v2254 = vpop.f32.mrf.mxu0
        %v2255 = vadd.f32 0.0, %v2254
        %2256 = vmatprep.mubr.bf16.mxu0 %v728
        %2257 = vmatmul.mubr.bf16.gmra.mxu0 %v727
        %v2258 = vpop.f32.mrf.mxu0
        %v2259 = vadd.f32 0.0, %v2258
        %v2260 = vpop.f32.mrf.mxu0
        %v2261 = vadd.f32 0.0, %v2260
        %v2262 = vpop.f32.mrf.mxu0
        %v2263 = vadd.f32 0.0, %v2262
        %v2264 = vpop.f32.mrf.mxu0
        %v2265 = vadd.f32 0.0, %v2264
        %2266 = vmatprep.mubr.bf16.mxu0 %v730
        %2267 = vmatmul.mubr.bf16.gmra.mxu0 %v729
        %v2268 = vpop.f32.mrf.mxu0
        %v2269 = vadd.f32 0.0, %v2268
        %v2270 = vpop.f32.mrf.mxu0
        %v2271 = vadd.f32 0.0, %v2270
        %v2272 = vpop.f32.mrf.mxu0
        %v2273 = vadd.f32 0.0, %v2272
        %v2274 = vpop.f32.mrf.mxu0
        %v2275 = vadd.f32 0.0, %v2274
        %2276 = vmatprep.mubr.bf16.mxu0 %v732
        %2277 = vmatmul.mubr.bf16.gmra.mxu0 %v731
        %v2278 = vpop.f32.mrf.mxu0
        %v2279 = vadd.f32 0.0, %v2278
        %v2280 = vpop.f32.mrf.mxu0
        %v2281 = vadd.f32 0.0, %v2280
        %v2282 = vpop.f32.mrf.mxu0
        %v2283 = vadd.f32 0.0, %v2282
        %v2284 = vpop.f32.mrf.mxu0
        %v2285 = vadd.f32 0.0, %v2284
        %2286 = vmatprep.mubr.bf16.mxu0 %v734
        %2287 = vmatmul.mubr.bf16.gmra.mxu0 %v733
        %v2288 = vpop.f32.mrf.mxu0
        %v2289 = vadd.f32 0.0, %v2288
        %v2290 = vpop.f32.mrf.mxu0
        %v2291 = vadd.f32 0.0, %v2290
        %v2292 = vpop.f32.mrf.mxu0
        %v2293 = vadd.f32 0.0, %v2292
        %v2294 = vpop.f32.mrf.mxu0
        %v2295 = vadd.f32 0.0, %v2294
        %2296 = vmatprep.mubr.bf16.mxu0 %v736
        %2297 = vmatmul.mubr.bf16.gmra.mxu0 %v735
        %v2298 = vpop.f32.mrf.mxu0
        %v2299 = vadd.f32 0.0, %v2298
        %v2300 = vpop.f32.mrf.mxu0
        %v2301 = vadd.f32 0.0, %v2300
        %v2302 = vpop.f32.mrf.mxu0
        %v2303 = vadd.f32 0.0, %v2302
        %v2304 = vpop.f32.mrf.mxu0
        %v2305 = vadd.f32 0.0, %v2304
        %2306 = vdwg.mxu0
        %v2307 = vpack.c.bf16 %v1993, %v1989
        %v2308 = vpack.c.bf16 %v1995, %v1991
        %v2309 = vpack.c.bf16 %v2003, %v1999
        %v2310 = vpack.c.bf16 %v2005, %v2001
        %v2311 = vpack.c.bf16 %v2013, %v2009
        %v2312 = vpack.c.bf16 %v2015, %v2011
        %v2313 = vpack.c.bf16 %v2023, %v2019
        %v2314 = vpack.c.bf16 %v2025, %v2021
        %v2315 = vpack.c.bf16 %v2033, %v2029
        %v2316 = vpack.c.bf16 %v2035, %v2031
        %v2317 = vpack.c.bf16 %v2043, %v2039
        %v2318 = vpack.c.bf16 %v2045, %v2041
        %v2319 = vpack.c.bf16 %v2053, %v2049
        %v2320 = vpack.c.bf16 %v2055, %v2051
        %v2321 = vpack.c.bf16 %v2063, %v2059
        %v2322 = vpack.c.bf16 %v2065, %v2061
        %v2323 = vpack.c.bf16 %v2073, %v2069
        %v2324 = vpack.c.bf16 %v2075, %v2071
        %v2325 = vpack.c.bf16 %v2083, %v2079
        %v2326 = vpack.c.bf16 %v2085, %v2081
        %v2327 = vpack.c.bf16 %v2093, %v2089
        %v2328 = vpack.c.bf16 %v2095, %v2091
        %v2329 = vpack.c.bf16 %v2103, %v2099
        %v2330 = vpack.c.bf16 %v2105, %v2101
        %v2331 = vpack.c.bf16 %v2113, %v2109
        %v2332 = vpack.c.bf16 %v2115, %v2111
        %v2333 = vpack.c.bf16 %v2123, %v2119
        %v2334 = vpack.c.bf16 %v2125, %v2121
        %v2335 = vpack.c.bf16 %v2133, %v2129
        %v2336 = vpack.c.bf16 %v2135, %v2131
        %v2337 = vpack.c.bf16 %v2143, %v2139
        %v2338 = vpack.c.bf16 %v2145, %v2141
        %v2339 = vpack.c.bf16 %v2153, %v2149
        %v2340 = vpack.c.bf16 %v2155, %v2151
        %v2341 = vpack.c.bf16 %v2163, %v2159
        %v2342 = vpack.c.bf16 %v2165, %v2161
        %v2343 = vpack.c.bf16 %v2173, %v2169
        %v2344 = vpack.c.bf16 %v2175, %v2171
        %v2345 = vpack.c.bf16 %v2183, %v2179
        %v2346 = vpack.c.bf16 %v2185, %v2181
        %v2347 = vpack.c.bf16 %v2193, %v2189
        %v2348 = vpack.c.bf16 %v2195, %v2191
        %v2349 = vpack.c.bf16 %v2203, %v2199
        %v2350 = vpack.c.bf16 %v2205, %v2201
        %v2351 = vpack.c.bf16 %v2213, %v2209
        %v2352 = vpack.c.bf16 %v2215, %v2211
        %v2353 = vpack.c.bf16 %v2223, %v2219
        %v2354 = vpack.c.bf16 %v2225, %v2221
        %v2355 = vpack.c.bf16 %v2233, %v2229
        %v2356 = vpack.c.bf16 %v2235, %v2231
        %v2357 = vpack.c.bf16 %v2243, %v2239
        %v2358 = vpack.c.bf16 %v2245, %v2241
        %v2359 = vpack.c.bf16 %v2253, %v2249
        %v2360 = vpack.c.bf16 %v2255, %v2251
        %v2361 = vpack.c.bf16 %v2263, %v2259
        %v2362 = vpack.c.bf16 %v2265, %v2261
        %v2363 = vpack.c.bf16 %v2273, %v2269
        %v2364 = vpack.c.bf16 %v2275, %v2271
        %v2365 = vpack.c.bf16 %v2283, %v2279
        %v2366 = vpack.c.bf16 %v2285, %v2281
        %v2367 = vpack.c.bf16 %v2293, %v2289
        %v2368 = vpack.c.bf16 %v2295, %v2291
        %v2369 = vpack.c.bf16 %v2303, %v2299
        %v2370 = vpack.c.bf16 %v2305, %v2301
        %v2435 = vunpack.c.l.b16 %v2307
        %v2436 = vunpack.c.l.b16 %v2308
        %v2437 = vunpack.c.h.b16 %v2307
        %v2438 = vunpack.c.h.b16 %v2308
        %v2439 = vunpack.c.l.b16 %v2309
        %v2440 = vunpack.c.l.b16 %v2310
        %v2441 = vunpack.c.h.b16 %v2309
        %v2442 = vunpack.c.h.b16 %v2310
        %v2443 = vunpack.c.l.b16 %v2311
        %v2444 = vunpack.c.l.b16 %v2312
        %v2445 = vunpack.c.h.b16 %v2311
        %v2446 = vunpack.c.h.b16 %v2312
        %v2447 = vunpack.c.l.b16 %v2313
        %v2448 = vunpack.c.l.b16 %v2314
        %v2449 = vunpack.c.h.b16 %v2313
        %v2450 = vunpack.c.h.b16 %v2314
        %v2451 = vunpack.c.l.b16 %v2315
        %v2452 = vunpack.c.l.b16 %v2316
        %v2453 = vunpack.c.h.b16 %v2315
        %v2454 = vunpack.c.h.b16 %v2316
        %v2455 = vunpack.c.l.b16 %v2317
        %v2456 = vunpack.c.l.b16 %v2318
        %v2457 = vunpack.c.h.b16 %v2317
        %v2458 = vunpack.c.h.b16 %v2318
        %v2459 = vunpack.c.l.b16 %v2319
        %v2460 = vunpack.c.l.b16 %v2320
        %v2461 = vunpack.c.h.b16 %v2319
        %v2462 = vunpack.c.h.b16 %v2320
        %v2463 = vunpack.c.l.b16 %v2321
        %v2464 = vunpack.c.l.b16 %v2322
        %v2465 = vunpack.c.h.b16 %v2321
        %v2466 = vunpack.c.h.b16 %v2322
        %v2467 = vunpack.c.l.b16 %v2323
        %v2468 = vunpack.c.l.b16 %v2324
        %v2469 = vunpack.c.h.b16 %v2323
        %v2470 = vunpack.c.h.b16 %v2324
        %v2471 = vunpack.c.l.b16 %v2325
        %v2472 = vunpack.c.l.b16 %v2326
        %v2473 = vunpack.c.h.b16 %v2325
        %v2474 = vunpack.c.h.b16 %v2326
        %v2475 = vunpack.c.l.b16 %v2327
        %v2476 = vunpack.c.l.b16 %v2328
        %v2477 = vunpack.c.h.b16 %v2327
        %v2478 = vunpack.c.h.b16 %v2328
        %v2479 = vunpack.c.l.b16 %v2329
        %v2480 = vunpack.c.l.b16 %v2330
        %v2481 = vunpack.c.h.b16 %v2329
        %v2482 = vunpack.c.h.b16 %v2330
        %v2483 = vunpack.c.l.b16 %v2331
        %v2484 = vunpack.c.l.b16 %v2332
        %v2485 = vunpack.c.h.b16 %v2331
        %v2486 = vunpack.c.h.b16 %v2332
        %v2487 = vunpack.c.l.b16 %v2333
        %v2488 = vunpack.c.l.b16 %v2334
        %v2489 = vunpack.c.h.b16 %v2333
        %v2490 = vunpack.c.h.b16 %v2334
        %v2491 = vunpack.c.l.b16 %v2335
        %v2492 = vunpack.c.l.b16 %v2336
        %v2493 = vunpack.c.h.b16 %v2335
        %v2494 = vunpack.c.h.b16 %v2336
        %v2495 = vunpack.c.l.b16 %v2337
        %v2496 = vunpack.c.l.b16 %v2338
        %v2497 = vunpack.c.h.b16 %v2337
        %v2498 = vunpack.c.h.b16 %v2338
        %v2499 = vunpack.c.l.b16 %v2339
        %v2500 = vunpack.c.l.b16 %v2340
        %v2501 = vunpack.c.h.b16 %v2339
        %v2502 = vunpack.c.h.b16 %v2340
        %v2503 = vunpack.c.l.b16 %v2341
        %v2504 = vunpack.c.l.b16 %v2342
        %v2505 = vunpack.c.h.b16 %v2341
        %v2506 = vunpack.c.h.b16 %v2342
        %v2507 = vunpack.c.l.b16 %v2343
        %v2508 = vunpack.c.l.b16 %v2344
        %v2509 = vunpack.c.h.b16 %v2343
        %v2510 = vunpack.c.h.b16 %v2344
        %v2511 = vunpack.c.l.b16 %v2345
        %v2512 = vunpack.c.l.b16 %v2346
        %v2513 = vunpack.c.h.b16 %v2345
        %v2514 = vunpack.c.h.b16 %v2346
        %v2515 = vunpack.c.l.b16 %v2347
        %v2516 = vunpack.c.l.b16 %v2348
        %v2517 = vunpack.c.h.b16 %v2347
        %v2518 = vunpack.c.h.b16 %v2348
        %v2519 = vunpack.c.l.b16 %v2349
        %v2520 = vunpack.c.l.b16 %v2350
        %v2521 = vunpack.c.h.b16 %v2349
        %v2522 = vunpack.c.h.b16 %v2350
        %v2523 = vunpack.c.l.b16 %v2351
        %v2524 = vunpack.c.l.b16 %v2352
        %v2525 = vunpack.c.h.b16 %v2351
        %v2526 = vunpack.c.h.b16 %v2352
        %v2527 = vunpack.c.l.b16 %v2353
        %v2528 = vunpack.c.l.b16 %v2354
        %v2529 = vunpack.c.h.b16 %v2353
        %v2530 = vunpack.c.h.b16 %v2354
        %v2531 = vunpack.c.l.b16 %v2355
        %v2532 = vunpack.c.l.b16 %v2356
        %v2533 = vunpack.c.h.b16 %v2355
        %v2534 = vunpack.c.h.b16 %v2356
        %v2535 = vunpack.c.l.b16 %v2357
        %v2536 = vunpack.c.l.b16 %v2358
        %v2537 = vunpack.c.h.b16 %v2357
        %v2538 = vunpack.c.h.b16 %v2358
        %v2539 = vunpack.c.l.b16 %v2359
        %v2540 = vunpack.c.l.b16 %v2360
        %v2541 = vunpack.c.h.b16 %v2359
        %v2542 = vunpack.c.h.b16 %v2360
        %v2543 = vunpack.c.l.b16 %v2361
        %v2544 = vunpack.c.l.b16 %v2362
        %v2545 = vunpack.c.h.b16 %v2361
        %v2546 = vunpack.c.h.b16 %v2362
        %v2547 = vunpack.c.l.b16 %v2363
        %v2548 = vunpack.c.l.b16 %v2364
        %v2549 = vunpack.c.h.b16 %v2363
        %v2550 = vunpack.c.h.b16 %v2364
        %v2551 = vunpack.c.l.b16 %v2365
        %v2552 = vunpack.c.l.b16 %v2366
        %v2553 = vunpack.c.h.b16 %v2365
        %v2554 = vunpack.c.h.b16 %v2366
        %v2555 = vunpack.c.l.b16 %v2367
        %v2556 = vunpack.c.l.b16 %v2368
        %v2557 = vunpack.c.h.b16 %v2367
        %v2558 = vunpack.c.h.b16 %v2368
        %v2559 = vunpack.c.l.b16 %v2369
        %v2560 = vunpack.c.l.b16 %v2370
        %v2561 = vunpack.c.h.b16 %v2369
        %v2562 = vunpack.c.h.b16 %v2370
        %v2563 = vpack.c.b16 %v2436, %v2435
        %v2564 = vpack.c.b16 %v2438, %v2437
        %v2565 = vpack.c.b16 %v2440, %v2439
        %v2566 = vpack.c.b16 %v2442, %v2441
        %v2567 = vpack.c.b16 %v2444, %v2443
        %v2568 = vpack.c.b16 %v2446, %v2445
        %v2569 = vpack.c.b16 %v2448, %v2447
        %v2570 = vpack.c.b16 %v2450, %v2449
        %v2571 = vpack.c.b16 %v2452, %v2451
        %v2572 = vpack.c.b16 %v2454, %v2453
        %v2573 = vpack.c.b16 %v2456, %v2455
        %v2574 = vpack.c.b16 %v2458, %v2457
        %v2575 = vpack.c.b16 %v2460, %v2459
        %v2576 = vpack.c.b16 %v2462, %v2461
        %v2577 = vpack.c.b16 %v2464, %v2463
        %v2578 = vpack.c.b16 %v2466, %v2465
        %v2579 = vpack.c.b16 %v2468, %v2467
        %v2580 = vpack.c.b16 %v2470, %v2469
        %v2581 = vpack.c.b16 %v2472, %v2471
        %v2582 = vpack.c.b16 %v2474, %v2473
        %v2583 = vpack.c.b16 %v2476, %v2475
        %v2584 = vpack.c.b16 %v2478, %v2477
        %v2585 = vpack.c.b16 %v2480, %v2479
        %v2586 = vpack.c.b16 %v2482, %v2481
        %v2587 = vpack.c.b16 %v2484, %v2483
        %v2588 = vpack.c.b16 %v2486, %v2485
        %v2589 = vpack.c.b16 %v2488, %v2487
        %v2590 = vpack.c.b16 %v2490, %v2489
        %v2591 = vpack.c.b16 %v2492, %v2491
        %v2592 = vpack.c.b16 %v2494, %v2493
        %v2593 = vpack.c.b16 %v2496, %v2495
        %v2594 = vpack.c.b16 %v2498, %v2497
        %v2595 = vpack.c.b16 %v2500, %v2499
        %v2596 = vpack.c.b16 %v2502, %v2501
        %v2597 = vpack.c.b16 %v2504, %v2503
        %v2598 = vpack.c.b16 %v2506, %v2505
        %v2599 = vpack.c.b16 %v2508, %v2507
        %v2600 = vpack.c.b16 %v2510, %v2509
        %v2601 = vpack.c.b16 %v2512, %v2511
        %v2602 = vpack.c.b16 %v2514, %v2513
        %v2603 = vpack.c.b16 %v2516, %v2515
        %v2604 = vpack.c.b16 %v2518, %v2517
        %v2605 = vpack.c.b16 %v2520, %v2519
        %v2606 = vpack.c.b16 %v2522, %v2521
        %v2607 = vpack.c.b16 %v2524, %v2523
        %v2608 = vpack.c.b16 %v2526, %v2525
        %v2609 = vpack.c.b16 %v2528, %v2527
        %v2610 = vpack.c.b16 %v2530, %v2529
        %v2611 = vpack.c.b16 %v2532, %v2531
        %v2612 = vpack.c.b16 %v2534, %v2533
        %v2613 = vpack.c.b16 %v2536, %v2535
        %v2614 = vpack.c.b16 %v2538, %v2537
        %v2615 = vpack.c.b16 %v2540, %v2539
        %v2616 = vpack.c.b16 %v2542, %v2541
        %v2617 = vpack.c.b16 %v2544, %v2543
        %v2618 = vpack.c.b16 %v2546, %v2545
        %v2619 = vpack.c.b16 %v2548, %v2547
        %v2620 = vpack.c.b16 %v2550, %v2549
        %v2621 = vpack.c.b16 %v2552, %v2551
        %v2622 = vpack.c.b16 %v2554, %v2553
        %v2623 = vpack.c.b16 %v2556, %v2555
        %v2624 = vpack.c.b16 %v2558, %v2557
        %v2625 = vpack.c.b16 %v2560, %v2559
        %v2626 = vpack.c.b16 %v2562, %v2561
        %2691 = vst [vmem:[%s367] sm:$0xff] %v2563
        %2692 = vst [vmem:[%s367 + $0x8] sm:$0xff] %v2564
        %2693 = vst [vmem:[%s367 + $0x10] sm:$0xff] %v2565
        %2694 = vst [vmem:[%s367 + $0x18] sm:$0xff] %v2566
        %2695 = vst [vmem:[%s367 + $0x20] sm:$0xff] %v2567
        %2696 = vst [vmem:[%s367 + $0x28] sm:$0xff] %v2568
        %2697 = vst [vmem:[%s367 + $0x30] sm:$0xff] %v2569
        %2698 = vst [vmem:[%s367 + $0x38] sm:$0xff] %v2570
        %2699 = vst [vmem:[%s367 + $0x40] sm:$0xff] %v2571
        %2700 = vst [vmem:[%s367 + $0x48] sm:$0xff] %v2572
        %2701 = vst [vmem:[%s367 + $0x50] sm:$0xff] %v2573
        %2702 = vst [vmem:[%s367 + $0x58] sm:$0xff] %v2574
        %2703 = vst [vmem:[%s367 + $0x60] sm:$0xff] %v2575
        %2704 = vst [vmem:[%s367 + $0x68] sm:$0xff] %v2576
        %2705 = vst [vmem:[%s367 + $0x70] sm:$0xff] %v2577
        %2706 = vst [vmem:[%s367 + $0x78] sm:$0xff] %v2578
        %2707 = vst [vmem:[%s367 + $0x80] sm:$0xff] %v2579
        %2708 = vst [vmem:[%s367 + $0x88] sm:$0xff] %v2580
        %2709 = vst [vmem:[%s367 + $0x90] sm:$0xff] %v2581
        %2710 = vst [vmem:[%s367 + $0x98] sm:$0xff] %v2582
        %2711 = vst [vmem:[%s367 + $0xa0] sm:$0xff] %v2583
        %2712 = vst [vmem:[%s367 + $0xa8] sm:$0xff] %v2584
        %2713 = vst [vmem:[%s367 + $0xb0] sm:$0xff] %v2585
        %2714 = vst [vmem:[%s367 + $0xb8] sm:$0xff] %v2586
        %2715 = vst [vmem:[%s367 + $0xc0] sm:$0xff] %v2587
        %2716 = vst [vmem:[%s367 + $0xc8] sm:$0xff] %v2588
        %2717 = vst [vmem:[%s367 + $0xd0] sm:$0xff] %v2589
        %2718 = vst [vmem:[%s367 + $0xd8] sm:$0xff] %v2590
        %2719 = vst [vmem:[%s367 + $0xe0] sm:$0xff] %v2591
        %2720 = vst [vmem:[%s367 + $0xe8] sm:$0xff] %v2592
        %2721 = vst [vmem:[%s367 + $0xf0] sm:$0xff] %v2593
        %2722 = vst [vmem:[%s367 + $0xf8] sm:$0xff] %v2594
        %2723 = vst [vmem:[%s367 + $0x100] sm:$0xff] %v2595
        %2724 = vst [vmem:[%s367 + $0x108] sm:$0xff] %v2596
        %2725 = vst [vmem:[%s367 + $0x110] sm:$0xff] %v2597
        %2726 = vst [vmem:[%s367 + $0x118] sm:$0xff] %v2598
        %2727 = vst [vmem:[%s367 + $0x120] sm:$0xff] %v2599
        %2728 = vst [vmem:[%s367 + $0x128] sm:$0xff] %v2600
        %2729 = vst [vmem:[%s367 + $0x130] sm:$0xff] %v2601
        %2730 = vst [vmem:[%s367 + $0x138] sm:$0xff] %v2602
        %2731 = vst [vmem:[%s367 + $0x140] sm:$0xff] %v2603
        %2732 = vst [vmem:[%s367 + $0x148] sm:$0xff] %v2604
        %2733 = vst [vmem:[%s367 + $0x150] sm:$0xff] %v2605
        %2734 = vst [vmem:[%s367 + $0x158] sm:$0xff] %v2606
        %2735 = vst [vmem:[%s367 + $0x160] sm:$0xff] %v2607
        %2736 = vst [vmem:[%s367 + $0x168] sm:$0xff] %v2608
        %2737 = vst [vmem:[%s367 + $0x170] sm:$0xff] %v2609
        %2738 = vst [vmem:[%s367 + $0x178] sm:$0xff] %v2610
        %2739 = vst [vmem:[%s367 + $0x180] sm:$0xff] %v2611
        %2740 = vst [vmem:[%s367 + $0x188] sm:$0xff] %v2612
        %2741 = vst [vmem:[%s367 + $0x190] sm:$0xff] %v2613
        %2742 = vst [vmem:[%s367 + $0x198] sm:$0xff] %v2614
        %2743 = vst [vmem:[%s367 + $0x1a0] sm:$0xff] %v2615
        %2744 = vst [vmem:[%s367 + $0x1a8] sm:$0xff] %v2616
        %2745 = vst [vmem:[%s367 + $0x1b0] sm:$0xff] %v2617
        %2746 = vst [vmem:[%s367 + $0x1b8] sm:$0xff] %v2618
        %2747 = vst [vmem:[%s367 + $0x1c0] sm:$0xff] %v2619
        %2748 = vst [vmem:[%s367 + $0x1c8] sm:$0xff] %v2620
        %2749 = vst [vmem:[%s367 + $0x1d0] sm:$0xff] %v2621
        %2750 = vst [vmem:[%s367 + $0x1d8] sm:$0xff] %v2622
        %2751 = vst [vmem:[%s367 + $0x1e0] sm:$0xff] %v2623
        %2752 = vst [vmem:[%s367 + $0x1e8] sm:$0xff] %v2624
        %2753 = vst [vmem:[%s367 + $0x1f0] sm:$0xff] %v2625
        %2754 = vst [vmem:[%s367 + $0x1f8] sm:$0xff] %v2626
        %v2755 = vld [vmem:[#allocation8] sm:$0xff]
        %v2756 = vld [vmem:[#allocation8 + $0x8] sm:$0xff]
        %v2757 = vld [vmem:[#allocation8 + $0x10] sm:$0xff]
        %v2758 = vld [vmem:[#allocation8 + $0x18] sm:$0xff]
        %v2759 = vld [vmem:[#allocation8 + $0x20] sm:$0xff]
        %v2760 = vld [vmem:[#allocation8 + $0x28] sm:$0xff]
        %v2761 = vld [vmem:[#allocation8 + $0x30] sm:$0xff]
        %v2762 = vld [vmem:[#allocation8 + $0x38] sm:$0xff]
        %v2763 = vld [vmem:[#allocation8 + $0x40] sm:$0xff]
        %v2764 = vld [vmem:[#allocation8 + $0x48] sm:$0xff]
        %v2765 = vld [vmem:[#allocation8 + $0x50] sm:$0xff]
        %v2766 = vld [vmem:[#allocation8 + $0x58] sm:$0xff]
        %v2767 = vld [vmem:[#allocation8 + $0x60] sm:$0xff]
        %v2768 = vld [vmem:[#allocation8 + $0x68] sm:$0xff]
        %v2769 = vld [vmem:[#allocation8 + $0x70] sm:$0xff]
        %v2770 = vld [vmem:[#allocation8 + $0x78] sm:$0xff]
        %v2771 = vld [vmem:[#allocation8 + $0x80] sm:$0xff]
        %v2772 = vld [vmem:[#allocation8 + $0x88] sm:$0xff]
        %v2773 = vld [vmem:[#allocation8 + $0x90] sm:$0xff]
        %v2774 = vld [vmem:[#allocation8 + $0x98] sm:$0xff]
        %v2775 = vld [vmem:[#allocation8 + $0xa0] sm:$0xff]
        %v2776 = vld [vmem:[#allocation8 + $0xa8] sm:$0xff]
        %v2777 = vld [vmem:[#allocation8 + $0xb0] sm:$0xff]
        %v2778 = vld [vmem:[#allocation8 + $0xb8] sm:$0xff]
        %v2779 = vld [vmem:[#allocation8 + $0xc0] sm:$0xff]
        %v2780 = vld [vmem:[#allocation8 + $0xc8] sm:$0xff]
        %v2781 = vld [vmem:[#allocation8 + $0xd0] sm:$0xff]
        %v2782 = vld [vmem:[#allocation8 + $0xd8] sm:$0xff]
        %v2783 = vld [vmem:[#allocation8 + $0xe0] sm:$0xff]
        %v2784 = vld [vmem:[#allocation8 + $0xe8] sm:$0xff]
        %v2785 = vld [vmem:[#allocation8 + $0xf0] sm:$0xff]
        %v2786 = vld [vmem:[#allocation8 + $0xf8] sm:$0xff]
        %v2819 = vunpack.c.l.b16 %v2755
        %v2820 = vunpack.c.h.b16 %v2755
        %v2821 = vunpack.c.l.b16 %v2756
        %v2822 = vunpack.c.h.b16 %v2756
        %v2823 = vunpack.c.l.b16 %v2757
        %v2824 = vunpack.c.h.b16 %v2757
        %v2825 = vunpack.c.l.b16 %v2758
        %v2826 = vunpack.c.h.b16 %v2758
        %v2827 = vunpack.c.l.b16 %v2759
        %v2828 = vunpack.c.h.b16 %v2759
        %v2829 = vunpack.c.l.b16 %v2760
        %v2830 = vunpack.c.h.b16 %v2760
        %v2831 = vunpack.c.l.b16 %v2761
        %v2832 = vunpack.c.h.b16 %v2761
        %v2833 = vunpack.c.l.b16 %v2762
        %v2834 = vunpack.c.h.b16 %v2762
        %v2835 = vunpack.c.l.b16 %v2763
        %v2836 = vunpack.c.h.b16 %v2763
        %v2837 = vunpack.c.l.b16 %v2764
        %v2838 = vunpack.c.h.b16 %v2764
        %v2839 = vunpack.c.l.b16 %v2765
        %v2840 = vunpack.c.h.b16 %v2765
        %v2841 = vunpack.c.l.b16 %v2766
        %v2842 = vunpack.c.h.b16 %v2766
        %v2843 = vunpack.c.l.b16 %v2767
        %v2844 = vunpack.c.h.b16 %v2767
        %v2845 = vunpack.c.l.b16 %v2768
        %v2846 = vunpack.c.h.b16 %v2768
        %v2847 = vunpack.c.l.b16 %v2769
        %v2848 = vunpack.c.h.b16 %v2769
        %v2849 = vunpack.c.l.b16 %v2770
        %v2850 = vunpack.c.h.b16 %v2770
        %v2851 = vunpack.c.l.b16 %v2771
        %v2852 = vunpack.c.h.b16 %v2771
        %v2853 = vunpack.c.l.b16 %v2772
        %v2854 = vunpack.c.h.b16 %v2772
        %v2855 = vunpack.c.l.b16 %v2773
        %v2856 = vunpack.c.h.b16 %v2773
        %v2857 = vunpack.c.l.b16 %v2774
        %v2858 = vunpack.c.h.b16 %v2774
        %v2859 = vunpack.c.l.b16 %v2775
        %v2860 = vunpack.c.h.b16 %v2775
        %v2861 = vunpack.c.l.b16 %v2776
        %v2862 = vunpack.c.h.b16 %v2776
        %v2863 = vunpack.c.l.b16 %v2777
        %v2864 = vunpack.c.h.b16 %v2777
        %v2865 = vunpack.c.l.b16 %v2778
        %v2866 = vunpack.c.h.b16 %v2778
        %v2867 = vunpack.c.l.b16 %v2779
        %v2868 = vunpack.c.h.b16 %v2779
        %v2869 = vunpack.c.l.b16 %v2780
        %v2870 = vunpack.c.h.b16 %v2780
        %v2871 = vunpack.c.l.b16 %v2781
        %v2872 = vunpack.c.h.b16 %v2781
        %v2873 = vunpack.c.l.b16 %v2782
        %v2874 = vunpack.c.h.b16 %v2782
        %v2875 = vunpack.c.l.b16 %v2783
        %v2876 = vunpack.c.h.b16 %v2783
        %v2877 = vunpack.c.l.b16 %v2784
        %v2878 = vunpack.c.h.b16 %v2784
        %v2879 = vunpack.c.l.b16 %v2785
        %v2880 = vunpack.c.h.b16 %v2785
        %v2881 = vunpack.c.l.b16 %v2786
        %v2882 = vunpack.c.h.b16 %v2786
        %v2883 = vpack.c.b16 %v2821, %v2819
        %v2884 = vpack.c.b16 %v2822, %v2820
        %v2885 = vpack.c.b16 %v2825, %v2823
        %v2886 = vpack.c.b16 %v2826, %v2824
        %v2887 = vpack.c.b16 %v2829, %v2827
        %v2888 = vpack.c.b16 %v2830, %v2828
        %v2889 = vpack.c.b16 %v2833, %v2831
        %v2890 = vpack.c.b16 %v2834, %v2832
        %v2891 = vpack.c.b16 %v2837, %v2835
        %v2892 = vpack.c.b16 %v2838, %v2836
        %v2893 = vpack.c.b16 %v2841, %v2839
        %v2894 = vpack.c.b16 %v2842, %v2840
        %v2895 = vpack.c.b16 %v2845, %v2843
        %v2896 = vpack.c.b16 %v2846, %v2844
        %v2897 = vpack.c.b16 %v2849, %v2847
        %v2898 = vpack.c.b16 %v2850, %v2848
        %v2899 = vpack.c.b16 %v2853, %v2851
        %v2900 = vpack.c.b16 %v2854, %v2852
        %v2901 = vpack.c.b16 %v2857, %v2855
        %v2902 = vpack.c.b16 %v2858, %v2856
        %v2903 = vpack.c.b16 %v2861, %v2859
        %v2904 = vpack.c.b16 %v2862, %v2860
        %v2905 = vpack.c.b16 %v2865, %v2863
        %v2906 = vpack.c.b16 %v2866, %v2864
        %v2907 = vpack.c.b16 %v2869, %v2867
        %v2908 = vpack.c.b16 %v2870, %v2868
        %v2909 = vpack.c.b16 %v2873, %v2871
        %v2910 = vpack.c.b16 %v2874, %v2872
        %v2911 = vpack.c.b16 %v2877, %v2875
        %v2912 = vpack.c.b16 %v2878, %v2876
        %v2913 = vpack.c.b16 %v2881, %v2879
        %v2914 = vpack.c.b16 %v2882, %v2880
        %2947 = vmatprep.subr.bf16.mxu0 %v2898
        %2948 = vmatpush1.bf16.msra.mxu0 %v2897
        %2949 = vmatprep.subr.bf16.mxu0 %v2896
        %2950 = vmatpush1.bf16.msra.mxu0 %v2895
        %2951 = vmatprep.subr.bf16.mxu0 %v2894
        %2952 = vmatpush1.bf16.msra.mxu0 %v2893
        %2953 = vmatprep.subr.bf16.mxu0 %v2892
        %2954 = vmatpush1.bf16.msra.mxu0 %v2891
        %2955 = vmatprep.subr.bf16.mxu0 %v2890
        %2956 = vmatpush1.bf16.msra.mxu0 %v2889
        %2957 = vmatprep.subr.bf16.mxu0 %v2888
        %2958 = vmatpush1.bf16.msra.mxu0 %v2887
        %2959 = vmatprep.subr.bf16.mxu0 %v2886
        %2960 = vmatpush1.bf16.msra.mxu0 %v2885
        %2961 = vmatprep.subr.bf16.mxu0 %v2884
        %2962 = vmatpush1.bf16.msra.mxu0 %v2883
        %2963 = vmatprep.subr.bf16.mxu0 %v2914
        %2964 = vmatpush2.bf16.msra.mxu0 %v2913
        %2965 = vmatprep.subr.bf16.mxu0 %v2912
        %2966 = vmatpush2.bf16.msra.mxu0 %v2911
        %2967 = vmatprep.subr.bf16.mxu0 %v2910
        %2968 = vmatpush2.bf16.msra.mxu0 %v2909
        %2969 = vmatprep.subr.bf16.mxu0 %v2908
        %2970 = vmatpush2.bf16.msra.mxu0 %v2907
        %2971 = vmatprep.subr.bf16.mxu0 %v2906
        %2972 = vmatpush2.bf16.msra.mxu0 %v2905
        %2973 = vmatprep.subr.bf16.mxu0 %v2904
        %2974 = vmatpush2.bf16.msra.mxu0 %v2903
        %2975 = vmatprep.subr.bf16.mxu0 %v2902
        %2976 = vmatpush2.bf16.msra.mxu0 %v2901
        %2977 = vmatprep.subr.bf16.mxu0 %v2900
        %2978 = vmatpush2.bf16.msra.mxu0 %v2899
        %2979 = vmatprep.mubr.bf16.mxu0 %v674
        %2980 = vmatmul.mubr.bf16.gmra.mxu0 %v673
        %v2981 = vpop.f32.mrf.mxu0
        %v2982 = vadd.f32 0.0, %v2981
        %v2983 = vpop.f32.mrf.mxu0
        %v2984 = vadd.f32 0.0, %v2983
        %v2985 = vpop.f32.mrf.mxu0
        %v2986 = vadd.f32 0.0, %v2985
        %v2987 = vpop.f32.mrf.mxu0
        %v2988 = vadd.f32 0.0, %v2987
        %2989 = vmatprep.mubr.bf16.mxu0 %v676
        %2990 = vmatmul.mubr.bf16.gmra.mxu0 %v675
        %v2991 = vpop.f32.mrf.mxu0
        %v2992 = vadd.f32 0.0, %v2991
        %v2993 = vpop.f32.mrf.mxu0
        %v2994 = vadd.f32 0.0, %v2993
        %v2995 = vpop.f32.mrf.mxu0
        %v2996 = vadd.f32 0.0, %v2995
        %v2997 = vpop.f32.mrf.mxu0
        %v2998 = vadd.f32 0.0, %v2997
        %2999 = vmatprep.mubr.bf16.mxu0 %v678
        %3000 = vmatmul.mubr.bf16.gmra.mxu0 %v677
        %v3001 = vpop.f32.mrf.mxu0
        %v3002 = vadd.f32 0.0, %v3001
        %v3003 = vpop.f32.mrf.mxu0
        %v3004 = vadd.f32 0.0, %v3003
        %v3005 = vpop.f32.mrf.mxu0
        %v3006 = vadd.f32 0.0, %v3005
        %v3007 = vpop.f32.mrf.mxu0
        %v3008 = vadd.f32 0.0, %v3007
        %3009 = vmatprep.mubr.bf16.mxu0 %v680
        %3010 = vmatmul.mubr.bf16.gmra.mxu0 %v679
        %v3011 = vpop.f32.mrf.mxu0
        %v3012 = vadd.f32 0.0, %v3011
        %v3013 = vpop.f32.mrf.mxu0
        %v3014 = vadd.f32 0.0, %v3013
        %v3015 = vpop.f32.mrf.mxu0
        %v3016 = vadd.f32 0.0, %v3015
        %v3017 = vpop.f32.mrf.mxu0
        %v3018 = vadd.f32 0.0, %v3017
        %3019 = vmatprep.mubr.bf16.mxu0 %v682
        %3020 = vmatmul.mubr.bf16.gmra.mxu0 %v681
        %v3021 = vpop.f32.mrf.mxu0
        %v3022 = vadd.f32 0.0, %v3021
        %v3023 = vpop.f32.mrf.mxu0
        %v3024 = vadd.f32 0.0, %v3023
        %v3025 = vpop.f32.mrf.mxu0
        %v3026 = vadd.f32 0.0, %v3025
        %v3027 = vpop.f32.mrf.mxu0
        %v3028 = vadd.f32 0.0, %v3027
        %3029 = vmatprep.mubr.bf16.mxu0 %v684
        %3030 = vmatmul.mubr.bf16.gmra.mxu0 %v683
        %v3031 = vpop.f32.mrf.mxu0
        %v3032 = vadd.f32 0.0, %v3031
        %v3033 = vpop.f32.mrf.mxu0
        %v3034 = vadd.f32 0.0, %v3033
        %v3035 = vpop.f32.mrf.mxu0
        %v3036 = vadd.f32 0.0, %v3035
        %v3037 = vpop.f32.mrf.mxu0
        %v3038 = vadd.f32 0.0, %v3037
        %3039 = vmatprep.mubr.bf16.mxu0 %v686
        %3040 = vmatmul.mubr.bf16.gmra.mxu0 %v685
        %v3041 = vpop.f32.mrf.mxu0
        %v3042 = vadd.f32 0.0, %v3041
        %v3043 = vpop.f32.mrf.mxu0
        %v3044 = vadd.f32 0.0, %v3043
        %v3045 = vpop.f32.mrf.mxu0
        %v3046 = vadd.f32 0.0, %v3045
        %v3047 = vpop.f32.mrf.mxu0
        %v3048 = vadd.f32 0.0, %v3047
        %3049 = vmatprep.mubr.bf16.mxu0 %v688
        %3050 = vmatmul.mubr.bf16.gmra.mxu0 %v687
        %v3051 = vpop.f32.mrf.mxu0
        %v3052 = vadd.f32 0.0, %v3051
        %v3053 = vpop.f32.mrf.mxu0
        %v3054 = vadd.f32 0.0, %v3053
        %v3055 = vpop.f32.mrf.mxu0
        %v3056 = vadd.f32 0.0, %v3055
        %v3057 = vpop.f32.mrf.mxu0
        %v3058 = vadd.f32 0.0, %v3057
        %3059 = vmatprep.mubr.bf16.mxu0 %v690
        %3060 = vmatmul.mubr.bf16.gmra.mxu0 %v689
        %v3061 = vpop.f32.mrf.mxu0
        %v3062 = vadd.f32 0.0, %v3061
        %v3063 = vpop.f32.mrf.mxu0
        %v3064 = vadd.f32 0.0, %v3063
        %v3065 = vpop.f32.mrf.mxu0
        %v3066 = vadd.f32 0.0, %v3065
        %v3067 = vpop.f32.mrf.mxu0
        %v3068 = vadd.f32 0.0, %v3067
        %3069 = vmatprep.mubr.bf16.mxu0 %v692
        %3070 = vmatmul.mubr.bf16.gmra.mxu0 %v691
        %v3071 = vpop.f32.mrf.mxu0
        %v3072 = vadd.f32 0.0, %v3071
        %v3073 = vpop.f32.mrf.mxu0
        %v3074 = vadd.f32 0.0, %v3073
        %v3075 = vpop.f32.mrf.mxu0
        %v3076 = vadd.f32 0.0, %v3075
        %v3077 = vpop.f32.mrf.mxu0
        %v3078 = vadd.f32 0.0, %v3077
        %3079 = vmatprep.mubr.bf16.mxu0 %v694
        %3080 = vmatmul.mubr.bf16.gmra.mxu0 %v693
        %v3081 = vpop.f32.mrf.mxu0
        %v3082 = vadd.f32 0.0, %v3081
        %v3083 = vpop.f32.mrf.mxu0
        %v3084 = vadd.f32 0.0, %v3083
        %v3085 = vpop.f32.mrf.mxu0
        %v3086 = vadd.f32 0.0, %v3085
        %v3087 = vpop.f32.mrf.mxu0
        %v3088 = vadd.f32 0.0, %v3087
        %3089 = vmatprep.mubr.bf16.mxu0 %v696
        %3090 = vmatmul.mubr.bf16.gmra.mxu0 %v695
        %v3091 = vpop.f32.mrf.mxu0
        %v3092 = vadd.f32 0.0, %v3091
        %v3093 = vpop.f32.mrf.mxu0
        %v3094 = vadd.f32 0.0, %v3093
        %v3095 = vpop.f32.mrf.mxu0
        %v3096 = vadd.f32 0.0, %v3095
        %v3097 = vpop.f32.mrf.mxu0
        %v3098 = vadd.f32 0.0, %v3097
        %3099 = vmatprep.mubr.bf16.mxu0 %v698
        %3100 = vmatmul.mubr.bf16.gmra.mxu0 %v697
        %v3101 = vpop.f32.mrf.mxu0
        %v3102 = vadd.f32 0.0, %v3101
        %v3103 = vpop.f32.mrf.mxu0
        %v3104 = vadd.f32 0.0, %v3103
        %v3105 = vpop.f32.mrf.mxu0
        %v3106 = vadd.f32 0.0, %v3105
        %v3107 = vpop.f32.mrf.mxu0
        %v3108 = vadd.f32 0.0, %v3107
        %3109 = vmatprep.mubr.bf16.mxu0 %v700
        %3110 = vmatmul.mubr.bf16.gmra.mxu0 %v699
        %v3111 = vpop.f32.mrf.mxu0
        %v3112 = vadd.f32 0.0, %v3111
        %v3113 = vpop.f32.mrf.mxu0
        %v3114 = vadd.f32 0.0, %v3113
        %v3115 = vpop.f32.mrf.mxu0
        %v3116 = vadd.f32 0.0, %v3115
        %v3117 = vpop.f32.mrf.mxu0
        %v3118 = vadd.f32 0.0, %v3117
        %3119 = vmatprep.mubr.bf16.mxu0 %v702
        %3120 = vmatmul.mubr.bf16.gmra.mxu0 %v701
        %v3121 = vpop.f32.mrf.mxu0
        %v3122 = vadd.f32 0.0, %v3121
        %v3123 = vpop.f32.mrf.mxu0
        %v3124 = vadd.f32 0.0, %v3123
        %v3125 = vpop.f32.mrf.mxu0
        %v3126 = vadd.f32 0.0, %v3125
        %v3127 = vpop.f32.mrf.mxu0
        %v3128 = vadd.f32 0.0, %v3127
        %3129 = vmatprep.mubr.bf16.mxu0 %v704
        %3130 = vmatmul.mubr.bf16.gmra.mxu0 %v703
        %v3131 = vpop.f32.mrf.mxu0
        %v3132 = vadd.f32 0.0, %v3131
        %v3133 = vpop.f32.mrf.mxu0
        %v3134 = vadd.f32 0.0, %v3133
        %v3135 = vpop.f32.mrf.mxu0
        %v3136 = vadd.f32 0.0, %v3135
        %v3137 = vpop.f32.mrf.mxu0
        %v3138 = vadd.f32 0.0, %v3137
        %3139 = vmatprep.mubr.bf16.mxu0 %v706
        %3140 = vmatmul.mubr.bf16.gmra.mxu0 %v705
        %v3141 = vpop.f32.mrf.mxu0
        %v3142 = vadd.f32 0.0, %v3141
        %v3143 = vpop.f32.mrf.mxu0
        %v3144 = vadd.f32 0.0, %v3143
        %v3145 = vpop.f32.mrf.mxu0
        %v3146 = vadd.f32 0.0, %v3145
        %v3147 = vpop.f32.mrf.mxu0
        %v3148 = vadd.f32 0.0, %v3147
        %3149 = vmatprep.mubr.bf16.mxu0 %v708
        %3150 = vmatmul.mubr.bf16.gmra.mxu0 %v707
        %v3151 = vpop.f32.mrf.mxu0
        %v3152 = vadd.f32 0.0, %v3151
        %v3153 = vpop.f32.mrf.mxu0
        %v3154 = vadd.f32 0.0, %v3153
        %v3155 = vpop.f32.mrf.mxu0
        %v3156 = vadd.f32 0.0, %v3155
        %v3157 = vpop.f32.mrf.mxu0
        %v3158 = vadd.f32 0.0, %v3157
        %3159 = vmatprep.mubr.bf16.mxu0 %v710
        %3160 = vmatmul.mubr.bf16.gmra.mxu0 %v709
        %v3161 = vpop.f32.mrf.mxu0
        %v3162 = vadd.f32 0.0, %v3161
        %v3163 = vpop.f32.mrf.mxu0
        %v3164 = vadd.f32 0.0, %v3163
        %v3165 = vpop.f32.mrf.mxu0
        %v3166 = vadd.f32 0.0, %v3165
        %v3167 = vpop.f32.mrf.mxu0
        %v3168 = vadd.f32 0.0, %v3167
        %3169 = vmatprep.mubr.bf16.mxu0 %v712
        %3170 = vmatmul.mubr.bf16.gmra.mxu0 %v711
        %v3171 = vpop.f32.mrf.mxu0
        %v3172 = vadd.f32 0.0, %v3171
        %v3173 = vpop.f32.mrf.mxu0
        %v3174 = vadd.f32 0.0, %v3173
        %v3175 = vpop.f32.mrf.mxu0
        %v3176 = vadd.f32 0.0, %v3175
        %v3177 = vpop.f32.mrf.mxu0
        %v3178 = vadd.f32 0.0, %v3177
        %3179 = vmatprep.mubr.bf16.mxu0 %v714
        %3180 = vmatmul.mubr.bf16.gmra.mxu0 %v713
        %v3181 = vpop.f32.mrf.mxu0
        %v3182 = vadd.f32 0.0, %v3181
        %v3183 = vpop.f32.mrf.mxu0
        %v3184 = vadd.f32 0.0, %v3183
        %v3185 = vpop.f32.mrf.mxu0
        %v3186 = vadd.f32 0.0, %v3185
        %v3187 = vpop.f32.mrf.mxu0
        %v3188 = vadd.f32 0.0, %v3187
        %3189 = vmatprep.mubr.bf16.mxu0 %v716
        %3190 = vmatmul.mubr.bf16.gmra.mxu0 %v715
        %v3191 = vpop.f32.mrf.mxu0
        %v3192 = vadd.f32 0.0, %v3191
        %v3193 = vpop.f32.mrf.mxu0
        %v3194 = vadd.f32 0.0, %v3193
        %v3195 = vpop.f32.mrf.mxu0
        %v3196 = vadd.f32 0.0, %v3195
        %v3197 = vpop.f32.mrf.mxu0
        %v3198 = vadd.f32 0.0, %v3197
        %3199 = vmatprep.mubr.bf16.mxu0 %v718
        %3200 = vmatmul.mubr.bf16.gmra.mxu0 %v717
        %v3201 = vpop.f32.mrf.mxu0
        %v3202 = vadd.f32 0.0, %v3201
        %v3203 = vpop.f32.mrf.mxu0
        %v3204 = vadd.f32 0.0, %v3203
        %v3205 = vpop.f32.mrf.mxu0
        %v3206 = vadd.f32 0.0, %v3205
        %v3207 = vpop.f32.mrf.mxu0
        %v3208 = vadd.f32 0.0, %v3207
        %3209 = vmatprep.mubr.bf16.mxu0 %v720
        %3210 = vmatmul.mubr.bf16.gmra.mxu0 %v719
        %v3211 = vpop.f32.mrf.mxu0
        %v3212 = vadd.f32 0.0, %v3211
        %v3213 = vpop.f32.mrf.mxu0
        %v3214 = vadd.f32 0.0, %v3213
        %v3215 = vpop.f32.mrf.mxu0
        %v3216 = vadd.f32 0.0, %v3215
        %v3217 = vpop.f32.mrf.mxu0
        %v3218 = vadd.f32 0.0, %v3217
        %3219 = vmatprep.mubr.bf16.mxu0 %v722
        %3220 = vmatmul.mubr.bf16.gmra.mxu0 %v721
        %v3221 = vpop.f32.mrf.mxu0
        %v3222 = vadd.f32 0.0, %v3221
        %v3223 = vpop.f32.mrf.mxu0
        %v3224 = vadd.f32 0.0, %v3223
        %v3225 = vpop.f32.mrf.mxu0
        %v3226 = vadd.f32 0.0, %v3225
        %v3227 = vpop.f32.mrf.mxu0
        %v3228 = vadd.f32 0.0, %v3227
        %3229 = vmatprep.mubr.bf16.mxu0 %v724
        %3230 = vmatmul.mubr.bf16.gmra.mxu0 %v723
        %v3231 = vpop.f32.mrf.mxu0
        %v3232 = vadd.f32 0.0, %v3231
        %v3233 = vpop.f32.mrf.mxu0
        %v3234 = vadd.f32 0.0, %v3233
        %v3235 = vpop.f32.mrf.mxu0
        %v3236 = vadd.f32 0.0, %v3235
        %v3237 = vpop.f32.mrf.mxu0
        %v3238 = vadd.f32 0.0, %v3237
        %3239 = vmatprep.mubr.bf16.mxu0 %v726
        %3240 = vmatmul.mubr.bf16.gmra.mxu0 %v725
        %v3241 = vpop.f32.mrf.mxu0
        %v3242 = vadd.f32 0.0, %v3241
        %v3243 = vpop.f32.mrf.mxu0
        %v3244 = vadd.f32 0.0, %v3243
        %v3245 = vpop.f32.mrf.mxu0
        %v3246 = vadd.f32 0.0, %v3245
        %v3247 = vpop.f32.mrf.mxu0
        %v3248 = vadd.f32 0.0, %v3247
        %3249 = vmatprep.mubr.bf16.mxu0 %v728
        %3250 = vmatmul.mubr.bf16.gmra.mxu0 %v727
        %v3251 = vpop.f32.mrf.mxu0
        %v3252 = vadd.f32 0.0, %v3251
        %v3253 = vpop.f32.mrf.mxu0
        %v3254 = vadd.f32 0.0, %v3253
        %v3255 = vpop.f32.mrf.mxu0
        %v3256 = vadd.f32 0.0, %v3255
        %v3257 = vpop.f32.mrf.mxu0
        %v3258 = vadd.f32 0.0, %v3257
        %3259 = vmatprep.mubr.bf16.mxu0 %v730
        %3260 = vmatmul.mubr.bf16.gmra.mxu0 %v729
        %v3261 = vpop.f32.mrf.mxu0
        %v3262 = vadd.f32 0.0, %v3261
        %v3263 = vpop.f32.mrf.mxu0
        %v3264 = vadd.f32 0.0, %v3263
        %v3265 = vpop.f32.mrf.mxu0
        %v3266 = vadd.f32 0.0, %v3265
        %v3267 = vpop.f32.mrf.mxu0
        %v3268 = vadd.f32 0.0, %v3267
        %3269 = vmatprep.mubr.bf16.mxu0 %v732
        %3270 = vmatmul.mubr.bf16.gmra.mxu0 %v731
        %v3271 = vpop.f32.mrf.mxu0
        %v3272 = vadd.f32 0.0, %v3271
        %v3273 = vpop.f32.mrf.mxu0
        %v3274 = vadd.f32 0.0, %v3273
        %v3275 = vpop.f32.mrf.mxu0
        %v3276 = vadd.f32 0.0, %v3275
        %v3277 = vpop.f32.mrf.mxu0
        %v3278 = vadd.f32 0.0, %v3277
        %3279 = vmatprep.mubr.bf16.mxu0 %v734
        %3280 = vmatmul.mubr.bf16.gmra.mxu0 %v733
        %v3281 = vpop.f32.mrf.mxu0
        %v3282 = vadd.f32 0.0, %v3281
        %v3283 = vpop.f32.mrf.mxu0
        %v3284 = vadd.f32 0.0, %v3283
        %v3285 = vpop.f32.mrf.mxu0
        %v3286 = vadd.f32 0.0, %v3285
        %v3287 = vpop.f32.mrf.mxu0
        %v3288 = vadd.f32 0.0, %v3287
        %3289 = vmatprep.mubr.bf16.mxu0 %v736
        %3290 = vmatmul.mubr.bf16.gmra.mxu0 %v735
        %v3291 = vpop.f32.mrf.mxu0
        %v3292 = vadd.f32 0.0, %v3291
        %v3293 = vpop.f32.mrf.mxu0
        %v3294 = vadd.f32 0.0, %v3293
        %v3295 = vpop.f32.mrf.mxu0
        %v3296 = vadd.f32 0.0, %v3295
        %v3297 = vpop.f32.mrf.mxu0
        %v3298 = vadd.f32 0.0, %v3297
        %3299 = vdwg.mxu0
        %v3300 = vpack.c.bf16 %v2986, %v2982
        %v3301 = vpack.c.bf16 %v2988, %v2984
        %v3302 = vpack.c.bf16 %v2996, %v2992
        %v3303 = vpack.c.bf16 %v2998, %v2994
        %v3304 = vpack.c.bf16 %v3006, %v3002
        %v3305 = vpack.c.bf16 %v3008, %v3004
        %v3306 = vpack.c.bf16 %v3016, %v3012
        %v3307 = vpack.c.bf16 %v3018, %v3014
        %v3308 = vpack.c.bf16 %v3026, %v3022
        %v3309 = vpack.c.bf16 %v3028, %v3024
        %v3310 = vpack.c.bf16 %v3036, %v3032
        %v3311 = vpack.c.bf16 %v3038, %v3034
        %v3312 = vpack.c.bf16 %v3046, %v3042
        %v3313 = vpack.c.bf16 %v3048, %v3044
        %v3314 = vpack.c.bf16 %v3056, %v3052
        %v3315 = vpack.c.bf16 %v3058, %v3054
        %v3316 = vpack.c.bf16 %v3066, %v3062
        %v3317 = vpack.c.bf16 %v3068, %v3064
        %v3318 = vpack.c.bf16 %v3076, %v3072
        %v3319 = vpack.c.bf16 %v3078, %v3074
        %v3320 = vpack.c.bf16 %v3086, %v3082
        %v3321 = vpack.c.bf16 %v3088, %v3084
        %v3322 = vpack.c.bf16 %v3096, %v3092
        %v3323 = vpack.c.bf16 %v3098, %v3094
        %v3324 = vpack.c.bf16 %v3106, %v3102
        %v3325 = vpack.c.bf16 %v3108, %v3104
        %v3326 = vpack.c.bf16 %v3116, %v3112
        %v3327 = vpack.c.bf16 %v3118, %v3114
        %v3328 = vpack.c.bf16 %v3126, %v3122
        %v3329 = vpack.c.bf16 %v3128, %v3124
        %v3330 = vpack.c.bf16 %v3136, %v3132
        %v3331 = vpack.c.bf16 %v3138, %v3134
        %v3332 = vpack.c.bf16 %v3146, %v3142
        %v3333 = vpack.c.bf16 %v3148, %v3144
        %v3334 = vpack.c.bf16 %v3156, %v3152
        %v3335 = vpack.c.bf16 %v3158, %v3154
        %v3336 = vpack.c.bf16 %v3166, %v3162
        %v3337 = vpack.c.bf16 %v3168, %v3164
        %v3338 = vpack.c.bf16 %v3176, %v3172
        %v3339 = vpack.c.bf16 %v3178, %v3174
        %v3340 = vpack.c.bf16 %v3186, %v3182
        %v3341 = vpack.c.bf16 %v3188, %v3184
        %v3342 = vpack.c.bf16 %v3196, %v3192
        %v3343 = vpack.c.bf16 %v3198, %v3194
        %v3344 = vpack.c.bf16 %v3206, %v3202
        %v3345 = vpack.c.bf16 %v3208, %v3204
        %v3346 = vpack.c.bf16 %v3216, %v3212
        %v3347 = vpack.c.bf16 %v3218, %v3214
        %v3348 = vpack.c.bf16 %v3226, %v3222
        %v3349 = vpack.c.bf16 %v3228, %v3224
        %v3350 = vpack.c.bf16 %v3236, %v3232
        %v3351 = vpack.c.bf16 %v3238, %v3234
        %v3352 = vpack.c.bf16 %v3246, %v3242
        %v3353 = vpack.c.bf16 %v3248, %v3244
        %v3354 = vpack.c.bf16 %v3256, %v3252
        %v3355 = vpack.c.bf16 %v3258, %v3254
        %v3356 = vpack.c.bf16 %v3266, %v3262
        %v3357 = vpack.c.bf16 %v3268, %v3264
        %v3358 = vpack.c.bf16 %v3276, %v3272
        %v3359 = vpack.c.bf16 %v3278, %v3274
        %v3360 = vpack.c.bf16 %v3286, %v3282
        %v3361 = vpack.c.bf16 %v3288, %v3284
        %v3362 = vpack.c.bf16 %v3296, %v3292
        %v3363 = vpack.c.bf16 %v3298, %v3294
        %v3428 = vunpack.c.l.b16 %v3300
        %v3429 = vunpack.c.l.b16 %v3301
        %v3430 = vunpack.c.h.b16 %v3300
        %v3431 = vunpack.c.h.b16 %v3301
        %v3432 = vunpack.c.l.b16 %v3302
        %v3433 = vunpack.c.l.b16 %v3303
        %v3434 = vunpack.c.h.b16 %v3302
        %v3435 = vunpack.c.h.b16 %v3303
        %v3436 = vunpack.c.l.b16 %v3304
        %v3437 = vunpack.c.l.b16 %v3305
        %v3438 = vunpack.c.h.b16 %v3304
        %v3439 = vunpack.c.h.b16 %v3305
        %v3440 = vunpack.c.l.b16 %v3306
        %v3441 = vunpack.c.l.b16 %v3307
        %v3442 = vunpack.c.h.b16 %v3306
        %v3443 = vunpack.c.h.b16 %v3307
        %v3444 = vunpack.c.l.b16 %v3308
        %v3445 = vunpack.c.l.b16 %v3309
        %v3446 = vunpack.c.h.b16 %v3308
        %v3447 = vunpack.c.h.b16 %v3309
        %v3448 = vunpack.c.l.b16 %v3310
        %v3449 = vunpack.c.l.b16 %v3311
        %v3450 = vunpack.c.h.b16 %v3310
        %v3451 = vunpack.c.h.b16 %v3311
        %v3452 = vunpack.c.l.b16 %v3312
        %v3453 = vunpack.c.l.b16 %v3313
        %v3454 = vunpack.c.h.b16 %v3312
        %v3455 = vunpack.c.h.b16 %v3313
        %v3456 = vunpack.c.l.b16 %v3314
        %v3457 = vunpack.c.l.b16 %v3315
        %v3458 = vunpack.c.h.b16 %v3314
        %v3459 = vunpack.c.h.b16 %v3315
        %v3460 = vunpack.c.l.b16 %v3316
        %v3461 = vunpack.c.l.b16 %v3317
        %v3462 = vunpack.c.h.b16 %v3316
        %v3463 = vunpack.c.h.b16 %v3317
        %v3464 = vunpack.c.l.b16 %v3318
        %v3465 = vunpack.c.l.b16 %v3319
        %v3466 = vunpack.c.h.b16 %v3318
        %v3467 = vunpack.c.h.b16 %v3319
        %v3468 = vunpack.c.l.b16 %v3320
        %v3469 = vunpack.c.l.b16 %v3321
        %v3470 = vunpack.c.h.b16 %v3320
        %v3471 = vunpack.c.h.b16 %v3321
        %v3472 = vunpack.c.l.b16 %v3322
        %v3473 = vunpack.c.l.b16 %v3323
        %v3474 = vunpack.c.h.b16 %v3322
        %v3475 = vunpack.c.h.b16 %v3323
        %v3476 = vunpack.c.l.b16 %v3324
        %v3477 = vunpack.c.l.b16 %v3325
        %v3478 = vunpack.c.h.b16 %v3324
        %v3479 = vunpack.c.h.b16 %v3325
        %v3480 = vunpack.c.l.b16 %v3326
        %v3481 = vunpack.c.l.b16 %v3327
        %v3482 = vunpack.c.h.b16 %v3326
        %v3483 = vunpack.c.h.b16 %v3327
        %v3484 = vunpack.c.l.b16 %v3328
        %v3485 = vunpack.c.l.b16 %v3329
        %v3486 = vunpack.c.h.b16 %v3328
        %v3487 = vunpack.c.h.b16 %v3329
        %v3488 = vunpack.c.l.b16 %v3330
        %v3489 = vunpack.c.l.b16 %v3331
        %v3490 = vunpack.c.h.b16 %v3330
        %v3491 = vunpack.c.h.b16 %v3331
        %v3492 = vunpack.c.l.b16 %v3332
        %v3493 = vunpack.c.l.b16 %v3333
        %v3494 = vunpack.c.h.b16 %v3332
        %v3495 = vunpack.c.h.b16 %v3333
        %v3496 = vunpack.c.l.b16 %v3334
        %v3497 = vunpack.c.l.b16 %v3335
        %v3498 = vunpack.c.h.b16 %v3334
        %v3499 = vunpack.c.h.b16 %v3335
        %v3500 = vunpack.c.l.b16 %v3336
        %v3501 = vunpack.c.l.b16 %v3337
        %v3502 = vunpack.c.h.b16 %v3336
        %v3503 = vunpack.c.h.b16 %v3337
        %v3504 = vunpack.c.l.b16 %v3338
        %v3505 = vunpack.c.l.b16 %v3339
        %v3506 = vunpack.c.h.b16 %v3338
        %v3507 = vunpack.c.h.b16 %v3339
        %v3508 = vunpack.c.l.b16 %v3340
        %v3509 = vunpack.c.l.b16 %v3341
        %v3510 = vunpack.c.h.b16 %v3340
        %v3511 = vunpack.c.h.b16 %v3341
        %v3512 = vunpack.c.l.b16 %v3342
        %v3513 = vunpack.c.l.b16 %v3343
        %v3514 = vunpack.c.h.b16 %v3342
        %v3515 = vunpack.c.h.b16 %v3343
        %v3516 = vunpack.c.l.b16 %v3344
        %v3517 = vunpack.c.l.b16 %v3345
        %v3518 = vunpack.c.h.b16 %v3344
        %v3519 = vunpack.c.h.b16 %v3345
        %v3520 = vunpack.c.l.b16 %v3346
        %v3521 = vunpack.c.l.b16 %v3347
        %v3522 = vunpack.c.h.b16 %v3346
        %v3523 = vunpack.c.h.b16 %v3347
        %v3524 = vunpack.c.l.b16 %v3348
        %v3525 = vunpack.c.l.b16 %v3349
        %v3526 = vunpack.c.h.b16 %v3348
        %v3527 = vunpack.c.h.b16 %v3349
        %v3528 = vunpack.c.l.b16 %v3350
        %v3529 = vunpack.c.l.b16 %v3351
        %v3530 = vunpack.c.h.b16 %v3350
        %v3531 = vunpack.c.h.b16 %v3351
        %v3532 = vunpack.c.l.b16 %v3352
        %v3533 = vunpack.c.l.b16 %v3353
        %v3534 = vunpack.c.h.b16 %v3352
        %v3535 = vunpack.c.h.b16 %v3353
        %v3536 = vunpack.c.l.b16 %v3354
        %v3537 = vunpack.c.l.b16 %v3355
        %v3538 = vunpack.c.h.b16 %v3354
        %v3539 = vunpack.c.h.b16 %v3355
        %v3540 = vunpack.c.l.b16 %v3356
        %v3541 = vunpack.c.l.b16 %v3357
        %v3542 = vunpack.c.h.b16 %v3356
        %v3543 = vunpack.c.h.b16 %v3357
        %v3544 = vunpack.c.l.b16 %v3358
        %v3545 = vunpack.c.l.b16 %v3359
        %v3546 = vunpack.c.h.b16 %v3358
        %v3547 = vunpack.c.h.b16 %v3359
        %v3548 = vunpack.c.l.b16 %v3360
        %v3549 = vunpack.c.l.b16 %v3361
        %v3550 = vunpack.c.h.b16 %v3360
        %v3551 = vunpack.c.h.b16 %v3361
        %v3552 = vunpack.c.l.b16 %v3362
        %v3553 = vunpack.c.l.b16 %v3363
        %v3554 = vunpack.c.h.b16 %v3362
        %v3555 = vunpack.c.h.b16 %v3363
        %v3556 = vpack.c.b16 %v3429, %v3428
        %v3557 = vpack.c.b16 %v3431, %v3430
        %v3558 = vpack.c.b16 %v3433, %v3432
        %v3559 = vpack.c.b16 %v3435, %v3434
        %v3560 = vpack.c.b16 %v3437, %v3436
        %v3561 = vpack.c.b16 %v3439, %v3438
        %v3562 = vpack.c.b16 %v3441, %v3440
        %v3563 = vpack.c.b16 %v3443, %v3442
        %v3564 = vpack.c.b16 %v3445, %v3444
        %v3565 = vpack.c.b16 %v3447, %v3446
        %v3566 = vpack.c.b16 %v3449, %v3448
        %v3567 = vpack.c.b16 %v3451, %v3450
        %v3568 = vpack.c.b16 %v3453, %v3452
        %v3569 = vpack.c.b16 %v3455, %v3454
        %v3570 = vpack.c.b16 %v3457, %v3456
        %v3571 = vpack.c.b16 %v3459, %v3458
        %v3572 = vpack.c.b16 %v3461, %v3460
        %v3573 = vpack.c.b16 %v3463, %v3462
        %v3574 = vpack.c.b16 %v3465, %v3464
        %v3575 = vpack.c.b16 %v3467, %v3466
        %v3576 = vpack.c.b16 %v3469, %v3468
        %v3577 = vpack.c.b16 %v3471, %v3470
        %v3578 = vpack.c.b16 %v3473, %v3472
        %v3579 = vpack.c.b16 %v3475, %v3474
        %v3580 = vpack.c.b16 %v3477, %v3476
        %v3581 = vpack.c.b16 %v3479, %v3478
        %v3582 = vpack.c.b16 %v3481, %v3480
        %v3583 = vpack.c.b16 %v3483, %v3482
        %v3584 = vpack.c.b16 %v3485, %v3484
        %v3585 = vpack.c.b16 %v3487, %v3486
        %v3586 = vpack.c.b16 %v3489, %v3488
        %v3587 = vpack.c.b16 %v3491, %v3490
        %v3588 = vpack.c.b16 %v3493, %v3492
        %v3589 = vpack.c.b16 %v3495, %v3494
        %v3590 = vpack.c.b16 %v3497, %v3496
        %v3591 = vpack.c.b16 %v3499, %v3498
        %v3592 = vpack.c.b16 %v3501, %v3500
        %v3593 = vpack.c.b16 %v3503, %v3502
        %v3594 = vpack.c.b16 %v3505, %v3504
        %v3595 = vpack.c.b16 %v3507, %v3506
        %v3596 = vpack.c.b16 %v3509, %v3508
        %v3597 = vpack.c.b16 %v3511, %v3510
        %v3598 = vpack.c.b16 %v3513, %v3512
        %v3599 = vpack.c.b16 %v3515, %v3514
        %v3600 = vpack.c.b16 %v3517, %v3516
        %v3601 = vpack.c.b16 %v3519, %v3518
        %v3602 = vpack.c.b16 %v3521, %v3520
        %v3603 = vpack.c.b16 %v3523, %v3522
        %v3604 = vpack.c.b16 %v3525, %v3524
        %v3605 = vpack.c.b16 %v3527, %v3526
        %v3606 = vpack.c.b16 %v3529, %v3528
        %v3607 = vpack.c.b16 %v3531, %v3530
        %v3608 = vpack.c.b16 %v3533, %v3532
        %v3609 = vpack.c.b16 %v3535, %v3534
        %v3610 = vpack.c.b16 %v3537, %v3536
        %v3611 = vpack.c.b16 %v3539, %v3538
        %v3612 = vpack.c.b16 %v3541, %v3540
        %v3613 = vpack.c.b16 %v3543, %v3542
        %v3614 = vpack.c.b16 %v3545, %v3544
        %v3615 = vpack.c.b16 %v3547, %v3546
        %v3616 = vpack.c.b16 %v3549, %v3548
        %v3617 = vpack.c.b16 %v3551, %v3550
        %v3618 = vpack.c.b16 %v3553, %v3552
        %v3619 = vpack.c.b16 %v3555, %v3554
        %3684 = vst [vmem:[%s374] sm:$0xff] %v3556
        %3685 = vst [vmem:[%s374 + $0x8] sm:$0xff] %v3557
        %3686 = vst [vmem:[%s374 + $0x10] sm:$0xff] %v3558
        %3687 = vst [vmem:[%s374 + $0x18] sm:$0xff] %v3559
        %3688 = vst [vmem:[%s374 + $0x20] sm:$0xff] %v3560
        %3689 = vst [vmem:[%s374 + $0x28] sm:$0xff] %v3561
        %3690 = vst [vmem:[%s374 + $0x30] sm:$0xff] %v3562
        %3691 = vst [vmem:[%s374 + $0x38] sm:$0xff] %v3563
        %3692 = vst [vmem:[%s374 + $0x40] sm:$0xff] %v3564
        %3693 = vst [vmem:[%s374 + $0x48] sm:$0xff] %v3565
        %3694 = vst [vmem:[%s374 + $0x50] sm:$0xff] %v3566
        %3695 = vst [vmem:[%s374 + $0x58] sm:$0xff] %v3567
        %3696 = vst [vmem:[%s374 + $0x60] sm:$0xff] %v3568
        %3697 = vst [vmem:[%s374 + $0x68] sm:$0xff] %v3569
        %3698 = vst [vmem:[%s374 + $0x70] sm:$0xff] %v3570
        %3699 = vst [vmem:[%s374 + $0x78] sm:$0xff] %v3571
        %3700 = vst [vmem:[%s374 + $0x80] sm:$0xff] %v3572
        %3701 = vst [vmem:[%s374 + $0x88] sm:$0xff] %v3573
        %3702 = vst [vmem:[%s374 + $0x90] sm:$0xff] %v3574
        %3703 = vst [vmem:[%s374 + $0x98] sm:$0xff] %v3575
        %3704 = vst [vmem:[%s374 + $0xa0] sm:$0xff] %v3576
        %3705 = vst [vmem:[%s374 + $0xa8] sm:$0xff] %v3577
        %3706 = vst [vmem:[%s374 + $0xb0] sm:$0xff] %v3578
        %3707 = vst [vmem:[%s374 + $0xb8] sm:$0xff] %v3579
        %3708 = vst [vmem:[%s374 + $0xc0] sm:$0xff] %v3580
        %3709 = vst [vmem:[%s374 + $0xc8] sm:$0xff] %v3581
        %3710 = vst [vmem:[%s374 + $0xd0] sm:$0xff] %v3582
        %3711 = vst [vmem:[%s374 + $0xd8] sm:$0xff] %v3583
        %3712 = vst [vmem:[%s374 + $0xe0] sm:$0xff] %v3584
        %3713 = vst [vmem:[%s374 + $0xe8] sm:$0xff] %v3585
        %3714 = vst [vmem:[%s374 + $0xf0] sm:$0xff] %v3586
        %3715 = vst [vmem:[%s374 + $0xf8] sm:$0xff] %v3587
        %3716 = vst [vmem:[%s374 + $0x100] sm:$0xff] %v3588
        %3717 = vst [vmem:[%s374 + $0x108] sm:$0xff] %v3589
        %3718 = vst [vmem:[%s374 + $0x110] sm:$0xff] %v3590
        %3719 = vst [vmem:[%s374 + $0x118] sm:$0xff] %v3591
        %3720 = vst [vmem:[%s374 + $0x120] sm:$0xff] %v3592
        %3721 = vst [vmem:[%s374 + $0x128] sm:$0xff] %v3593
        %3722 = vst [vmem:[%s374 + $0x130] sm:$0xff] %v3594
        %3723 = vst [vmem:[%s374 + $0x138] sm:$0xff] %v3595
        %3724 = vst [vmem:[%s374 + $0x140] sm:$0xff] %v3596
        %3725 = vst [vmem:[%s374 + $0x148] sm:$0xff] %v3597
        %3726 = vst [vmem:[%s374 + $0x150] sm:$0xff] %v3598
        %3727 = vst [vmem:[%s374 + $0x158] sm:$0xff] %v3599
        %3728 = vst [vmem:[%s374 + $0x160] sm:$0xff] %v3600
        %3729 = vst [vmem:[%s374 + $0x168] sm:$0xff] %v3601
        %3730 = vst [vmem:[%s374 + $0x170] sm:$0xff] %v3602
        %3731 = vst [vmem:[%s374 + $0x178] sm:$0xff] %v3603
        %3732 = vst [vmem:[%s374 + $0x180] sm:$0xff] %v3604
        %3733 = vst [vmem:[%s374 + $0x188] sm:$0xff] %v3605
        %3734 = vst [vmem:[%s374 + $0x190] sm:$0xff] %v3606
        %3735 = vst [vmem:[%s374 + $0x198] sm:$0xff] %v3607
        %3736 = vst [vmem:[%s374 + $0x1a0] sm:$0xff] %v3608
        %3737 = vst [vmem:[%s374 + $0x1a8] sm:$0xff] %v3609
        %3738 = vst [vmem:[%s374 + $0x1b0] sm:$0xff] %v3610
        %3739 = vst [vmem:[%s374 + $0x1b8] sm:$0xff] %v3611
        %3740 = vst [vmem:[%s374 + $0x1c0] sm:$0xff] %v3612
        %3741 = vst [vmem:[%s374 + $0x1c8] sm:$0xff] %v3613
        %3742 = vst [vmem:[%s374 + $0x1d0] sm:$0xff] %v3614
        %3743 = vst [vmem:[%s374 + $0x1d8] sm:$0xff] %v3615
        %3744 = vst [vmem:[%s374 + $0x1e0] sm:$0xff] %v3616
        %3745 = vst [vmem:[%s374 + $0x1e8] sm:$0xff] %v3617
        %3746 = vst [vmem:[%s374 + $0x1f0] sm:$0xff] %v3618
        %3747 = vst [vmem:[%s374 + $0x1f8] sm:$0xff] %v3619
        %s3748 = sand.u32 %s155, 1
        %s3749 = scalar_lea.sflag [#allocation4], %s3748
        %s3750 = sand.u32 %s155, 1
        %s3751 = smul.addr %s3750, 512
        %s3752 = scalar_lea.vmem [#allocation10], %s3751
        %s3753 = sand.u32 %s29, 1
        %s3754 = scalar_lea.sflag [#allocation12], %s3753
        %s3755 = sand.u32 %s183, 1
        %s3756 = smul.addr %s3755, 512
        %s3757 = scalar_lea.vmem [#allocation11], %s3756
        %s3758 = sand.u32 %s29, 1
        %s3759 = scalar_lea.sflag [#allocation12], %s3758
        %s3760 = sand.u32 %s211, 1
        %s3761 = smul.addr %s3760, 512
        %s3762 = scalar_lea.vmem [#allocation13], %s3761
        // Predicated region
        $region53: #{tpu_custom_call.1} parent=35 // pred_check
          %p3763 = pneg %p165
        $region54: #{tpu_custom_call.1} parent=35 // pred_check_branch
          %3765 = sbr.rel (%p3763) target = $region56
        $region55: #{tpu_custom_call.1} parent=35 // pred_region
          %s3766 = smul.u32 64, %s34
          %s3767 = smul.u32 2, %s33
          %s3769 = ssub.s32 8192, 8192
          %3770 = vsyncadd %s3749, %s3769
          %s3771 = smul.addr %s3766, 2
          %s3772 = sadd.s32 %s3767, %s3771
          %s3773 = smul.addr %s3772, 64
          %s3774 = scalar_lea.hbm %s4, %s3773
          %s3775 = sshll.u32 %s3752, 4
          %s3776 = int_to_ptr.vmem [resolvable:$true] %s3775
          %3781 = dma.vmem_to_hbm [thread:$0]  %s3776, 8192, %s3774, %s3749, 128, 128, 8
        $region56: #{tpu_custom_call.1} parent=35 // pred_fallthru
          _
        // Predicated region
        $region57: #{tpu_custom_call.1} parent=35 // pred_check
          %p3782 = pneg %p193
        $region58: #{tpu_custom_call.1} parent=35 // pred_check_branch
          %3784 = sbr.rel (%p3782) target = $region60
        $region59: #{tpu_custom_call.1} parent=35 // pred_region
          %s3785 = smul.u32 64, %s34
          %s3786 = smul.u32 2, %s33
          %s3788 = ssub.s32 8192, 8192
          %3789 = vsyncadd %s3754, %s3788
          %s3790 = smul.addr %s3785, 2
          %s3791 = sadd.s32 %s3786, %s3790
          %s3792 = smul.addr %s3791, 64
          %s3793 = scalar_lea.hbm %s5, %s3792
          %s3794 = sshll.u32 %s3757, 4
          %s3795 = int_to_ptr.vmem [resolvable:$true] %s3794
          %3800 = dma.vmem_to_hbm [thread:$0]  %s3795, 8192, %s3793, %s3754, 128, 128, 8
        $region60: #{tpu_custom_call.1} parent=35 // pred_fallthru
          _
        // Predicated region
        $region61: #{tpu_custom_call.1} parent=35 // pred_check
          %p3801 = pneg %p221
        $region62: #{tpu_custom_call.1} parent=35 // pred_check_branch
          %3803 = sbr.rel (%p3801) target = $region64
        $region63: #{tpu_custom_call.1} parent=35 // pred_region
          %s3804 = smul.u32 64, %s34
          %s3805 = smul.u32 2, %s33
          %s3807 = ssub.s32 8192, 8192
          %3808 = vsyncadd %s3759, %s3807
          %s3809 = smul.addr %s3804, 2
          %s3810 = sadd.s32 %s3805, %s3809
          %s3811 = smul.addr %s3810, 64
          %s3812 = scalar_lea.hbm %s6, %s3811
          %s3813 = sshll.u32 %s3762, 4
          %s3814 = int_to_ptr.vmem [resolvable:$true] %s3813
          %3819 = dma.vmem_to_hbm [thread:$0]  %s3814, 8192, %s3812, %s3759, 128, 128, 8
        $region64: #{tpu_custom_call.1} parent=35 // pred_fallthru
          _
      $region36: #{tpu_custom_call.1} parent=5 // pred_fallthru
        _
      %p3820 = scmp.le.s32.totalorder 2, %s24
      // Predicated region
      $region65: #{tpu_custom_call.1} parent=5 // pred_check
        %p3821 = pneg %p3820
      $region66: #{tpu_custom_call.1} parent=5 // pred_check_branch
        %3823 = sbr.rel (%p3821) target = $region68
      $region67: #{tpu_custom_call.1} parent=5 // pred_region
        %s3824 = ssub.s32 %s24, 2
        // Predicated region
        $region69: #{tpu_custom_call.1} parent=67 // pred_check
          %p3825 = pneg %p171
        $region70: #{tpu_custom_call.1} parent=67 // pred_check_branch
          %3827 = sbr.rel (%p3825) target = $region72
        $region71: #{tpu_custom_call.1} parent=67 // pred_region
          %s3828 = sand.u32 %s156, 1
          %s3829 = scalar_lea.sflag [#allocation4], %s3828
          %s3830 = sand.u32 %s156, 1
          %s3831 = smul.addr %s3830, 512
          %s3832 = scalar_lea.vmem [#allocation10], %s3831
          %3833 = dma.done %s3829, 8192
        $region72: #{tpu_custom_call.1} parent=67 // pred_fallthru
          _
        // Predicated region
        $region73: #{tpu_custom_call.1} parent=67 // pred_check
          %p3834 = pneg %p199
        $region74: #{tpu_custom_call.1} parent=67 // pred_check_branch
          %3836 = sbr.rel (%p3834) target = $region76
        $region75: #{tpu_custom_call.1} parent=67 // pred_region
          %s3837 = sand.u32 %s30, 1
          %s3838 = scalar_lea.sflag [#allocation12], %s3837
          %s3839 = sand.u32 %s184, 1
          %s3840 = smul.addr %s3839, 512
          %s3841 = scalar_lea.vmem [#allocation11], %s3840
          %3842 = dma.done %s3838, 8192
        $region76: #{tpu_custom_call.1} parent=67 // pred_fallthru
          _
        // Predicated region
        $region77: #{tpu_custom_call.1} parent=67 // pred_check
          %p3843 = pneg %p227
        $region78: #{tpu_custom_call.1} parent=67 // pred_check_branch
          %3845 = sbr.rel (%p3843) target = $region80
        $region79: #{tpu_custom_call.1} parent=67 // pred_region
          %s3846 = sand.u32 %s30, 1
          %s3847 = scalar_lea.sflag [#allocation12], %s3846
          %s3848 = sand.u32 %s212, 1
          %s3849 = smul.addr %s3848, 512
          %s3850 = scalar_lea.vmem [#allocation13], %s3849
          %3851 = dma.done %s3847, 8192
        $region80: #{tpu_custom_call.1} parent=67 // pred_fallthru
          _
      $region68: #{tpu_custom_call.1} parent=5 // pred_fallthru
        _
    $region6: #{tpu_custom_call.1} parent=1 // loop_footer
      %s28 = sadd.s32 1, %s24
    $region7: #{tpu_custom_call.1} parent=1 // loop_footer_branch
      %23 = sbr.rel target = $region3
    $region8: #{tpu_custom_call.1} parent=1 // loop_exit
      _
    %3852 = vsyncpa [#allocation3], 1
    %s3853 = scalar_lea.sflag [#allocation3], 1
    %3854 = vsyncpa %s3853, 1
    %3855 = vsyncpa [#allocation6], 1
    %3856 = vsyncpa [#allocation9], 1
    %3857 = vsyncpa [#allocation4], 1
    %s3858 = scalar_lea.sflag [#allocation4], 1
    %3859 = vsyncpa %s3858, 1
    %3860 = vsyncpa [#allocation12], 1
    %s3861 = scalar_lea.sflag [#allocation12], 1
    %3862 = vsyncpa %s3861, 1

</llo_original>
